<compile_context>
chip_gen: v7x
topology: tpu7x:2x2x1
jax: 0.10.0
libtpu: 0.0.40
codegen_flags: <defaults>
</compile_context>

<pallas_src>
import functools

import jax
import jax.numpy as jnp
from jax.experimental import pallas as pl
from jax.experimental.pallas import tpu as pltpu

VMEM = pltpu.MemorySpace.VMEM


# ----------------------------------------------------------------------------
# Pallas kernels
# ----------------------------------------------------------------------------
def conv_bn_lrelu_pool_kernel(p_ref, w_ref, shift_ref, o_ref, *, num_pool):
    """Fused Conv3d (im2col matmul, BN scale pre-folded into W) + MaxPool3d
    (max over the num_pool window offsets) + BN shift + LeakyReLU(0.2).

    p_ref:     (1, num_pool, K, N) bf16   patches for one batch element
    w_ref:     (Cout, K)           bf16   BN-scaled conv weights
    shift_ref: (Cout, 1)           f32    BN shift (beta - mean * scale)
    o_ref:     (1, Cout, N)        f32    pooled activations (lane axis = N)
    """
    w = w_ref[...]
    y = jnp.dot(w, p_ref[0, 0, :, :], preferred_element_type=jnp.float32)
    for p in range(1, num_pool):                 # static unroll over pool window
        y = jnp.maximum(
            y, jnp.dot(w, p_ref[0, p, :, :], preferred_element_type=jnp.float32))
    # per-channel shift commutes with the max; LeakyReLU is monotone so it can
    # be applied after the pool.
    y = y + shift_ref[...]
    o_ref[0, :, :] = jnp.maximum(y, 0.2 * y)


def fused_mlp_kernel(x_ref, w1_ref, b1_ref, w2_ref, b2_ref, w3_ref, b3_ref, o_ref):
    """fc1 + ReLU + fc2 + ReLU + fc3, all intermediates kept in registers/VMEM.

    Dropout layers have p=0 in this config -> identity (no RNG path).
    """
    h = jnp.dot(x_ref[...], w1_ref[...], preferred_element_type=jnp.float32)
    h = jnp.maximum(h + b1_ref[...], 0.0)
    h = jnp.dot(h.astype(jnp.bfloat16), w2_ref[...],
                preferred_element_type=jnp.float32)
    h = jnp.maximum(h + b2_ref[...], 0.0)
    y = jnp.dot(h.astype(jnp.bfloat16), w3_ref[...],
                preferred_element_type=jnp.float32)
    o_ref[...] = (y + b3_ref[...]).astype(o_ref.dtype)


# ----------------------------------------------------------------------------
# Pallas wrappers
# ----------------------------------------------------------------------------
def conv_bn_lrelu_pool(pat, w_mat, shift):
    """pat: (B, pool^3, K, N) bf16; w_mat: (Cout, K) bf16; shift: (Cout, 1) f32."""
    B, P, K, N = pat.shape
    cout = w_mat.shape[0]
    flops = int(2 * B * P * cout * K * N)
    bytes_accessed = int(pat.size * 2 + w_mat.size * 2 + shift.size * 4
                         + B * cout * N * 4)
    kernel = functools.partial(conv_bn_lrelu_pool_kernel, num_pool=P)
    return pl.pallas_call(
        kernel,
        out_shape=jax.ShapeDtypeStruct((B, cout, N), jnp.float32),
        grid=(B,),
        in_specs=[
            pl.BlockSpec((1, P, K, N), lambda b: (b, 0, 0, 0)),
            pl.BlockSpec((cout, K), lambda b: (0, 0)),
            pl.BlockSpec((cout, 1), lambda b: (0, 0)),
        ],
        out_specs=pl.BlockSpec((1, cout, N), lambda b: (b, 0, 0)),
        compiler_params=pltpu.CompilerParams(
            dimension_semantics=("parallel",)),
        cost_estimate=pl.CostEstimate(flops=flops, transcendentals=0,
                                      bytes_accessed=bytes_accessed),
    )(pat, w_mat, shift)


def fused_mlp(x, w1, b1, w2, b2, w3, b3):
    """x: (B, F) bf16; weights bf16 (in, out); biases f32 (1, out)."""
    B = x.shape[0]
    out = w3.shape[1]
    flops = int(2 * B * (w1.shape[0] * w1.shape[1]
                         + w2.shape[0] * w2.shape[1]
                         + w3.shape[0] * w3.shape[1]))
    bytes_accessed = int(x.size * 2 + (w1.size + w2.size + w3.size) * 2
                         + (b1.size + b2.size + b3.size) * 4 + B * out * 4)
    return pl.pallas_call(
        fused_mlp_kernel,
        out_shape=jax.ShapeDtypeStruct((B, out), jnp.float32),
        in_specs=[pl.BlockSpec(memory_space=VMEM)] * 7,
        out_specs=pl.BlockSpec(memory_space=VMEM),
        cost_estimate=pl.CostEstimate(flops=flops, transcendentals=0,
                                      bytes_accessed=bytes_accessed),
    )(x, w1, b1, w2, b2, w3, b3)


# ----------------------------------------------------------------------------
# JAX glue: pooled im2col patch extraction (slicing/reshape only)
# ----------------------------------------------------------------------------
def pooled_patches(x, ks, pad, pool):
    """x: (B, Cin, D, H, W) -> patches (B, pool^3, Cin*ks^3, OP^3), OP.

    patches[b, p, k, s] is the im2col column for the conv output position that
    pool-window s (of size pool^3, floor mode) selects at offset p.  K order is
    (cin, kd, kh, kw) to match torch W.reshape(Cout, -1).
    """
    B, C, D, H, W = x.shape
    xp = jnp.pad(x, ((0, 0), (0, 0), (pad, pad), (pad, pad), (pad, pad)))
    O = D + 2 * pad - ks + 1          # conv output extent (stride 1)
    OP = O // pool                    # pooled extent (floor mode)
    crop = OP * pool
    cols = []
    for c in range(C):
        for kd in range(ks):
            for kh in range(ks):
                for kw in range(ks):
                    cols.append(xp[:, c, kd:kd + crop, kh:kh + crop, kw:kw + crop])
    K = C * ks ** 3
    pat = jnp.stack(cols, axis=1)                             # (B, K, crop, crop, crop)
    pat = pat.reshape(B, K, OP, pool, OP, pool, OP, pool)
    pat = pat.transpose(0, 3, 5, 7, 1, 2, 4, 6)               # (B, pd, ph, pw, K, od, oh, ow)
    return pat.reshape(B, pool ** 3, K, OP ** 3), OP


# ----------------------------------------------------------------------------
# Parameters (deterministic synthetic init, shapes from Net.__init__)
# ----------------------------------------------------------------------------
def init_params(key, *, in_channels, layers, out_conv_channels, kernel_size, out_dim):
    conv_channels = [in_channels] + [
        int(out_conv_channels / 2 ** k) for k in range(layers - 1, -1, -1)
    ]
    params = {"convs": []}
    for i in range(layers):
        key, k1 = jax.random.split(key)
        cin, cout = conv_channels[i], conv_channels[i + 1]
        w = 0.05 * jax.random.normal(
            k1, (cout, cin, kernel_size, kernel_size, kernel_size), jnp.float32)
        params["convs"].append(dict(
            w=w,
            gamma=jnp.ones((cout,), jnp.float32),
            beta=jnp.zeros((cout,), jnp.float32),
            mean=jnp.zeros((cout,), jnp.float32),   # BN running stats (eval mode)
            var=jnp.ones((cout,), jnp.float32),
        ))
    fc1_in = out_conv_channels * out_dim ** 3
    for name, (fin, fout) in (("fc1", (fc1_in, 128)), ("fc2", (128, 64)), ("fc3", (64, 1))):
        key, k1, k2 = jax.random.split(key, 3)
        # stored as (in, out) -> kernel does x @ W directly (transpose of torch layout)
        params[name + "_w"] = 0.05 * jax.random.normal(k1, (fin, fout), jnp.float32)
        params[name + "_b"] = 0.05 * jax.random.normal(k2, (fout,), jnp.float32)
    return params


# ----------------------------------------------------------------------------
# Full forward (mirrors Net.forward with filter=False)
# ----------------------------------------------------------------------------
def net_forward(params, x, *, layers, kernel_size, extra_pool):
    eps = 1e-5
    B = x.shape[0]
    for i in range(layers):
        cp = params["convs"][i]
        cout = cp["w"].shape[0]
        pool = 2 * extra_pool if i == layers - 1 else 2
        pat, OP = pooled_patches(x, kernel_size, 1, pool)
        # TODO(synk): BatchNorm3d implemented in inference mode (running stats);
        #             training-mode batch statistics are not reproduced.
        inv_std = cp["gamma"] / jnp.sqrt(cp["var"] + eps)
        w_mat = (cp["w"].reshape(cout, -1) * inv_std[:, None]).astype(jnp.bfloat16)
        shift = (cp["beta"] - cp["mean"] * inv_std).reshape(cout, 1).astype(jnp.float32)
        y = conv_bn_lrelu_pool(pat.astype(jnp.bfloat16), w_mat, shift)  # (B, Cout, OP^3)
        x = y.reshape(B, cout, OP, OP, OP)                              # NCDHW, no transpose
    flat = x.reshape(B, -1).astype(jnp.bfloat16)   # == torch.flatten(x, 1)
    out = fused_mlp(
        flat,
        params["fc1_w"].astype(jnp.bfloat16), params["fc1_b"].reshape(1, -1),
        params["fc2_w"].astype(jnp.bfloat16), params["fc2_b"].reshape(1, -1),
        params["fc3_w"].astype(jnp.bfloat16), params["fc3_b"].reshape(1, -1),
    )
    return out


# ----------------------------------------------------------------------------
if __name__ == "__main__":
    # Small, consistent config
    B, in_channels, dim = 2, 1, 16
    layers, out_conv_channels, extra_pool, kernel_size = 1, 8, 1, 4

    # out_dim exactly as in Net.__init__
    out_dim = dim
    for _ in range(layers):
        out_dim = (out_dim + (3 - kernel_size)) // 2
    out_dim = out_dim // extra_pool                              # -> 7

    key = jax.random.PRNGKey(0)
    key, kx, kp = jax.random.split(key, 3)
    x = jax.random.normal(kx, (B, in_channels, dim, dim, dim), jnp.float32)
    params = init_params(kp, in_channels=in_channels, layers=layers,
                         out_conv_channels=out_conv_channels,
                         kernel_size=kernel_size, out_dim=out_dim)

    fwd = jax.jit(functools.partial(net_forward, layers=layers,
                                    kernel_size=kernel_size, extra_pool=extra_pool))
    y = fwd(params, x)
    jax.block_until_ready(y)
    assert y.shape == (B, 1), y.shape
    print("KERNEL_OK")
</pallas_src>

<mosaic_0001>
module attributes {stable_mosaic.version = 11 : i64} {
  func.func @conv_bn_lrelu_pool_kernel(%arg0: i32, %arg1: memref<1x8x64x343xbf16, #tpu.memory_space<vmem>>, %arg2: memref<8x64xbf16, #tpu.memory_space<vmem>>, %arg3: memref<8x1xf32, #tpu.memory_space<vmem>>, %arg4: memref<1x8x343xf32, #tpu.memory_space<vmem>>) attributes {dimension_semantics = [#tpu.dimension_semantics<parallel>], iteration_bounds = array<i64: 2>, scalar_prefetch = 0 : i64, scratch_operands = 0 : i64, tpu.core_type = #tpu.core_type<tc>, window_params = [{transform_indices = @transform_0, window_bounds = array<i64: 1, 8, 64, 343>}, {pipeline_mode = #tpu.pipeline_mode<synchronous>, transform_indices = @transform_1, window_bounds = array<i64: 8, 64>}, {pipeline_mode = #tpu.pipeline_mode<synchronous>, transform_indices = @transform_2, window_bounds = array<i64: 8, 1>}, {transform_indices = @transform_3, window_bounds = array<i64: 1, 8, 343>}]} {
    %c0 = arith.constant 0 : index
    %c0_0 = arith.constant 0 : index
    %0 = vector.load %arg2[%c0, %c0_0] : memref<8x64xbf16, #tpu.memory_space<vmem>>, vector<8x64xbf16>
    %c0_1 = arith.constant 0 : index
    %c0_2 = arith.constant 0 : index
    %c0_3 = arith.constant 0 : index
    %c0_4 = arith.constant 0 : index
    %1 = vector.load %arg1[%c0_1, %c0_2, %c0_3, %c0_4] : memref<1x8x64x343xbf16, #tpu.memory_space<vmem>>, vector<1x1x64x343xbf16>
    %2 = vector.shape_cast %1 : vector<1x1x64x343xbf16> to vector<64x343xbf16>
    %cst = arith.constant dense<0.000000e+00> : vector<8x343xf32>
    %3 = tpu.matmul %0, %2, %cst {dimension_numbers = #tpu.dot_dimension_numbers<[1], [0], [0], [1], [0, 0, 1, 1], [], []>} : vector<8x64xbf16>, vector<64x343xbf16>, vector<8x343xf32> -> vector<8x343xf32>
    %c0_5 = arith.constant 0 : index
    %c1 = arith.constant 1 : index
    %c0_6 = arith.constant 0 : index
    %c0_7 = arith.constant 0 : index
    %4 = vector.load %arg1[%c0_5, %c1, %c0_6, %c0_7] : memref<1x8x64x343xbf16, #tpu.memory_space<vmem>>, vector<1x1x64x343xbf16>
    %5 = vector.shape_cast %4 : vector<1x1x64x343xbf16> to vector<64x343xbf16>
    %cst_8 = arith.constant dense<0.000000e+00> : vector<8x343xf32>
    %6 = tpu.matmul %0, %5, %cst_8 {dimension_numbers = #tpu.dot_dimension_numbers<[1], [0], [0], [1], [0, 0, 1, 1], [], []>} : vector<8x64xbf16>, vector<64x343xbf16>, vector<8x343xf32> -> vector<8x343xf32>
    %7 = arith.maximumf %3, %6 : vector<8x343xf32>
    %c0_9 = arith.constant 0 : index
    %c2 = arith.constant 2 : index
    %c0_10 = arith.constant 0 : index
    %c0_11 = arith.constant 0 : index
    %8 = vector.load %arg1[%c0_9, %c2, %c0_10, %c0_11] : memref<1x8x64x343xbf16, #tpu.memory_space<vmem>>, vector<1x1x64x343xbf16>
    %9 = vector.shape_cast %8 : vector<1x1x64x343xbf16> to vector<64x343xbf16>
    %cst_12 = arith.constant dense<0.000000e+00> : vector<8x343xf32>
    %10 = tpu.matmul %0, %9, %cst_12 {dimension_numbers = #tpu.dot_dimension_numbers<[1], [0], [0], [1], [0, 0, 1, 1], [], []>} : vector<8x64xbf16>, vector<64x343xbf16>, vector<8x343xf32> -> vector<8x343xf32>
    %11 = arith.maximumf %7, %10 : vector<8x343xf32>
    %c0_13 = arith.constant 0 : index
    %c3 = arith.constant 3 : index
    %c0_14 = arith.constant 0 : index
    %c0_15 = arith.constant 0 : index
    %12 = vector.load %arg1[%c0_13, %c3, %c0_14, %c0_15] : memref<1x8x64x343xbf16, #tpu.memory_space<vmem>>, vector<1x1x64x343xbf16>
    %13 = vector.shape_cast %12 : vector<1x1x64x343xbf16> to vector<64x343xbf16>
    %cst_16 = arith.constant dense<0.000000e+00> : vector<8x343xf32>
    %14 = tpu.matmul %0, %13, %cst_16 {dimension_numbers = #tpu.dot_dimension_numbers<[1], [0], [0], [1], [0, 0, 1, 1], [], []>} : vector<8x64xbf16>, vector<64x343xbf16>, vector<8x343xf32> -> vector<8x343xf32>
    %15 = arith.maximumf %11, %14 : vector<8x343xf32>
    %c0_17 = arith.constant 0 : index
    %c4 = arith.constant 4 : index
    %c0_18 = arith.constant 0 : index
    %c0_19 = arith.constant 0 : index
    %16 = vector.load %arg1[%c0_17, %c4, %c0_18, %c0_19] : memref<1x8x64x343xbf16, #tpu.memory_space<vmem>>, vector<1x1x64x343xbf16>
    %17 = vector.shape_cast %16 : vector<1x1x64x343xbf16> to vector<64x343xbf16>
    %cst_20 = arith.constant dense<0.000000e+00> : vector<8x343xf32>
    %18 = tpu.matmul %0, %17, %cst_20 {dimension_numbers = #tpu.dot_dimension_numbers<[1], [0], [0], [1], [0, 0, 1, 1], [], []>} : vector<8x64xbf16>, vector<64x343xbf16>, vector<8x343xf32> -> vector<8x343xf32>
    %19 = arith.maximumf %15, %18 : vector<8x343xf32>
    %c0_21 = arith.constant 0 : index
    %c5 = arith.constant 5 : index
    %c0_22 = arith.constant 0 : index
    %c0_23 = arith.constant 0 : index
    %20 = vector.load %arg1[%c0_21, %c5, %c0_22, %c0_23] : memref<1x8x64x343xbf16, #tpu.memory_space<vmem>>, vector<1x1x64x343xbf16>
    %21 = vector.shape_cast %20 : vector<1x1x64x343xbf16> to vector<64x343xbf16>
    %cst_24 = arith.constant dense<0.000000e+00> : vector<8x343xf32>
    %22 = tpu.matmul %0, %21, %cst_24 {dimension_numbers = #tpu.dot_dimension_numbers<[1], [0], [0], [1], [0, 0, 1, 1], [], []>} : vector<8x64xbf16>, vector<64x343xbf16>, vector<8x343xf32> -> vector<8x343xf32>
    %23 = arith.maximumf %19, %22 : vector<8x343xf32>
    %c0_25 = arith.constant 0 : index
    %c6 = arith.constant 6 : index
    %c0_26 = arith.constant 0 : index
    %c0_27 = arith.constant 0 : index
    %24 = vector.load %arg1[%c0_25, %c6, %c0_26, %c0_27] : memref<1x8x64x343xbf16, #tpu.memory_space<vmem>>, vector<1x1x64x343xbf16>
    %25 = vector.shape_cast %24 : vector<1x1x64x343xbf16> to vector<64x343xbf16>
    %cst_28 = arith.constant dense<0.000000e+00> : vector<8x343xf32>
    %26 = tpu.matmul %0, %25, %cst_28 {dimension_numbers = #tpu.dot_dimension_numbers<[1], [0], [0], [1], [0, 0, 1, 1], [], []>} : vector<8x64xbf16>, vector<64x343xbf16>, vector<8x343xf32> -> vector<8x343xf32>
    %27 = arith.maximumf %23, %26 : vector<8x343xf32>
    %c0_29 = arith.constant 0 : index
    %c7 = arith.constant 7 : index
    %c0_30 = arith.constant 0 : index
    %c0_31 = arith.constant 0 : index
    %28 = vector.load %arg1[%c0_29, %c7, %c0_30, %c0_31] : memref<1x8x64x343xbf16, #tpu.memory_space<vmem>>, vector<1x1x64x343xbf16>
    %29 = vector.shape_cast %28 : vector<1x1x64x343xbf16> to vector<64x343xbf16>
    %cst_32 = arith.constant dense<0.000000e+00> : vector<8x343xf32>
    %30 = tpu.matmul %0, %29, %cst_32 {dimension_numbers = #tpu.dot_dimension_numbers<[1], [0], [0], [1], [0, 0, 1, 1], [], []>} : vector<8x64xbf16>, vector<64x343xbf16>, vector<8x343xf32> -> vector<8x343xf32>
    %31 = arith.maximumf %27, %30 : vector<8x343xf32>
    %c0_33 = arith.constant 0 : index
    %c0_34 = arith.constant 0 : index
    %32 = vector.load %arg3[%c0_33, %c0_34] : memref<8x1xf32, #tpu.memory_space<vmem>>, vector<8x1xf32>
    %33 = vector.broadcast %32 : vector<8x1xf32> to vector<8x343xf32>
    %34 = arith.addf %31, %33 : vector<8x343xf32>
    %cst_35 = arith.constant 2.000000e-01 : f32
    %35 = vector.broadcast %cst_35 : f32 to vector<8x343xf32>
    %36 = arith.mulf %35, %34 : vector<8x343xf32>
    %37 = arith.maximumf %34, %36 : vector<8x343xf32>
    %c0_36 = arith.constant 0 : index
    %c0_37 = arith.constant 0 : index
    %c0_38 = arith.constant 0 : index
    %38 = vector.load %arg4[%c0_36, %c0_37, %c0_38] : memref<1x8x343xf32, #tpu.memory_space<vmem>>, vector<1x8x343xf32>
    %39 = vector.shape_cast %38 : vector<1x8x343xf32> to vector<8x343xf32>
    %40 = vector.shape_cast %37 : vector<8x343xf32> to vector<1x8x343xf32>
    tpu.vector_store %arg4[%c0_36, %c0_37, %c0_38], %40 {strides = array<i32>} : memref<1x8x343xf32, #tpu.memory_space<vmem>>, vector<1x8x343xf32>,
    return
  }
  func.func @transform_0(%arg0: i32) -> (i32, i32, i32, i32) {
    %c0_i32 = arith.constant 0 : i32
    %c0_i32_0 = arith.constant 0 : i32
    %c0_i32_1 = arith.constant 0 : i32
    %c0_i32_2 = arith.constant 0 : i32
    return %arg0, %c0_i32, %c0_i32_0, %c0_i32_1 : i32, i32, i32, i32
  }
  func.func @transform_1(%arg0: i32) -> (i32, i32) {
    %c0_i32 = arith.constant 0 : i32
    %c0_i32_0 = arith.constant 0 : i32
    %c0_i32_1 = arith.constant 0 : i32
    return %c0_i32, %c0_i32_0 : i32, i32
  }
  func.func @transform_2(%arg0: i32) -> (i32, i32) {
    %c0_i32 = arith.constant 0 : i32
    %c0_i32_0 = arith.constant 0 : i32
    %c0_i32_1 = arith.constant 0 : i32
    return %c0_i32, %c0_i32_0 : i32, i32
  }
  func.func @transform_3(%arg0: i32) -> (i32, i32, i32) {
    %c0_i32 = arith.constant 0 : i32
    %c0_i32_0 = arith.constant 0 : i32
    %c0_i32_1 = arith.constant 0 : i32
    return %arg0, %c0_i32, %c0_i32_0 : i32, i32, i32
  }
}

module attributes {stable_mosaic.version = 11 : i64} {
  func.func @fused_mlp_kernel(%arg0: memref<2x2744xbf16, #tpu.memory_space<vmem>>, %arg1: memref<2744x128xbf16, #tpu.memory_space<vmem>>, %arg2: memref<1x128xf32, #tpu.memory_space<vmem>>, %arg3: memref<128x64xbf16, #tpu.memory_space<vmem>>, %arg4: memref<1x64xf32, #tpu.memory_space<vmem>>, %arg5: memref<64x1xbf16, #tpu.memory_space<vmem>>, %arg6: memref<1x1xf32, #tpu.memory_space<vmem>>, %arg7: memref<2x1xf32, #tpu.memory_space<vmem>>) attributes {dimension_semantics = [], scalar_prefetch = 0 : i64, scratch_operands = 0 : i64, tpu.core_type = #tpu.core_type<tc>} {
    %c0 = arith.constant 0 : index
    %c0_0 = arith.constant 0 : index
    %0 = vector.load %arg0[%c0, %c0_0] : memref<2x2744xbf16, #tpu.memory_space<vmem>>, vector<2x2744xbf16>
    %c0_1 = arith.constant 0 : index
    %c0_2 = arith.constant 0 : index
    %1 = vector.load %arg1[%c0_1, %c0_2] : memref<2744x128xbf16, #tpu.memory_space<vmem>>, vector<2744x128xbf16>
    %cst = arith.constant dense<0.000000e+00> : vector<2x128xf32>
    %2 = tpu.matmul %0, %1, %cst {dimension_numbers = #tpu.dot_dimension_numbers<[1], [0], [0], [1], [0, 0, 1, 1], [], []>} : vector<2x2744xbf16>, vector<2744x128xbf16>, vector<2x128xf32> -> vector<2x128xf32>
    %c0_3 = arith.constant 0 : index
    %c0_4 = arith.constant 0 : index
    %3 = vector.load %arg2[%c0_3, %c0_4] : memref<1x128xf32, #tpu.memory_space<vmem>>, vector<1x128xf32>
    %4 = vector.broadcast %3 : vector<1x128xf32> to vector<2x128xf32>
    %5 = arith.addf %2, %4 : vector<2x128xf32>
    %cst_5 = arith.constant 0.000000e+00 : f32
    %6 = vector.broadcast %cst_5 : f32 to vector<2x128xf32>
    %7 = arith.maximumf %5, %6 : vector<2x128xf32>
    %8 = arith.truncf %7 : vector<2x128xf32> to vector<2x128xbf16>
    %c0_6 = arith.constant 0 : index
    %c0_7 = arith.constant 0 : index
    %9 = vector.load %arg3[%c0_6, %c0_7] : memref<128x64xbf16, #tpu.memory_space<vmem>>, vector<128x64xbf16>
    %cst_8 = arith.constant dense<0.000000e+00> : vector<2x64xf32>
    %10 = tpu.matmul %8, %9, %cst_8 {dimension_numbers = #tpu.dot_dimension_numbers<[1], [0], [0], [1], [0, 0, 1, 1], [], []>} : vector<2x128xbf16>, vector<128x64xbf16>, vector<2x64xf32> -> vector<2x64xf32>
    %c0_9 = arith.constant 0 : index
    %c0_10 = arith.constant 0 : index
    %11 = vector.load %arg4[%c0_9, %c0_10] : memref<1x64xf32, #tpu.memory_space<vmem>>, vector<1x64xf32>
    %12 = vector.broadcast %11 : vector<1x64xf32> to vector<2x64xf32>
    %13 = arith.addf %10, %12 : vector<2x64xf32>
    %cst_11 = arith.constant 0.000000e+00 : f32
    %14 = vector.broadcast %cst_11 : f32 to vector<2x64xf32>
    %15 = arith.maximumf %13, %14 : vector<2x64xf32>
    %16 = arith.truncf %15 : vector<2x64xf32> to vector<2x64xbf16>
    %c0_12 = arith.constant 0 : index
    %c0_13 = arith.constant 0 : index
    %17 = vector.load %arg5[%c0_12, %c0_13] : memref<64x1xbf16, #tpu.memory_space<vmem>>, vector<64x1xbf16>
    %cst_14 = arith.constant dense<0.000000e+00> : vector<2x1xf32>
    %18 = tpu.matmul %16, %17, %cst_14 {dimension_numbers = #tpu.dot_dimension_numbers<[1], [0], [0], [1], [0, 0, 1, 1], [], []>} : vector<2x64xbf16>, vector<64x1xbf16>, vector<2x1xf32> -> vector<2x1xf32>
    %c0_15 = arith.constant 0 : index
    %c0_16 = arith.constant 0 : index
    %19 = vector.load %arg6[%c0_15, %c0_16] : memref<1x1xf32, #tpu.memory_space<vmem>>, vector<1x1xf32>
    %20 = vector.broadcast %19 : vector<1x1xf32> to vector<2x1xf32>
    %21 = arith.addf %18, %20 : vector<2x1xf32>
    %c0_17 = arith.constant 0 : index
    %c0_18 = arith.constant 0 : index
    %22 = vector.load %arg7[%c0_17, %c0_18] : memref<2x1xf32, #tpu.memory_space<vmem>>, vector<2x1xf32>
    tpu.vector_store %arg7[%c0_17, %c0_18], %21 {strides = array<i32>} : memref<2x1xf32, #tpu.memory_space<vmem>>, vector<2x1xf32>,
    return
  }
}

</mosaic_0001>

<llo_original>
// kernel: net_forward.2
$region0: #{net_forward.2}
  #allocation0 [shape = 'u32[]', space=smem, size = 0x4, offset = 0x4, fixed_abs, tag = 'smem constant byte address 0x4 - core index']
  #allocation1 [shape = 'u32[144,128]{1,0:T(1,128)}', space=vmem, size = 0x12000, scoped, tag = 'internal scratch']
  %s0 = inlined_call_operand.vmem [shape: bf16[2,8,64,343], index: 0, kind: input, shape index: {}]
  %s1 = inlined_call_operand.vmem [shape: bf16[8,64], index: 1, kind: input, shape index: {}]
  %s2 = inlined_call_operand.vmem [shape: f32[8,1], index: 2, kind: input, shape index: {}]
  %s3 = inlined_call_operand.vmem [shape: f32[2,8,343], index: 3, kind: output, shape index: {}]
  %s4 = sld [smem:[#allocation0]]
  $region45: #{net_forward.2} parent=0
    _
  %s6 = ssub.s32 1, %s4
  %s7 = scalar_select 0, %s6, %s4
  loop: start=0, step=1, limit=4
  $region2: #{net_forward.2} parent=0 // loop_pre_header
    _
  $region3: #{net_forward.2} parent=0 // loop_header
    %s9 = sphi 0, %s13
    %p10 = scmp.ge.s32.totalorder %s9, 4
    %s19 = sphi 0, %s21
    %s22 = sphi 0, %s19
    %s23 = sphi 0, %s22
    %s39 = sphi 0, %s23
    %s43 = sphi 0, %s43
    %s45 = sphi 0, %s43
    %s46 = sphi 0, %s45
    %s60 = sphi 0, %s46
    %s64 = sphi 0, %s64
    %s66 = sphi 0, %s64
    %s67 = sphi 0, %s66
    %s81 = sphi 0, %s67
    %s87 = sphi 0, %s89
    %s90 = sphi 0, %s87
    %s91 = sphi 0, %s90
    %s107 = sphi 0, %s91
  $region4: #{net_forward.2} parent=0 // loop_header_branch
    %12 = sbr.rel (%p10) target = $region8
  $region5: #{net_forward.2} parent=0 // loop_body
    %s14 = ssub.s32 %s9, 1
    %s15 = ssub.s32 %s9, 2
    %s16 = sadd.s32 %s9, 1
    %s17 = ssub.s32 %s9, %s16
    %p18 = scmp.eq.s32.totalorder %s17, 0
    %s20 = sadd.s32 %s19, 1
    %s21 = scalar_select %p18, %s19, %s20
    %p24 = pneg %p18
    %p25 = scmp.eq.s32.totalorder %s9, 1
    %p26 = por %p24, %p25
    %p27 = scmp.ne.s32.totalorder %s19, %s22
    %p28 = scmp.eq.s32.totalorder %s9, 0
    %p29 = por %p27, %p28
    %p30 = scmp.ne.s32.totalorder %s19, %s22
    %p31 = scmp.eq.s32.totalorder %s14, 1
    %p32 = por %p30, %p31
    %p33 = scmp.ne.s32.totalorder %s22, %s23
    %p34 = scmp.eq.s32.totalorder %s14, 0
    %p35 = por %p33, %p34
    %p36 = scmp.ne.s32.totalorder %s22, %s23
    %p37 = scmp.eq.s32.totalorder %s15, 1
    %p38 = por %p36, %p37
    %p40 = scmp.ne.s32.totalorder %s23, %s39
    %p41 = scmp.eq.s32.totalorder %s15, 0
    %p42 = por %p40, %p41
    %s44 = sadd.s32 %s43, 1
    %p47 = scmp.eq.s32.totalorder %s9, 1
    %p48 = scmp.ne.s32.totalorder %s43, %s45
    %p49 = scmp.eq.s32.totalorder %s9, 0
    %p50 = por %p48, %p49
    %p51 = scmp.ne.s32.totalorder %s43, %s45
    %p52 = scmp.eq.s32.totalorder %s14, 1
    %p53 = por %p51, %p52
    %p54 = scmp.ne.s32.totalorder %s45, %s46
    %p55 = scmp.eq.s32.totalorder %s14, 0
    %p56 = por %p54, %p55
    %p57 = scmp.ne.s32.totalorder %s45, %s46
    %p58 = scmp.eq.s32.totalorder %s15, 1
    %p59 = por %p57, %p58
    %p61 = scmp.ne.s32.totalorder %s46, %s60
    %p62 = scmp.eq.s32.totalorder %s15, 0
    %p63 = por %p61, %p62
    %s65 = sadd.s32 %s64, 1
    %p68 = scmp.eq.s32.totalorder %s9, 1
    %p69 = scmp.ne.s32.totalorder %s64, %s66
    %p70 = scmp.eq.s32.totalorder %s9, 0
    %p71 = por %p69, %p70
    %p72 = scmp.ne.s32.totalorder %s64, %s66
    %p73 = scmp.eq.s32.totalorder %s14, 1
    %p74 = por %p72, %p73
    %p75 = scmp.ne.s32.totalorder %s66, %s67
    %p76 = scmp.eq.s32.totalorder %s14, 0
    %p77 = por %p75, %p76
    %p78 = scmp.ne.s32.totalorder %s66, %s67
    %p79 = scmp.eq.s32.totalorder %s15, 1
    %p80 = por %p78, %p79
    %p82 = scmp.ne.s32.totalorder %s67, %s81
    %p83 = scmp.eq.s32.totalorder %s15, 0
    %p84 = por %p82, %p83
    %s85 = ssub.s32 %s9, %s16
    %p86 = scmp.eq.s32.totalorder %s85, 0
    %s88 = sadd.s32 %s87, 1
    %s89 = scalar_select %p86, %s87, %s88
    %p92 = pneg %p86
    %p93 = scmp.eq.s32.totalorder %s9, 1
    %p94 = por %p92, %p93
    %p95 = scmp.ne.s32.totalorder %s87, %s90
    %p96 = scmp.eq.s32.totalorder %s9, 0
    %p97 = por %p95, %p96
    %p98 = scmp.ne.s32.totalorder %s87, %s90
    %p99 = scmp.eq.s32.totalorder %s14, 1
    %p100 = por %p98, %p99
    %p101 = scmp.ne.s32.totalorder %s90, %s91
    %p102 = scmp.eq.s32.totalorder %s14, 0
    %p103 = por %p101, %p102
    %p104 = scmp.ne.s32.totalorder %s90, %s91
    %p105 = scmp.eq.s32.totalorder %s15, 1
    %p106 = por %p104, %p105
    %p108 = scmp.ne.s32.totalorder %s91, %s107
    %p109 = scmp.eq.s32.totalorder %s15, 0
    %p110 = por %p108, %p109
    %p111 = scmp.le.s32.totalorder 1, %s9
    %p112 = scmp.lt.s32.totalorder %s9, 3
    %p113 = pnand %p111, %p112
    %p114 = pneg %p113
    // Predicated region
    $region9: #{net_forward.2} parent=5 // pred_check
      _
    $region10: #{net_forward.2} parent=5 // pred_check_branch
      %116 = sbr.rel (%p113) target = $region12
    $region11: #{net_forward.2} parent=5 // pred_region
      %s117 = ssub.s32 %s9, 1
      // Predicated region
      $region13: #{net_forward.2} parent=11 // pred_check
        %p118 = pneg %p56
      $region14: #{net_forward.2} parent=11 // pred_check_branch
        %120 = sbr.rel (%p118) target = $region16
      $region15: #{net_forward.2} parent=11 // pred_region
        _
      $region16: #{net_forward.2} parent=11 // pred_fallthru
        _
      // Predicated region
      $region17: #{net_forward.2} parent=11 // pred_check
        %p121 = pneg %p77
      $region18: #{net_forward.2} parent=11 // pred_check_branch
        %123 = sbr.rel (%p121) target = $region20
      $region19: #{net_forward.2} parent=11 // pred_region
        _
      $region20: #{net_forward.2} parent=11 // pred_fallthru
        _
    $region12: #{net_forward.2} parent=5 // pred_fallthru
      _
    %p124 = scmp.lt.s32.totalorder %s9, 2
    // Predicated region
    $region21: #{net_forward.2} parent=5 // pred_check
      %p125 = pneg %p124
    $region22: #{net_forward.2} parent=5 // pred_check_branch
      %127 = sbr.rel (%p125) target = $region24
    $region23: #{net_forward.2} parent=5 // pred_region
      // Predicated region
      $region25: #{net_forward.2} parent=23 // pred_check
        %p128 = pneg %p29
      $region26: #{net_forward.2} parent=23 // pred_check_branch
        %130 = sbr.rel (%p128) target = $region28
      $region27: #{net_forward.2} parent=23 // pred_region
        %p131 = scmp.lt.s32.totalorder %s9, 1
        %s132 = scalar_select %p131, %s9, 1
        %s133 = smul.addr %s132, 192
        %s134 = smul.addr %s133, 4
        %s135 = scalar_lea.vmem %s0, %s134
      $region28: #{net_forward.2} parent=23 // pred_fallthru
        _
    $region24: #{net_forward.2} parent=5 // pred_fallthru
      _
    %p136 = scmp.le.s32.totalorder 1, %s9
    %p137 = scmp.lt.s32.totalorder %s9, 3
    %p138 = pnand %p136, %p137
    %p139 = pneg %p138
    // Predicated region
    $region29: #{net_forward.2} parent=5 // pred_check
      _
    $region30: #{net_forward.2} parent=5 // pred_check_branch
      %141 = sbr.rel (%p138) target = $region32
    $region31: #{net_forward.2} parent=5 // pred_region
      %s142 = ssub.s32 %s9, 1
      %p143 = scmp.lt.s32.totalorder %s14, 1
      %s144 = scalar_select %p143, %s14, 1
      %s145 = smul.addr %s144, 192
      %s146 = smul.addr %s145, 4
      %s147 = scalar_lea.vmem %s0, %s146
      %p148 = pneg %p35
      %p149 = pneg %p32
      %p150 = pneg %p56
      %p151 = pneg %p53
      %p152 = pneg %p77
      %p153 = pneg %p74
      %p154 = pneg %p103
      %p155 = pneg %p100
      %p156 = scmp.lt.s32.totalorder %s14, 1
      %s157 = scalar_select %p156, %s14, 1
      %s158 = smul.addr %s157, 3
      %s159 = smul.addr %s158, 8
      %s160 = scalar_lea.vmem %s3, %s159
      %p161 = scmp.lt.s32.totalorder %s14, 1
      %s162 = scalar_select %p161, %s14, 1
      %s163 = smul.addr %s162, 192
      %s164 = smul.addr %s163, 4
      %s165 = scalar_lea.vmem %s0, %s164
      %p166 = scmp.lt.s32.totalorder %s14, 1
      %s167 = scalar_select %p166, %s14, 1
      %s168 = smul.addr %s167, 3
      %s169 = smul.addr %s168, 8
      %s170 = scalar_lea.vmem %s3, %s169
      %v172 = vld [vmem:[%s1] sm:$0xf]
      %v173 = vld [vmem:[%s165] sm:$0xff]
      %v174 = vld [vmem:[%s165 + $0x8] sm:$0xf]
      %v175 = vld [vmem:[%s165 + $0xc] sm:$0xff]
      %v176 = vld [vmem:[%s165 + $0x14] sm:$0xf]
      %v177 = vld [vmem:[%s165 + $0x18] sm:$0xff]
      %v178 = vld [vmem:[%s165 + $0x20] sm:$0xf]
      %v179 = vld [vmem:[%s165 + $0x24] sm:$0xff]
      %v180 = vld [vmem:[%s165 + $0x2c] sm:$0xf]
      %v181 = vld [vmem:[%s165 + $0x30] sm:$0xff]
      %v182 = vld [vmem:[%s165 + $0x38] sm:$0xf]
      %v183 = vld [vmem:[%s165 + $0x3c] sm:$0xff]
      %v184 = vld [vmem:[%s165 + $0x44] sm:$0xf]
      %v185 = vld [vmem:[%s165 + $0x48] sm:$0xff]
      %v186 = vld [vmem:[%s165 + $0x50] sm:$0xf]
      %v187 = vld [vmem:[%s165 + $0x54] sm:$0xff]
      %v188 = vld [vmem:[%s165 + $0x5c] sm:$0xf]
      %v205 = vunpack.c.l.b16 %v173
      %v206 = vunpack.c.h.b16 %v173
      %v207 = vunpack.c.l.b16 %v174
      %v208 = vunpack.c.l.b16 %v175
      %v209 = vunpack.c.h.b16 %v175
      %v210 = vunpack.c.l.b16 %v176
      %v211 = vunpack.c.l.b16 %v177
      %v212 = vunpack.c.h.b16 %v177
      %v213 = vunpack.c.l.b16 %v178
      %v214 = vunpack.c.l.b16 %v179
      %v215 = vunpack.c.h.b16 %v179
      %v216 = vunpack.c.l.b16 %v180
      %v217 = vunpack.c.l.b16 %v181
      %v218 = vunpack.c.h.b16 %v181
      %v219 = vunpack.c.l.b16 %v182
      %v220 = vunpack.c.l.b16 %v183
      %v221 = vunpack.c.h.b16 %v183
      %v222 = vunpack.c.l.b16 %v184
      %v223 = vunpack.c.l.b16 %v185
      %v224 = vunpack.c.h.b16 %v185
      %v225 = vunpack.c.l.b16 %v186
      %v226 = vunpack.c.l.b16 %v187
      %v227 = vunpack.c.h.b16 %v187
      %v228 = vunpack.c.l.b16 %v188
      %v229 = vpack.c.b16 %v208, %v205
      %v230 = vpack.c.b16 %v209, %v206
      %v231 = vpack.c.b16 %v210, %v207
      %v232 = vpack.c.b16 %v214, %v211
      %v233 = vpack.c.b16 %v215, %v212
      %v234 = vpack.c.b16 %v216, %v213
      %v235 = vpack.c.b16 %v220, %v217
      %v236 = vpack.c.b16 %v221, %v218
      %v237 = vpack.c.b16 %v222, %v219
      %v238 = vpack.c.b16 %v226, %v223
      %v239 = vpack.c.b16 %v227, %v224
      %v240 = vpack.c.b16 %v228, %v225
      %vm253 = vcmask 523264
      %v255 = vsel %vm253, %v172, 0
      %257 = vmatprep.subr.bf16.mxu0 %v230
      %258 = vmatpush1.bf16.msra.mxu0 %v229
      %259 = vmatprep.subr.bf16.mxu0 %v233
      %260 = vmatpush1.bf16.msra.mxu0 %v232
      %261 = vmatprep.subr.bf16.mxu0 %v236
      %262 = vmatpush1.bf16.msra.mxu0 %v235
      %263 = vmatprep.subr.bf16.mxu0 %v239
      %264 = vmatpush1.bf16.msra.mxu0 %v238
      %265 = vmatprep.subr.bf16.mxu0 0
      %266 = vmatpush1.bf16.msra.mxu0 0
      %267 = vmatprep.subr.bf16.mxu0 0
      %268 = vmatpush1.bf16.msra.mxu0 0
      %269 = vmatprep.subr.bf16.mxu0 0
      %270 = vmatpush1.bf16.msra.mxu0 0
      %271 = vmatprep.subr.bf16.mxu0 0
      %272 = vmatpush1.bf16.msra.mxu0 0
      %273 = vmatprep.subr.bf16.mxu0 0
      %274 = vmatpush1.bf16.msra.mxu0 0
      %275 = vmatprep.subr.bf16.mxu0 0
      %276 = vmatpush1.bf16.msra.mxu0 0
      %277 = vmatprep.subr.bf16.mxu0 0
      %278 = vmatpush1.bf16.msra.mxu0 0
      %279 = vmatprep.subr.bf16.mxu0 0
      %280 = vmatpush1.bf16.msra.mxu0 0
      %281 = vmatprep.subr.bf16.mxu0 0
      %282 = vmatpush1.bf16.msra.mxu0 0
      %283 = vmatprep.subr.bf16.mxu0 0
      %284 = vmatpush1.bf16.msra.mxu0 0
      %285 = vmatprep.subr.bf16.mxu0 0
      %286 = vmatpush1.bf16.msra.mxu0 0
      %287 = vmatprep.subr.bf16.mxu0 0
      %288 = vmatpush1.bf16.msra.mxu0 0
      %289 = vmatprep.mubr.bf16.mxu0 0
      %290 = vmatmul.mubr.bf16.gmra.mrb[0].mxu0 %v255
      %v291 = vpop.f32.mrb[0].mxu0
      %v292 = vadd.f32 0.0, %v291
      %v293 = vpop.f32.mrb[0].mxu0
      %v294 = vadd.f32 0.0, %v293
      %v295 = vpop.f32.mrb[0].mxu0
      %v296 = vpop.f32.mrb[0].mxu0
      %297 = vdwg.mxu0
      %298 = vmatprep.subr.bf16.mxu0 0
      %299 = vmatpush1.bf16.msra.mxu0 %v231
      %300 = vmatprep.subr.bf16.mxu0 0
      %301 = vmatpush1.bf16.msra.mxu0 %v234
      %302 = vmatprep.subr.bf16.mxu0 0
      %303 = vmatpush1.bf16.msra.mxu0 %v237
      %304 = vmatprep.subr.bf16.mxu0 0
      %305 = vmatpush1.bf16.msra.mxu0 %v240
      %306 = vmatprep.subr.bf16.mxu0 0
      %307 = vmatpush1.bf16.msra.mxu0 0
      %308 = vmatprep.subr.bf16.mxu0 0
      %309 = vmatpush1.bf16.msra.mxu0 0
      %310 = vmatprep.subr.bf16.mxu0 0
      %311 = vmatpush1.bf16.msra.mxu0 0
      %312 = vmatprep.subr.bf16.mxu0 0
      %313 = vmatpush1.bf16.msra.mxu0 0
      %314 = vmatprep.subr.bf16.mxu0 0
      %315 = vmatpush1.bf16.msra.mxu0 0
      %316 = vmatprep.subr.bf16.mxu0 0
      %317 = vmatpush1.bf16.msra.mxu0 0
      %318 = vmatprep.subr.bf16.mxu0 0
      %319 = vmatpush1.bf16.msra.mxu0 0
      %320 = vmatprep.subr.bf16.mxu0 0
      %321 = vmatpush1.bf16.msra.mxu0 0
      %322 = vmatprep.subr.bf16.mxu0 0
      %323 = vmatpush1.bf16.msra.mxu0 0
      %324 = vmatprep.subr.bf16.mxu0 0
      %325 = vmatpush1.bf16.msra.mxu0 0
      %326 = vmatprep.subr.bf16.mxu0 0
      %327 = vmatpush1.bf16.msra.mxu0 0
      %328 = vmatprep.subr.bf16.mxu0 0
      %329 = vmatpush1.bf16.msra.mxu0 0
      %330 = vmatprep.mubr.bf16.mxu0 0
      %331 = vmatmul.mubr.bf16.gmra.mrb[0].mxu0 %v255
      %v332 = vpop.f32.mrb[0].mxu0
      %v333 = vadd.f32 0.0, %v332
      %v334 = vpop.f32.mrb[0].mxu0
      %v335 = vpop.f32.mrb[0].mxu0
      %v336 = vpop.f32.mrb[0].mxu0
      %337 = vdwg.mxu0
      %s338 = scalar_lea.vmem %s165, 96
      %v339 = vld [vmem:[%s338] sm:$0xff]
      %v340 = vld [vmem:[%s338 + $0x8] sm:$0xf]
      %v341 = vld [vmem:[%s338 + $0xc] sm:$0xff]
      %v342 = vld [vmem:[%s338 + $0x14] sm:$0xf]
      %v343 = vld [vmem:[%s338 + $0x18] sm:$0xff]
      %v344 = vld [vmem:[%s338 + $0x20] sm:$0xf]
      %v345 = vld [vmem:[%s338 + $0x24] sm:$0xff]
      %v346 = vld [vmem:[%s338 + $0x2c] sm:$0xf]
      %v347 = vld [vmem:[%s338 + $0x30] sm:$0xff]
      %v348 = vld [vmem:[%s338 + $0x38] sm:$0xf]
      %v349 = vld [vmem:[%s338 + $0x3c] sm:$0xff]
      %v350 = vld [vmem:[%s338 + $0x44] sm:$0xf]
      %v351 = vld [vmem:[%s338 + $0x48] sm:$0xff]
      %v352 = vld [vmem:[%s338 + $0x50] sm:$0xf]
      %v353 = vld [vmem:[%s338 + $0x54] sm:$0xff]
      %v354 = vld [vmem:[%s338 + $0x5c] sm:$0xf]
      %v371 = vunpack.c.l.b16 %v339
      %v372 = vunpack.c.h.b16 %v339
      %v373 = vunpack.c.l.b16 %v340
      %v374 = vunpack.c.l.b16 %v341
      %v375 = vunpack.c.h.b16 %v341
      %v376 = vunpack.c.l.b16 %v342
      %v377 = vunpack.c.l.b16 %v343
      %v378 = vunpack.c.h.b16 %v343
      %v379 = vunpack.c.l.b16 %v344
      %v380 = vunpack.c.l.b16 %v345
      %v381 = vunpack.c.h.b16 %v345
      %v382 = vunpack.c.l.b16 %v346
      %v383 = vunpack.c.l.b16 %v347
      %v384 = vunpack.c.h.b16 %v347
      %v385 = vunpack.c.l.b16 %v348
      %v386 = vunpack.c.l.b16 %v349
      %v387 = vunpack.c.h.b16 %v349
      %v388 = vunpack.c.l.b16 %v350
      %v389 = vunpack.c.l.b16 %v351
      %v390 = vunpack.c.h.b16 %v351
      %v391 = vunpack.c.l.b16 %v352
      %v392 = vunpack.c.l.b16 %v353
      %v393 = vunpack.c.h.b16 %v353
      %v394 = vunpack.c.l.b16 %v354
      %v395 = vpack.c.b16 %v374, %v371
      %v396 = vpack.c.b16 %v375, %v372
      %v397 = vpack.c.b16 %v376, %v373
      %v398 = vpack.c.b16 %v380, %v377
      %v399 = vpack.c.b16 %v381, %v378
      %v400 = vpack.c.b16 %v382, %v379
      %v401 = vpack.c.b16 %v386, %v383
      %v402 = vpack.c.b16 %v387, %v384
      %v403 = vpack.c.b16 %v388, %v385
      %v404 = vpack.c.b16 %v392, %v389
      %v405 = vpack.c.b16 %v393, %v390
      %v406 = vpack.c.b16 %v394, %v391
      %419 = vmatprep.subr.bf16.mxu0 %v396
      %420 = vmatpush1.bf16.msra.mxu0 %v395
      %421 = vmatprep.subr.bf16.mxu0 %v399
      %422 = vmatpush1.bf16.msra.mxu0 %v398
      %423 = vmatprep.subr.bf16.mxu0 %v402
      %424 = vmatpush1.bf16.msra.mxu0 %v401
      %425 = vmatprep.subr.bf16.mxu0 %v405
      %426 = vmatpush1.bf16.msra.mxu0 %v404
      %427 = vmatprep.subr.bf16.mxu0 0
      %428 = vmatpush1.bf16.msra.mxu0 0
      %429 = vmatprep.subr.bf16.mxu0 0
      %430 = vmatpush1.bf16.msra.mxu0 0
      %431 = vmatprep.subr.bf16.mxu0 0
      %432 = vmatpush1.bf16.msra.mxu0 0
      %433 = vmatprep.subr.bf16.mxu0 0
      %434 = vmatpush1.bf16.msra.mxu0 0
      %435 = vmatprep.subr.bf16.mxu0 0
      %436 = vmatpush1.bf16.msra.mxu0 0
      %437 = vmatprep.subr.bf16.mxu0 0
      %438 = vmatpush1.bf16.msra.mxu0 0
      %439 = vmatprep.subr.bf16.mxu0 0
      %440 = vmatpush1.bf16.msra.mxu0 0
      %441 = vmatprep.subr.bf16.mxu0 0
      %442 = vmatpush1.bf16.msra.mxu0 0
      %443 = vmatprep.subr.bf16.mxu0 0
      %444 = vmatpush1.bf16.msra.mxu0 0
      %445 = vmatprep.subr.bf16.mxu0 0
      %446 = vmatpush1.bf16.msra.mxu0 0
      %447 = vmatprep.subr.bf16.mxu0 0
      %448 = vmatpush1.bf16.msra.mxu0 0
      %449 = vmatprep.subr.bf16.mxu0 0
      %450 = vmatpush1.bf16.msra.mxu0 0
      %451 = vmatprep.mubr.bf16.mxu0 0
      %452 = vmatmul.mubr.bf16.gmra.mrb[0].mxu0 %v255
      %v453 = vpop.f32.mrb[0].mxu0
      %v454 = vadd.f32 0.0, %v453
      %v455 = vpop.f32.mrb[0].mxu0
      %v456 = vadd.f32 0.0, %v455
      %v457 = vpop.f32.mrb[0].mxu0
      %v458 = vpop.f32.mrb[0].mxu0
      %459 = vdwg.mxu0
      %460 = vmatprep.subr.bf16.mxu0 0
      %461 = vmatpush1.bf16.msra.mxu0 %v397
      %462 = vmatprep.subr.bf16.mxu0 0
      %463 = vmatpush1.bf16.msra.mxu0 %v400
      %464 = vmatprep.subr.bf16.mxu0 0
      %465 = vmatpush1.bf16.msra.mxu0 %v403
      %466 = vmatprep.subr.bf16.mxu0 0
      %467 = vmatpush1.bf16.msra.mxu0 %v406
      %468 = vmatprep.subr.bf16.mxu0 0
      %469 = vmatpush1.bf16.msra.mxu0 0
      %470 = vmatprep.subr.bf16.mxu0 0
      %471 = vmatpush1.bf16.msra.mxu0 0
      %472 = vmatprep.subr.bf16.mxu0 0
      %473 = vmatpush1.bf16.msra.mxu0 0
      %474 = vmatprep.subr.bf16.mxu0 0
      %475 = vmatpush1.bf16.msra.mxu0 0
      %476 = vmatprep.subr.bf16.mxu0 0
      %477 = vmatpush1.bf16.msra.mxu0 0
      %478 = vmatprep.subr.bf16.mxu0 0
      %479 = vmatpush1.bf16.msra.mxu0 0
      %480 = vmatprep.subr.bf16.mxu0 0
      %481 = vmatpush1.bf16.msra.mxu0 0
      %482 = vmatprep.subr.bf16.mxu0 0
      %483 = vmatpush1.bf16.msra.mxu0 0
      %484 = vmatprep.subr.bf16.mxu0 0
      %485 = vmatpush1.bf16.msra.mxu0 0
      %486 = vmatprep.subr.bf16.mxu0 0
      %487 = vmatpush1.bf16.msra.mxu0 0
      %488 = vmatprep.subr.bf16.mxu0 0
      %489 = vmatpush1.bf16.msra.mxu0 0
      %490 = vmatprep.subr.bf16.mxu0 0
      %491 = vmatpush1.bf16.msra.mxu0 0
      %492 = vmatprep.mubr.bf16.mxu0 0
      %493 = vmatmul.mubr.bf16.gmra.mrb[0].mxu0 %v255
      %v494 = vpop.f32.mrb[0].mxu0
      %v495 = vadd.f32 0.0, %v494
      %v496 = vpop.f32.mrb[0].mxu0
      %v497 = vpop.f32.mrb[0].mxu0
      %v498 = vpop.f32.mrb[0].mxu0
      %499 = vdwg.mxu0
      %v500 = vmax.f32 %v292, %v454
      %v501 = vmax.f32 %v294, %v456
      %v502 = vmax.f32 %v333, %v495
      %s503 = scalar_lea.vmem %s165, 192
      %v504 = vld [vmem:[%s503] sm:$0xff]
      %v505 = vld [vmem:[%s503 + $0x8] sm:$0xf]
      %v506 = vld [vmem:[%s503 + $0xc] sm:$0xff]
      %v507 = vld [vmem:[%s503 + $0x14] sm:$0xf]
      %v508 = vld [vmem:[%s503 + $0x18] sm:$0xff]
      %v509 = vld [vmem:[%s503 + $0x20] sm:$0xf]
      %v510 = vld [vmem:[%s503 + $0x24] sm:$0xff]
      %v511 = vld [vmem:[%s503 + $0x2c] sm:$0xf]
      %v512 = vld [vmem:[%s503 + $0x30] sm:$0xff]
      %v513 = vld [vmem:[%s503 + $0x38] sm:$0xf]
      %v514 = vld [vmem:[%s503 + $0x3c] sm:$0xff]
      %v515 = vld [vmem:[%s503 + $0x44] sm:$0xf]
      %v516 = vld [vmem:[%s503 + $0x48] sm:$0xff]
      %v517 = vld [vmem:[%s503 + $0x50] sm:$0xf]
      %v518 = vld [vmem:[%s503 + $0x54] sm:$0xff]
      %v519 = vld [vmem:[%s503 + $0x5c] sm:$0xf]
      %v536 = vunpack.c.l.b16 %v504
      %v537 = vunpack.c.h.b16 %v504
      %v538 = vunpack.c.l.b16 %v505
      %v539 = vunpack.c.l.b16 %v506
      %v540 = vunpack.c.h.b16 %v506
      %v541 = vunpack.c.l.b16 %v507
      %v542 = vunpack.c.l.b16 %v508
      %v543 = vunpack.c.h.b16 %v508
      %v544 = vunpack.c.l.b16 %v509
      %v545 = vunpack.c.l.b16 %v510
      %v546 = vunpack.c.h.b16 %v510
      %v547 = vunpack.c.l.b16 %v511
      %v548 = vunpack.c.l.b16 %v512
      %v549 = vunpack.c.h.b16 %v512
      %v550 = vunpack.c.l.b16 %v513
      %v551 = vunpack.c.l.b16 %v514
      %v552 = vunpack.c.h.b16 %v514
      %v553 = vunpack.c.l.b16 %v515
      %v554 = vunpack.c.l.b16 %v516
      %v555 = vunpack.c.h.b16 %v516
      %v556 = vunpack.c.l.b16 %v517
      %v557 = vunpack.c.l.b16 %v518
      %v558 = vunpack.c.h.b16 %v518
      %v559 = vunpack.c.l.b16 %v519
      %v560 = vpack.c.b16 %v539, %v536
      %v561 = vpack.c.b16 %v540, %v537
      %v562 = vpack.c.b16 %v541, %v538
      %v563 = vpack.c.b16 %v545, %v542
      %v564 = vpack.c.b16 %v546, %v543
      %v565 = vpack.c.b16 %v547, %v544
      %v566 = vpack.c.b16 %v551, %v548
      %v567 = vpack.c.b16 %v552, %v549
      %v568 = vpack.c.b16 %v553, %v550
      %v569 = vpack.c.b16 %v557, %v554
      %v570 = vpack.c.b16 %v558, %v555
      %v571 = vpack.c.b16 %v559, %v556
      %584 = vmatprep.subr.bf16.mxu0 %v561
      %585 = vmatpush1.bf16.msra.mxu0 %v560
      %586 = vmatprep.subr.bf16.mxu0 %v564
      %587 = vmatpush1.bf16.msra.mxu0 %v563
      %588 = vmatprep.subr.bf16.mxu0 %v567
      %589 = vmatpush1.bf16.msra.mxu0 %v566
      %590 = vmatprep.subr.bf16.mxu0 %v570
      %591 = vmatpush1.bf16.msra.mxu0 %v569
      %592 = vmatprep.subr.bf16.mxu0 0
      %593 = vmatpush1.bf16.msra.mxu0 0
      %594 = vmatprep.subr.bf16.mxu0 0
      %595 = vmatpush1.bf16.msra.mxu0 0
      %596 = vmatprep.subr.bf16.mxu0 0
      %597 = vmatpush1.bf16.msra.mxu0 0
      %598 = vmatprep.subr.bf16.mxu0 0
      %599 = vmatpush1.bf16.msra.mxu0 0
      %600 = vmatprep.subr.bf16.mxu0 0
      %601 = vmatpush1.bf16.msra.mxu0 0
      %602 = vmatprep.subr.bf16.mxu0 0
      %603 = vmatpush1.bf16.msra.mxu0 0
      %604 = vmatprep.subr.bf16.mxu0 0
      %605 = vmatpush1.bf16.msra.mxu0 0
      %606 = vmatprep.subr.bf16.mxu0 0
      %607 = vmatpush1.bf16.msra.mxu0 0
      %608 = vmatprep.subr.bf16.mxu0 0
      %609 = vmatpush1.bf16.msra.mxu0 0
      %610 = vmatprep.subr.bf16.mxu0 0
      %611 = vmatpush1.bf16.msra.mxu0 0
      %612 = vmatprep.subr.bf16.mxu0 0
      %613 = vmatpush1.bf16.msra.mxu0 0
      %614 = vmatprep.subr.bf16.mxu0 0
      %615 = vmatpush1.bf16.msra.mxu0 0
      %616 = vmatprep.mubr.bf16.mxu0 0
      %617 = vmatmul.mubr.bf16.gmra.mrb[0].mxu0 %v255
      %v618 = vpop.f32.mrb[0].mxu0
      %v619 = vadd.f32 0.0, %v618
      %v620 = vpop.f32.mrb[0].mxu0
      %v621 = vadd.f32 0.0, %v620
      %v622 = vpop.f32.mrb[0].mxu0
      %v623 = vpop.f32.mrb[0].mxu0
      %624 = vdwg.mxu0
      %625 = vmatprep.subr.bf16.mxu0 0
      %626 = vmatpush1.bf16.msra.mxu0 %v562
      %627 = vmatprep.subr.bf16.mxu0 0
      %628 = vmatpush1.bf16.msra.mxu0 %v565
      %629 = vmatprep.subr.bf16.mxu0 0
      %630 = vmatpush1.bf16.msra.mxu0 %v568
      %631 = vmatprep.subr.bf16.mxu0 0
      %632 = vmatpush1.bf16.msra.mxu0 %v571
      %633 = vmatprep.subr.bf16.mxu0 0
      %634 = vmatpush1.bf16.msra.mxu0 0
      %635 = vmatprep.subr.bf16.mxu0 0
      %636 = vmatpush1.bf16.msra.mxu0 0
      %637 = vmatprep.subr.bf16.mxu0 0
      %638 = vmatpush1.bf16.msra.mxu0 0
      %639 = vmatprep.subr.bf16.mxu0 0
      %640 = vmatpush1.bf16.msra.mxu0 0
      %641 = vmatprep.subr.bf16.mxu0 0
      %642 = vmatpush1.bf16.msra.mxu0 0
      %643 = vmatprep.subr.bf16.mxu0 0
      %644 = vmatpush1.bf16.msra.mxu0 0
      %645 = vmatprep.subr.bf16.mxu0 0
      %646 = vmatpush1.bf16.msra.mxu0 0
      %647 = vmatprep.subr.bf16.mxu0 0
      %648 = vmatpush1.bf16.msra.mxu0 0
      %649 = vmatprep.subr.bf16.mxu0 0
      %650 = vmatpush1.bf16.msra.mxu0 0
      %651 = vmatprep.subr.bf16.mxu0 0
      %652 = vmatpush1.bf16.msra.mxu0 0
      %653 = vmatprep.subr.bf16.mxu0 0
      %654 = vmatpush1.bf16.msra.mxu0 0
      %655 = vmatprep.subr.bf16.mxu0 0
      %656 = vmatpush1.bf16.msra.mxu0 0
      %657 = vmatprep.mubr.bf16.mxu0 0
      %658 = vmatmul.mubr.bf16.gmra.mrb[0].mxu0 %v255
      %v659 = vpop.f32.mrb[0].mxu0
      %v660 = vadd.f32 0.0, %v659
      %v661 = vpop.f32.mrb[0].mxu0
      %v662 = vpop.f32.mrb[0].mxu0
      %v663 = vpop.f32.mrb[0].mxu0
      %664 = vdwg.mxu0
      %v665 = vmax.f32 %v500, %v619
      %v666 = vmax.f32 %v501, %v621
      %v667 = vmax.f32 %v502, %v660
      %s668 = scalar_lea.vmem %s165, 288
      %v669 = vld [vmem:[%s668] sm:$0xff]
      %v670 = vld [vmem:[%s668 + $0x8] sm:$0xf]
      %v671 = vld [vmem:[%s668 + $0xc] sm:$0xff]
      %v672 = vld [vmem:[%s668 + $0x14] sm:$0xf]
      %v673 = vld [vmem:[%s668 + $0x18] sm:$0xff]
      %v674 = vld [vmem:[%s668 + $0x20] sm:$0xf]
      %v675 = vld [vmem:[%s668 + $0x24] sm:$0xff]
      %v676 = vld [vmem:[%s668 + $0x2c] sm:$0xf]
      %v677 = vld [vmem:[%s668 + $0x30] sm:$0xff]
      %v678 = vld [vmem:[%s668 + $0x38] sm:$0xf]
      %v679 = vld [vmem:[%s668 + $0x3c] sm:$0xff]
      %v680 = vld [vmem:[%s668 + $0x44] sm:$0xf]
      %v681 = vld [vmem:[%s668 + $0x48] sm:$0xff]
      %v682 = vld [vmem:[%s668 + $0x50] sm:$0xf]
      %v683 = vld [vmem:[%s668 + $0x54] sm:$0xff]
      %v684 = vld [vmem:[%s668 + $0x5c] sm:$0xf]
      %v701 = vunpack.c.l.b16 %v669
      %v702 = vunpack.c.h.b16 %v669
      %v703 = vunpack.c.l.b16 %v670
      %v704 = vunpack.c.l.b16 %v671
      %v705 = vunpack.c.h.b16 %v671
      %v706 = vunpack.c.l.b16 %v672
      %v707 = vunpack.c.l.b16 %v673
      %v708 = vunpack.c.h.b16 %v673
      %v709 = vunpack.c.l.b16 %v674
      %v710 = vunpack.c.l.b16 %v675
      %v711 = vunpack.c.h.b16 %v675
      %v712 = vunpack.c.l.b16 %v676
      %v713 = vunpack.c.l.b16 %v677
      %v714 = vunpack.c.h.b16 %v677
      %v715 = vunpack.c.l.b16 %v678
      %v716 = vunpack.c.l.b16 %v679
      %v717 = vunpack.c.h.b16 %v679
      %v718 = vunpack.c.l.b16 %v680
      %v719 = vunpack.c.l.b16 %v681
      %v720 = vunpack.c.h.b16 %v681
      %v721 = vunpack.c.l.b16 %v682
      %v722 = vunpack.c.l.b16 %v683
      %v723 = vunpack.c.h.b16 %v683
      %v724 = vunpack.c.l.b16 %v684
      %v725 = vpack.c.b16 %v704, %v701
      %v726 = vpack.c.b16 %v705, %v702
      %v727 = vpack.c.b16 %v706, %v703
      %v728 = vpack.c.b16 %v710, %v707
      %v729 = vpack.c.b16 %v711, %v708
      %v730 = vpack.c.b16 %v712, %v709
      %v731 = vpack.c.b16 %v716, %v713
      %v732 = vpack.c.b16 %v717, %v714
      %v733 = vpack.c.b16 %v718, %v715
      %v734 = vpack.c.b16 %v722, %v719
      %v735 = vpack.c.b16 %v723, %v720
      %v736 = vpack.c.b16 %v724, %v721
      %749 = vmatprep.subr.bf16.mxu0 %v726
      %750 = vmatpush1.bf16.msra.mxu0 %v725
      %751 = vmatprep.subr.bf16.mxu0 %v729
      %752 = vmatpush1.bf16.msra.mxu0 %v728
      %753 = vmatprep.subr.bf16.mxu0 %v732
      %754 = vmatpush1.bf16.msra.mxu0 %v731
      %755 = vmatprep.subr.bf16.mxu0 %v735
      %756 = vmatpush1.bf16.msra.mxu0 %v734
      %757 = vmatprep.subr.bf16.mxu0 0
      %758 = vmatpush1.bf16.msra.mxu0 0
      %759 = vmatprep.subr.bf16.mxu0 0
      %760 = vmatpush1.bf16.msra.mxu0 0
      %761 = vmatprep.subr.bf16.mxu0 0
      %762 = vmatpush1.bf16.msra.mxu0 0
      %763 = vmatprep.subr.bf16.mxu0 0
      %764 = vmatpush1.bf16.msra.mxu0 0
      %765 = vmatprep.subr.bf16.mxu0 0
      %766 = vmatpush1.bf16.msra.mxu0 0
      %767 = vmatprep.subr.bf16.mxu0 0
      %768 = vmatpush1.bf16.msra.mxu0 0
      %769 = vmatprep.subr.bf16.mxu0 0
      %770 = vmatpush1.bf16.msra.mxu0 0
      %771 = vmatprep.subr.bf16.mxu0 0
      %772 = vmatpush1.bf16.msra.mxu0 0
      %773 = vmatprep.subr.bf16.mxu0 0
      %774 = vmatpush1.bf16.msra.mxu0 0
      %775 = vmatprep.subr.bf16.mxu0 0
      %776 = vmatpush1.bf16.msra.mxu0 0
      %777 = vmatprep.subr.bf16.mxu0 0
      %778 = vmatpush1.bf16.msra.mxu0 0
      %779 = vmatprep.subr.bf16.mxu0 0
      %780 = vmatpush1.bf16.msra.mxu0 0
      %781 = vmatprep.mubr.bf16.mxu0 0
      %782 = vmatmul.mubr.bf16.gmra.mrb[0].mxu0 %v255
      %v783 = vpop.f32.mrb[0].mxu0
      %v784 = vadd.f32 0.0, %v783
      %v785 = vpop.f32.mrb[0].mxu0
      %v786 = vadd.f32 0.0, %v785
      %v787 = vpop.f32.mrb[0].mxu0
      %v788 = vpop.f32.mrb[0].mxu0
      %789 = vdwg.mxu0
      %790 = vmatprep.subr.bf16.mxu0 0
      %791 = vmatpush1.bf16.msra.mxu0 %v727
      %792 = vmatprep.subr.bf16.mxu0 0
      %793 = vmatpush1.bf16.msra.mxu0 %v730
      %794 = vmatprep.subr.bf16.mxu0 0
      %795 = vmatpush1.bf16.msra.mxu0 %v733
      %796 = vmatprep.subr.bf16.mxu0 0
      %797 = vmatpush1.bf16.msra.mxu0 %v736
      %798 = vmatprep.subr.bf16.mxu0 0
      %799 = vmatpush1.bf16.msra.mxu0 0
      %800 = vmatprep.subr.bf16.mxu0 0
      %801 = vmatpush1.bf16.msra.mxu0 0
      %802 = vmatprep.subr.bf16.mxu0 0
      %803 = vmatpush1.bf16.msra.mxu0 0
      %804 = vmatprep.subr.bf16.mxu0 0
      %805 = vmatpush1.bf16.msra.mxu0 0
      %806 = vmatprep.subr.bf16.mxu0 0
      %807 = vmatpush1.bf16.msra.mxu0 0
      %808 = vmatprep.subr.bf16.mxu0 0
      %809 = vmatpush1.bf16.msra.mxu0 0
      %810 = vmatprep.subr.bf16.mxu0 0
      %811 = vmatpush1.bf16.msra.mxu0 0
      %812 = vmatprep.subr.bf16.mxu0 0
      %813 = vmatpush1.bf16.msra.mxu0 0
      %814 = vmatprep.subr.bf16.mxu0 0
      %815 = vmatpush1.bf16.msra.mxu0 0
      %816 = vmatprep.subr.bf16.mxu0 0
      %817 = vmatpush1.bf16.msra.mxu0 0
      %818 = vmatprep.subr.bf16.mxu0 0
      %819 = vmatpush1.bf16.msra.mxu0 0
      %820 = vmatprep.subr.bf16.mxu0 0
      %821 = vmatpush1.bf16.msra.mxu0 0
      %822 = vmatprep.mubr.bf16.mxu0 0
      %823 = vmatmul.mubr.bf16.gmra.mrb[0].mxu0 %v255
      %v824 = vpop.f32.mrb[0].mxu0
      %v825 = vadd.f32 0.0, %v824
      %v826 = vpop.f32.mrb[0].mxu0
      %v827 = vpop.f32.mrb[0].mxu0
      %v828 = vpop.f32.mrb[0].mxu0
      %829 = vdwg.mxu0
      %v830 = vmax.f32 %v665, %v784
      %v831 = vmax.f32 %v666, %v786
      %v832 = vmax.f32 %v667, %v825
      %s833 = scalar_lea.vmem %s165, 384
      %v834 = vld [vmem:[%s833] sm:$0xff]
      %v835 = vld [vmem:[%s833 + $0x8] sm:$0xf]
      %v836 = vld [vmem:[%s833 + $0xc] sm:$0xff]
      %v837 = vld [vmem:[%s833 + $0x14] sm:$0xf]
      %v838 = vld [vmem:[%s833 + $0x18] sm:$0xff]
      %v839 = vld [vmem:[%s833 + $0x20] sm:$0xf]
      %v840 = vld [vmem:[%s833 + $0x24] sm:$0xff]
      %v841 = vld [vmem:[%s833 + $0x2c] sm:$0xf]
      %v842 = vld [vmem:[%s833 + $0x30] sm:$0xff]
      %v843 = vld [vmem:[%s833 + $0x38] sm:$0xf]
      %v844 = vld [vmem:[%s833 + $0x3c] sm:$0xff]
      %v845 = vld [vmem:[%s833 + $0x44] sm:$0xf]
      %v846 = vld [vmem:[%s833 + $0x48] sm:$0xff]
      %v847 = vld [vmem:[%s833 + $0x50] sm:$0xf]
      %v848 = vld [vmem:[%s833 + $0x54] sm:$0xff]
      %v849 = vld [vmem:[%s833 + $0x5c] sm:$0xf]
      %v866 = vunpack.c.l.b16 %v834
      %v867 = vunpack.c.h.b16 %v834
      %v868 = vunpack.c.l.b16 %v835
      %v869 = vunpack.c.l.b16 %v836
      %v870 = vunpack.c.h.b16 %v836
      %v871 = vunpack.c.l.b16 %v837
      %v872 = vunpack.c.l.b16 %v838
      %v873 = vunpack.c.h.b16 %v838
      %v874 = vunpack.c.l.b16 %v839
      %v875 = vunpack.c.l.b16 %v840
      %v876 = vunpack.c.h.b16 %v840
      %v877 = vunpack.c.l.b16 %v841
      %v878 = vunpack.c.l.b16 %v842
      %v879 = vunpack.c.h.b16 %v842
      %v880 = vunpack.c.l.b16 %v843
      %v881 = vunpack.c.l.b16 %v844
      %v882 = vunpack.c.h.b16 %v844
      %v883 = vunpack.c.l.b16 %v845
      %v884 = vunpack.c.l.b16 %v846
      %v885 = vunpack.c.h.b16 %v846
      %v886 = vunpack.c.l.b16 %v847
      %v887 = vunpack.c.l.b16 %v848
      %v888 = vunpack.c.h.b16 %v848
      %v889 = vunpack.c.l.b16 %v849
      %v890 = vpack.c.b16 %v869, %v866
      %v891 = vpack.c.b16 %v870, %v867
      %v892 = vpack.c.b16 %v871, %v868
      %v893 = vpack.c.b16 %v875, %v872
      %v894 = vpack.c.b16 %v876, %v873
      %v895 = vpack.c.b16 %v877, %v874
      %v896 = vpack.c.b16 %v881, %v878
      %v897 = vpack.c.b16 %v882, %v879
      %v898 = vpack.c.b16 %v883, %v880
      %v899 = vpack.c.b16 %v887, %v884
      %v900 = vpack.c.b16 %v888, %v885
      %v901 = vpack.c.b16 %v889, %v886
      %914 = vmatprep.subr.bf16.mxu0 %v891
      %915 = vmatpush1.bf16.msra.mxu0 %v890
      %916 = vmatprep.subr.bf16.mxu0 %v894
      %917 = vmatpush1.bf16.msra.mxu0 %v893
      %918 = vmatprep.subr.bf16.mxu0 %v897
      %919 = vmatpush1.bf16.msra.mxu0 %v896
      %920 = vmatprep.subr.bf16.mxu0 %v900
      %921 = vmatpush1.bf16.msra.mxu0 %v899
      %922 = vmatprep.subr.bf16.mxu0 0
      %923 = vmatpush1.bf16.msra.mxu0 0
      %924 = vmatprep.subr.bf16.mxu0 0
      %925 = vmatpush1.bf16.msra.mxu0 0
      %926 = vmatprep.subr.bf16.mxu0 0
      %927 = vmatpush1.bf16.msra.mxu0 0
      %928 = vmatprep.subr.bf16.mxu0 0
      %929 = vmatpush1.bf16.msra.mxu0 0
      %930 = vmatprep.subr.bf16.mxu0 0
      %931 = vmatpush1.bf16.msra.mxu0 0
      %932 = vmatprep.subr.bf16.mxu0 0
      %933 = vmatpush1.bf16.msra.mxu0 0
      %934 = vmatprep.subr.bf16.mxu0 0
      %935 = vmatpush1.bf16.msra.mxu0 0
      %936 = vmatprep.subr.bf16.mxu0 0
      %937 = vmatpush1.bf16.msra.mxu0 0
      %938 = vmatprep.subr.bf16.mxu0 0
      %939 = vmatpush1.bf16.msra.mxu0 0
      %940 = vmatprep.subr.bf16.mxu0 0
      %941 = vmatpush1.bf16.msra.mxu0 0
      %942 = vmatprep.subr.bf16.mxu0 0
      %943 = vmatpush1.bf16.msra.mxu0 0
      %944 = vmatprep.subr.bf16.mxu0 0
      %945 = vmatpush1.bf16.msra.mxu0 0
      %946 = vmatprep.mubr.bf16.mxu0 0
      %947 = vmatmul.mubr.bf16.gmra.mrb[0].mxu0 %v255
      %v948 = vpop.f32.mrb[0].mxu0
      %v949 = vadd.f32 0.0, %v948
      %v950 = vpop.f32.mrb[0].mxu0
      %v951 = vadd.f32 0.0, %v950
      %v952 = vpop.f32.mrb[0].mxu0
      %v953 = vpop.f32.mrb[0].mxu0
      %954 = vdwg.mxu0
      %955 = vmatprep.subr.bf16.mxu0 0
      %956 = vmatpush1.bf16.msra.mxu0 %v892
      %957 = vmatprep.subr.bf16.mxu0 0
      %958 = vmatpush1.bf16.msra.mxu0 %v895
      %959 = vmatprep.subr.bf16.mxu0 0
      %960 = vmatpush1.bf16.msra.mxu0 %v898
      %961 = vmatprep.subr.bf16.mxu0 0
      %962 = vmatpush1.bf16.msra.mxu0 %v901
      %963 = vmatprep.subr.bf16.mxu0 0
      %964 = vmatpush1.bf16.msra.mxu0 0
      %965 = vmatprep.subr.bf16.mxu0 0
      %966 = vmatpush1.bf16.msra.mxu0 0
      %967 = vmatprep.subr.bf16.mxu0 0
      %968 = vmatpush1.bf16.msra.mxu0 0
      %969 = vmatprep.subr.bf16.mxu0 0
      %970 = vmatpush1.bf16.msra.mxu0 0
      %971 = vmatprep.subr.bf16.mxu0 0
      %972 = vmatpush1.bf16.msra.mxu0 0
      %973 = vmatprep.subr.bf16.mxu0 0
      %974 = vmatpush1.bf16.msra.mxu0 0
      %975 = vmatprep.subr.bf16.mxu0 0
      %976 = vmatpush1.bf16.msra.mxu0 0
      %977 = vmatprep.subr.bf16.mxu0 0
      %978 = vmatpush1.bf16.msra.mxu0 0
      %979 = vmatprep.subr.bf16.mxu0 0
      %980 = vmatpush1.bf16.msra.mxu0 0
      %981 = vmatprep.subr.bf16.mxu0 0
      %982 = vmatpush1.bf16.msra.mxu0 0
      %983 = vmatprep.subr.bf16.mxu0 0
      %984 = vmatpush1.bf16.msra.mxu0 0
      %985 = vmatprep.subr.bf16.mxu0 0
      %986 = vmatpush1.bf16.msra.mxu0 0
      %987 = vmatprep.mubr.bf16.mxu0 0
      %988 = vmatmul.mubr.bf16.gmra.mrb[0].mxu0 %v255
      %v989 = vpop.f32.mrb[0].mxu0
      %v990 = vadd.f32 0.0, %v989
      %v991 = vpop.f32.mrb[0].mxu0
      %v992 = vpop.f32.mrb[0].mxu0
      %v993 = vpop.f32.mrb[0].mxu0
      %994 = vdwg.mxu0
      %v995 = vmax.f32 %v830, %v949
      %v996 = vmax.f32 %v831, %v951
      %v997 = vmax.f32 %v832, %v990
      %s998 = scalar_lea.vmem %s165, 480
      %v999 = vld [vmem:[%s998] sm:$0xff]
      %v1000 = vld [vmem:[%s998 + $0x8] sm:$0xf]
      %v1001 = vld [vmem:[%s998 + $0xc] sm:$0xff]
      %v1002 = vld [vmem:[%s998 + $0x14] sm:$0xf]
      %v1003 = vld [vmem:[%s998 + $0x18] sm:$0xff]
      %v1004 = vld [vmem:[%s998 + $0x20] sm:$0xf]
      %v1005 = vld [vmem:[%s998 + $0x24] sm:$0xff]
      %v1006 = vld [vmem:[%s998 + $0x2c] sm:$0xf]
      %v1007 = vld [vmem:[%s998 + $0x30] sm:$0xff]
      %v1008 = vld [vmem:[%s998 + $0x38] sm:$0xf]
      %v1009 = vld [vmem:[%s998 + $0x3c] sm:$0xff]
      %v1010 = vld [vmem:[%s998 + $0x44] sm:$0xf]
      %v1011 = vld [vmem:[%s998 + $0x48] sm:$0xff]
      %v1012 = vld [vmem:[%s998 + $0x50] sm:$0xf]
      %v1013 = vld [vmem:[%s998 + $0x54] sm:$0xff]
      %v1014 = vld [vmem:[%s998 + $0x5c] sm:$0xf]
      %v1031 = vunpack.c.l.b16 %v999
      %v1032 = vunpack.c.h.b16 %v999
      %v1033 = vunpack.c.l.b16 %v1000
      %v1034 = vunpack.c.l.b16 %v1001
      %v1035 = vunpack.c.h.b16 %v1001
      %v1036 = vunpack.c.l.b16 %v1002
      %v1037 = vunpack.c.l.b16 %v1003
      %v1038 = vunpack.c.h.b16 %v1003
      %v1039 = vunpack.c.l.b16 %v1004
      %v1040 = vunpack.c.l.b16 %v1005
      %v1041 = vunpack.c.h.b16 %v1005
      %v1042 = vunpack.c.l.b16 %v1006
      %v1043 = vunpack.c.l.b16 %v1007
      %v1044 = vunpack.c.h.b16 %v1007
      %v1045 = vunpack.c.l.b16 %v1008
      %v1046 = vunpack.c.l.b16 %v1009
      %v1047 = vunpack.c.h.b16 %v1009
      %v1048 = vunpack.c.l.b16 %v1010
      %v1049 = vunpack.c.l.b16 %v1011
      %v1050 = vunpack.c.h.b16 %v1011
      %v1051 = vunpack.c.l.b16 %v1012
      %v1052 = vunpack.c.l.b16 %v1013
      %v1053 = vunpack.c.h.b16 %v1013
      %v1054 = vunpack.c.l.b16 %v1014
      %v1055 = vpack.c.b16 %v1034, %v1031
      %v1056 = vpack.c.b16 %v1035, %v1032
      %v1057 = vpack.c.b16 %v1036, %v1033
      %v1058 = vpack.c.b16 %v1040, %v1037
      %v1059 = vpack.c.b16 %v1041, %v1038
      %v1060 = vpack.c.b16 %v1042, %v1039
      %v1061 = vpack.c.b16 %v1046, %v1043
      %v1062 = vpack.c.b16 %v1047, %v1044
      %v1063 = vpack.c.b16 %v1048, %v1045
      %v1064 = vpack.c.b16 %v1052, %v1049
      %v1065 = vpack.c.b16 %v1053, %v1050
      %v1066 = vpack.c.b16 %v1054, %v1051
      %1079 = vmatprep.subr.bf16.mxu0 %v1056
      %1080 = vmatpush1.bf16.msra.mxu0 %v1055
      %1081 = vmatprep.subr.bf16.mxu0 %v1059
      %1082 = vmatpush1.bf16.msra.mxu0 %v1058
      %1083 = vmatprep.subr.bf16.mxu0 %v1062
      %1084 = vmatpush1.bf16.msra.mxu0 %v1061
      %1085 = vmatprep.subr.bf16.mxu0 %v1065
      %1086 = vmatpush1.bf16.msra.mxu0 %v1064
      %1087 = vmatprep.subr.bf16.mxu0 0
      %1088 = vmatpush1.bf16.msra.mxu0 0
      %1089 = vmatprep.subr.bf16.mxu0 0
      %1090 = vmatpush1.bf16.msra.mxu0 0
      %1091 = vmatprep.subr.bf16.mxu0 0
      %1092 = vmatpush1.bf16.msra.mxu0 0
      %1093 = vmatprep.subr.bf16.mxu0 0
      %1094 = vmatpush1.bf16.msra.mxu0 0
      %1095 = vmatprep.subr.bf16.mxu0 0
      %1096 = vmatpush1.bf16.msra.mxu0 0
      %1097 = vmatprep.subr.bf16.mxu0 0
      %1098 = vmatpush1.bf16.msra.mxu0 0
      %1099 = vmatprep.subr.bf16.mxu0 0
      %1100 = vmatpush1.bf16.msra.mxu0 0
      %1101 = vmatprep.subr.bf16.mxu0 0
      %1102 = vmatpush1.bf16.msra.mxu0 0
      %1103 = vmatprep.subr.bf16.mxu0 0
      %1104 = vmatpush1.bf16.msra.mxu0 0
      %1105 = vmatprep.subr.bf16.mxu0 0
      %1106 = vmatpush1.bf16.msra.mxu0 0
      %1107 = vmatprep.subr.bf16.mxu0 0
      %1108 = vmatpush1.bf16.msra.mxu0 0
      %1109 = vmatprep.subr.bf16.mxu0 0
      %1110 = vmatpush1.bf16.msra.mxu0 0
      %1111 = vmatprep.mubr.bf16.mxu0 0
      %1112 = vmatmul.mubr.bf16.gmra.mrb[0].mxu0 %v255
      %v1113 = vpop.f32.mrb[0].mxu0
      %v1114 = vadd.f32 0.0, %v1113
      %v1115 = vpop.f32.mrb[0].mxu0
      %v1116 = vadd.f32 0.0, %v1115
      %v1117 = vpop.f32.mrb[0].mxu0
      %v1118 = vpop.f32.mrb[0].mxu0
      %1119 = vdwg.mxu0
      %1120 = vmatprep.subr.bf16.mxu0 0
      %1121 = vmatpush1.bf16.msra.mxu0 %v1057
      %1122 = vmatprep.subr.bf16.mxu0 0
      %1123 = vmatpush1.bf16.msra.mxu0 %v1060
      %1124 = vmatprep.subr.bf16.mxu0 0
      %1125 = vmatpush1.bf16.msra.mxu0 %v1063
      %1126 = vmatprep.subr.bf16.mxu0 0
      %1127 = vmatpush1.bf16.msra.mxu0 %v1066
      %1128 = vmatprep.subr.bf16.mxu0 0
      %1129 = vmatpush1.bf16.msra.mxu0 0
      %1130 = vmatprep.subr.bf16.mxu0 0
      %1131 = vmatpush1.bf16.msra.mxu0 0
      %1132 = vmatprep.subr.bf16.mxu0 0
      %1133 = vmatpush1.bf16.msra.mxu0 0
      %1134 = vmatprep.subr.bf16.mxu0 0
      %1135 = vmatpush1.bf16.msra.mxu0 0
      %1136 = vmatprep.subr.bf16.mxu0 0
      %1137 = vmatpush1.bf16.msra.mxu0 0
      %1138 = vmatprep.subr.bf16.mxu0 0
      %1139 = vmatpush1.bf16.msra.mxu0 0
      %1140 = vmatprep.subr.bf16.mxu0 0
      %1141 = vmatpush1.bf16.msra.mxu0 0
      %1142 = vmatprep.subr.bf16.mxu0 0
      %1143 = vmatpush1.bf16.msra.mxu0 0
      %1144 = vmatprep.subr.bf16.mxu0 0
      %1145 = vmatpush1.bf16.msra.mxu0 0
      %1146 = vmatprep.subr.bf16.mxu0 0
      %1147 = vmatpush1.bf16.msra.mxu0 0
      %1148 = vmatprep.subr.bf16.mxu0 0
      %1149 = vmatpush1.bf16.msra.mxu0 0
      %1150 = vmatprep.subr.bf16.mxu0 0
      %1151 = vmatpush1.bf16.msra.mxu0 0
      %1152 = vmatprep.mubr.bf16.mxu0 0
      %1153 = vmatmul.mubr.bf16.gmra.mrb[0].mxu0 %v255
      %v1154 = vpop.f32.mrb[0].mxu0
      %v1155 = vadd.f32 0.0, %v1154
      %v1156 = vpop.f32.mrb[0].mxu0
      %v1157 = vpop.f32.mrb[0].mxu0
      %v1158 = vpop.f32.mrb[0].mxu0
      %1159 = vdwg.mxu0
      %v1160 = vmax.f32 %v995, %v1114
      %v1161 = vmax.f32 %v996, %v1116
      %v1162 = vmax.f32 %v997, %v1155
      %s1163 = scalar_lea.vmem %s165, 576
      %v1164 = vld [vmem:[%s1163] sm:$0xff]
      %v1165 = vld [vmem:[%s1163 + $0x8] sm:$0xf]
      %v1166 = vld [vmem:[%s1163 + $0xc] sm:$0xff]
      %v1167 = vld [vmem:[%s1163 + $0x14] sm:$0xf]
      %v1168 = vld [vmem:[%s1163 + $0x18] sm:$0xff]
      %v1169 = vld [vmem:[%s1163 + $0x20] sm:$0xf]
      %v1170 = vld [vmem:[%s1163 + $0x24] sm:$0xff]
      %v1171 = vld [vmem:[%s1163 + $0x2c] sm:$0xf]
      %v1172 = vld [vmem:[%s1163 + $0x30] sm:$0xff]
      %v1173 = vld [vmem:[%s1163 + $0x38] sm:$0xf]
      %v1174 = vld [vmem:[%s1163 + $0x3c] sm:$0xff]
      %v1175 = vld [vmem:[%s1163 + $0x44] sm:$0xf]
      %v1176 = vld [vmem:[%s1163 + $0x48] sm:$0xff]
      %v1177 = vld [vmem:[%s1163 + $0x50] sm:$0xf]
      %v1178 = vld [vmem:[%s1163 + $0x54] sm:$0xff]
      %v1179 = vld [vmem:[%s1163 + $0x5c] sm:$0xf]
      %v1196 = vunpack.c.l.b16 %v1164
      %v1197 = vunpack.c.h.b16 %v1164
      %v1198 = vunpack.c.l.b16 %v1165
      %v1199 = vunpack.c.l.b16 %v1166
      %v1200 = vunpack.c.h.b16 %v1166
      %v1201 = vunpack.c.l.b16 %v1167
      %v1202 = vunpack.c.l.b16 %v1168
      %v1203 = vunpack.c.h.b16 %v1168
      %v1204 = vunpack.c.l.b16 %v1169
      %v1205 = vunpack.c.l.b16 %v1170
      %v1206 = vunpack.c.h.b16 %v1170
      %v1207 = vunpack.c.l.b16 %v1171
      %v1208 = vunpack.c.l.b16 %v1172
      %v1209 = vunpack.c.h.b16 %v1172
      %v1210 = vunpack.c.l.b16 %v1173
      %v1211 = vunpack.c.l.b16 %v1174
      %v1212 = vunpack.c.h.b16 %v1174
      %v1213 = vunpack.c.l.b16 %v1175
      %v1214 = vunpack.c.l.b16 %v1176
      %v1215 = vunpack.c.h.b16 %v1176
      %v1216 = vunpack.c.l.b16 %v1177
      %v1217 = vunpack.c.l.b16 %v1178
      %v1218 = vunpack.c.h.b16 %v1178
      %v1219 = vunpack.c.l.b16 %v1179
      %v1220 = vpack.c.b16 %v1199, %v1196
      %v1221 = vpack.c.b16 %v1200, %v1197
      %v1222 = vpack.c.b16 %v1201, %v1198
      %v1223 = vpack.c.b16 %v1205, %v1202
      %v1224 = vpack.c.b16 %v1206, %v1203
      %v1225 = vpack.c.b16 %v1207, %v1204
      %v1226 = vpack.c.b16 %v1211, %v1208
      %v1227 = vpack.c.b16 %v1212, %v1209
      %v1228 = vpack.c.b16 %v1213, %v1210
      %v1229 = vpack.c.b16 %v1217, %v1214
      %v1230 = vpack.c.b16 %v1218, %v1215
      %v1231 = vpack.c.b16 %v1219, %v1216
      %1244 = vmatprep.subr.bf16.mxu0 %v1221
      %1245 = vmatpush1.bf16.msra.mxu0 %v1220
      %1246 = vmatprep.subr.bf16.mxu0 %v1224
      %1247 = vmatpush1.bf16.msra.mxu0 %v1223
      %1248 = vmatprep.subr.bf16.mxu0 %v1227
      %1249 = vmatpush1.bf16.msra.mxu0 %v1226
      %1250 = vmatprep.subr.bf16.mxu0 %v1230
      %1251 = vmatpush1.bf16.msra.mxu0 %v1229
      %1252 = vmatprep.subr.bf16.mxu0 0
      %1253 = vmatpush1.bf16.msra.mxu0 0
      %1254 = vmatprep.subr.bf16.mxu0 0
      %1255 = vmatpush1.bf16.msra.mxu0 0
      %1256 = vmatprep.subr.bf16.mxu0 0
      %1257 = vmatpush1.bf16.msra.mxu0 0
      %1258 = vmatprep.subr.bf16.mxu0 0
      %1259 = vmatpush1.bf16.msra.mxu0 0
      %1260 = vmatprep.subr.bf16.mxu0 0
      %1261 = vmatpush1.bf16.msra.mxu0 0
      %1262 = vmatprep.subr.bf16.mxu0 0
      %1263 = vmatpush1.bf16.msra.mxu0 0
      %1264 = vmatprep.subr.bf16.mxu0 0
      %1265 = vmatpush1.bf16.msra.mxu0 0
      %1266 = vmatprep.subr.bf16.mxu0 0
      %1267 = vmatpush1.bf16.msra.mxu0 0
      %1268 = vmatprep.subr.bf16.mxu0 0
      %1269 = vmatpush1.bf16.msra.mxu0 0
      %1270 = vmatprep.subr.bf16.mxu0 0
      %1271 = vmatpush1.bf16.msra.mxu0 0
      %1272 = vmatprep.subr.bf16.mxu0 0
      %1273 = vmatpush1.bf16.msra.mxu0 0
      %1274 = vmatprep.subr.bf16.mxu0 0
      %1275 = vmatpush1.bf16.msra.mxu0 0
      %1276 = vmatprep.mubr.bf16.mxu0 0
      %1277 = vmatmul.mubr.bf16.gmra.mrb[0].mxu0 %v255
      %v1278 = vpop.f32.mrb[0].mxu0
      %v1279 = vadd.f32 0.0, %v1278
      %v1280 = vpop.f32.mrb[0].mxu0
      %v1281 = vadd.f32 0.0, %v1280
      %v1282 = vpop.f32.mrb[0].mxu0
      %v1283 = vpop.f32.mrb[0].mxu0
      %1284 = vdwg.mxu0
      %1285 = vmatprep.subr.bf16.mxu0 0
      %1286 = vmatpush1.bf16.msra.mxu0 %v1222
      %1287 = vmatprep.subr.bf16.mxu0 0
      %1288 = vmatpush1.bf16.msra.mxu0 %v1225
      %1289 = vmatprep.subr.bf16.mxu0 0
      %1290 = vmatpush1.bf16.msra.mxu0 %v1228
      %1291 = vmatprep.subr.bf16.mxu0 0
      %1292 = vmatpush1.bf16.msra.mxu0 %v1231
      %1293 = vmatprep.subr.bf16.mxu0 0
      %1294 = vmatpush1.bf16.msra.mxu0 0
      %1295 = vmatprep.subr.bf16.mxu0 0
      %1296 = vmatpush1.bf16.msra.mxu0 0
      %1297 = vmatprep.subr.bf16.mxu0 0
      %1298 = vmatpush1.bf16.msra.mxu0 0
      %1299 = vmatprep.subr.bf16.mxu0 0
      %1300 = vmatpush1.bf16.msra.mxu0 0
      %1301 = vmatprep.subr.bf16.mxu0 0
      %1302 = vmatpush1.bf16.msra.mxu0 0
      %1303 = vmatprep.subr.bf16.mxu0 0
      %1304 = vmatpush1.bf16.msra.mxu0 0
      %1305 = vmatprep.subr.bf16.mxu0 0
      %1306 = vmatpush1.bf16.msra.mxu0 0
      %1307 = vmatprep.subr.bf16.mxu0 0
      %1308 = vmatpush1.bf16.msra.mxu0 0
      %1309 = vmatprep.subr.bf16.mxu0 0
      %1310 = vmatpush1.bf16.msra.mxu0 0
      %1311 = vmatprep.subr.bf16.mxu0 0
      %1312 = vmatpush1.bf16.msra.mxu0 0
      %1313 = vmatprep.subr.bf16.mxu0 0
      %1314 = vmatpush1.bf16.msra.mxu0 0
      %1315 = vmatprep.subr.bf16.mxu0 0
      %1316 = vmatpush1.bf16.msra.mxu0 0
      %1317 = vmatprep.mubr.bf16.mxu0 0
      %1318 = vmatmul.mubr.bf16.gmra.mrb[0].mxu0 %v255
      %v1319 = vpop.f32.mrb[0].mxu0
      %v1320 = vadd.f32 0.0, %v1319
      %v1321 = vpop.f32.mrb[0].mxu0
      %v1322 = vpop.f32.mrb[0].mxu0
      %v1323 = vpop.f32.mrb[0].mxu0
      %1324 = vdwg.mxu0
      %v1325 = vmax.f32 %v1160, %v1279
      %v1326 = vmax.f32 %v1161, %v1281
      %v1327 = vmax.f32 %v1162, %v1320
      %s1328 = scalar_lea.vmem %s165, 672
      %v1329 = vld [vmem:[%s1328] sm:$0xff]
      %v1330 = vld [vmem:[%s1328 + $0x8] sm:$0xf]
      %v1331 = vld [vmem:[%s1328 + $0xc] sm:$0xff]
      %v1332 = vld [vmem:[%s1328 + $0x14] sm:$0xf]
      %v1333 = vld [vmem:[%s1328 + $0x18] sm:$0xff]
      %v1334 = vld [vmem:[%s1328 + $0x20] sm:$0xf]
      %v1335 = vld [vmem:[%s1328 + $0x24] sm:$0xff]
      %v1336 = vld [vmem:[%s1328 + $0x2c] sm:$0xf]
      %v1337 = vld [vmem:[%s1328 + $0x30] sm:$0xff]
      %v1338 = vld [vmem:[%s1328 + $0x38] sm:$0xf]
      %v1339 = vld [vmem:[%s1328 + $0x3c] sm:$0xff]
      %v1340 = vld [vmem:[%s1328 + $0x44] sm:$0xf]
      %v1341 = vld [vmem:[%s1328 + $0x48] sm:$0xff]
      %v1342 = vld [vmem:[%s1328 + $0x50] sm:$0xf]
      %v1343 = vld [vmem:[%s1328 + $0x54] sm:$0xff]
      %v1344 = vld [vmem:[%s1328 + $0x5c] sm:$0xf]
      %v1361 = vunpack.c.l.b16 %v1329
      %v1362 = vunpack.c.h.b16 %v1329
      %v1363 = vunpack.c.l.b16 %v1330
      %v1364 = vunpack.c.l.b16 %v1331
      %v1365 = vunpack.c.h.b16 %v1331
      %v1366 = vunpack.c.l.b16 %v1332
      %v1367 = vunpack.c.l.b16 %v1333
      %v1368 = vunpack.c.h.b16 %v1333
      %v1369 = vunpack.c.l.b16 %v1334
      %v1370 = vunpack.c.l.b16 %v1335
      %v1371 = vunpack.c.h.b16 %v1335
      %v1372 = vunpack.c.l.b16 %v1336
      %v1373 = vunpack.c.l.b16 %v1337
      %v1374 = vunpack.c.h.b16 %v1337
      %v1375 = vunpack.c.l.b16 %v1338
      %v1376 = vunpack.c.l.b16 %v1339
      %v1377 = vunpack.c.h.b16 %v1339
      %v1378 = vunpack.c.l.b16 %v1340
      %v1379 = vunpack.c.l.b16 %v1341
      %v1380 = vunpack.c.h.b16 %v1341
      %v1381 = vunpack.c.l.b16 %v1342
      %v1382 = vunpack.c.l.b16 %v1343
      %v1383 = vunpack.c.h.b16 %v1343
      %v1384 = vunpack.c.l.b16 %v1344
      %v1385 = vpack.c.b16 %v1364, %v1361
      %v1386 = vpack.c.b16 %v1365, %v1362
      %v1387 = vpack.c.b16 %v1366, %v1363
      %v1388 = vpack.c.b16 %v1370, %v1367
      %v1389 = vpack.c.b16 %v1371, %v1368
      %v1390 = vpack.c.b16 %v1372, %v1369
      %v1391 = vpack.c.b16 %v1376, %v1373
      %v1392 = vpack.c.b16 %v1377, %v1374
      %v1393 = vpack.c.b16 %v1378, %v1375
      %v1394 = vpack.c.b16 %v1382, %v1379
      %v1395 = vpack.c.b16 %v1383, %v1380
      %v1396 = vpack.c.b16 %v1384, %v1381
      %1409 = vmatprep.subr.bf16.mxu0 %v1386
      %1410 = vmatpush1.bf16.msra.mxu0 %v1385
      %1411 = vmatprep.subr.bf16.mxu0 %v1389
      %1412 = vmatpush1.bf16.msra.mxu0 %v1388
      %1413 = vmatprep.subr.bf16.mxu0 %v1392
      %1414 = vmatpush1.bf16.msra.mxu0 %v1391
      %1415 = vmatprep.subr.bf16.mxu0 %v1395
      %1416 = vmatpush1.bf16.msra.mxu0 %v1394
      %1417 = vmatprep.subr.bf16.mxu0 0
      %1418 = vmatpush1.bf16.msra.mxu0 0
      %1419 = vmatprep.subr.bf16.mxu0 0
      %1420 = vmatpush1.bf16.msra.mxu0 0
      %1421 = vmatprep.subr.bf16.mxu0 0
      %1422 = vmatpush1.bf16.msra.mxu0 0
      %1423 = vmatprep.subr.bf16.mxu0 0
      %1424 = vmatpush1.bf16.msra.mxu0 0
      %1425 = vmatprep.subr.bf16.mxu0 0
      %1426 = vmatpush1.bf16.msra.mxu0 0
      %1427 = vmatprep.subr.bf16.mxu0 0
      %1428 = vmatpush1.bf16.msra.mxu0 0
      %1429 = vmatprep.subr.bf16.mxu0 0
      %1430 = vmatpush1.bf16.msra.mxu0 0
      %1431 = vmatprep.subr.bf16.mxu0 0
      %1432 = vmatpush1.bf16.msra.mxu0 0
      %1433 = vmatprep.subr.bf16.mxu0 0
      %1434 = vmatpush1.bf16.msra.mxu0 0
      %1435 = vmatprep.subr.bf16.mxu0 0
      %1436 = vmatpush1.bf16.msra.mxu0 0
      %1437 = vmatprep.subr.bf16.mxu0 0
      %1438 = vmatpush1.bf16.msra.mxu0 0
      %1439 = vmatprep.subr.bf16.mxu0 0
      %1440 = vmatpush1.bf16.msra.mxu0 0
      %1441 = vmatprep.mubr.bf16.mxu0 0
      %1442 = vmatmul.mubr.bf16.gmra.mrb[0].mxu0 %v255
      %v1443 = vpop.f32.mrb[0].mxu0
      %v1444 = vadd.f32 0.0, %v1443
      %v1445 = vpop.f32.mrb[0].mxu0
      %v1446 = vadd.f32 0.0, %v1445
      %v1447 = vpop.f32.mrb[0].mxu0
      %v1448 = vpop.f32.mrb[0].mxu0
      %1449 = vdwg.mxu0
      %1450 = vmatprep.subr.bf16.mxu0 0
      %1451 = vmatpush1.bf16.msra.mxu0 %v1387
      %1452 = vmatprep.subr.bf16.mxu0 0
      %1453 = vmatpush1.bf16.msra.mxu0 %v1390
      %1454 = vmatprep.subr.bf16.mxu0 0
      %1455 = vmatpush1.bf16.msra.mxu0 %v1393
      %1456 = vmatprep.subr.bf16.mxu0 0
      %1457 = vmatpush1.bf16.msra.mxu0 %v1396
      %1458 = vmatprep.subr.bf16.mxu0 0
      %1459 = vmatpush1.bf16.msra.mxu0 0
      %1460 = vmatprep.subr.bf16.mxu0 0
      %1461 = vmatpush1.bf16.msra.mxu0 0
      %1462 = vmatprep.subr.bf16.mxu0 0
      %1463 = vmatpush1.bf16.msra.mxu0 0
      %1464 = vmatprep.subr.bf16.mxu0 0
      %1465 = vmatpush1.bf16.msra.mxu0 0
      %1466 = vmatprep.subr.bf16.mxu0 0
      %1467 = vmatpush1.bf16.msra.mxu0 0
      %1468 = vmatprep.subr.bf16.mxu0 0
      %1469 = vmatpush1.bf16.msra.mxu0 0
      %1470 = vmatprep.subr.bf16.mxu0 0
      %1471 = vmatpush1.bf16.msra.mxu0 0
      %1472 = vmatprep.subr.bf16.mxu0 0
      %1473 = vmatpush1.bf16.msra.mxu0 0
      %1474 = vmatprep.subr.bf16.mxu0 0
      %1475 = vmatpush1.bf16.msra.mxu0 0
      %1476 = vmatprep.subr.bf16.mxu0 0
      %1477 = vmatpush1.bf16.msra.mxu0 0
      %1478 = vmatprep.subr.bf16.mxu0 0
      %1479 = vmatpush1.bf16.msra.mxu0 0
      %1480 = vmatprep.subr.bf16.mxu0 0
      %1481 = vmatpush1.bf16.msra.mxu0 0
      %1482 = vmatprep.mubr.bf16.mxu0 0
      %1483 = vmatmul.mubr.bf16.gmra.mrb[0].mxu0 %v255
      %v1484 = vpop.f32.mrb[0].mxu0
      %v1485 = vadd.f32 0.0, %v1484
      %v1486 = vpop.f32.mrb[0].mxu0
      %v1487 = vpop.f32.mrb[0].mxu0
      %v1488 = vpop.f32.mrb[0].mxu0
      %1489 = vdwg.mxu0
      %v1490 = vmax.f32 %v1325, %v1444
      %v1491 = vmax.f32 %v1326, %v1446
      %v1492 = vmax.f32 %v1327, %v1485
      %v1493 = vld [vmem:[%s2] sm:$0xff]
      %1495 = vset.pattern.permute.xlu0 0
      %1496 = vperm.xlu0 %1495, %v1493
      %v1497 = vpop.permute.xlu0 %1496
      %v1499 = vadd.f32 %v1490, %v1497
      %v1500 = vadd.f32 %v1491, %v1497
      %v1501 = vadd.f32 %v1492, %v1497
      %v1502 = vmul.f32 %v1499, 0.2
      %v1503 = vmul.f32 %v1500, 0.2
      %v1504 = vmul.f32 %v1501, 0.2
      %v1505 = vmax.f32 %v1499, %v1502
      %v1506 = vmax.f32 %v1500, %v1503
      %v1507 = vmax.f32 %v1501, %v1504
      %1508 = vst [vmem:[%s170] sm:$0xff] %v1505
      %1509 = vst [vmem:[%s170 + $0x8] sm:$0xff] %v1506
      %vm1510 = vcmask 711680
      %1511 = vst.msk [vmem:[%s170 + $0x10] sm:$0xff] %vm1510, %v1507
      %p1512 = scmp.lt.s32.totalorder %s14, 1
      %s1513 = scalar_select %p1512, %s14, 1
      %s1514 = smul.addr %s1513, 3
      %s1515 = smul.addr %s1514, 8
      %s1516 = scalar_lea.vmem %s3, %s1515
      // Predicated region
      $region33: #{net_forward.2} parent=31 // pred_check
        %p1517 = pneg %p100
      $region34: #{net_forward.2} parent=31 // pred_check_branch
        %1519 = sbr.rel (%p1517) target = $region36
      $region35: #{net_forward.2} parent=31 // pred_region
        _
      $region36: #{net_forward.2} parent=31 // pred_fallthru
        _
    $region32: #{net_forward.2} parent=5 // pred_fallthru
      _
    %p1520 = scmp.le.s32.totalorder 2, %s9
    // Predicated region
    $region37: #{net_forward.2} parent=5 // pred_check
      %p1521 = pneg %p1520
    $region38: #{net_forward.2} parent=5 // pred_check_branch
      %1523 = sbr.rel (%p1521) target = $region40
    $region39: #{net_forward.2} parent=5 // pred_region
      %s1524 = ssub.s32 %s9, 2
      // Predicated region
      $region41: #{net_forward.2} parent=39 // pred_check
        %p1525 = pneg %p106
      $region42: #{net_forward.2} parent=39 // pred_check_branch
        %1527 = sbr.rel (%p1525) target = $region44
      $region43: #{net_forward.2} parent=39 // pred_region
        %p1528 = scmp.lt.s32.totalorder %s15, 1
        %s1529 = scalar_select %p1528, %s15, 1
        %s1530 = smul.addr %s1529, 3
        %s1531 = smul.addr %s1530, 8
        %s1532 = scalar_lea.vmem %s3, %s1531
      $region44: #{net_forward.2} parent=39 // pred_fallthru
        _
    $region40: #{net_forward.2} parent=5 // pred_fallthru
      _
  $region6: #{net_forward.2} parent=0 // loop_footer
    %s13 = sadd.s32 1, %s9
  $region7: #{net_forward.2} parent=0 // loop_footer_branch
    %8 = sbr.rel target = $region3
  $region8: #{net_forward.2} parent=0 // loop_exit
    _

// kernel: net_forward.3
$region0: #{net_forward.3}
  #allocation0 [shape = 'u32[]', space=smem, size = 0x4, offset = 0x4, fixed_abs, tag = 'smem constant byte address 0x4 - core index']
  #allocation1 [shape = 'u32[144,128]{1,0:T(1,128)}', space=vmem, size = 0x12000, scoped, tag = 'internal scratch']
  #allocation2 [shape = 'f32[1,1]{1,0:T(1,128)S(1)}', space=vmem, size = 0x200, scoped, tag = 'scoped memory for net_forward.3']
  %s0 = inlined_call_operand.vmem [shape: bf16[2,2744], index: 0, kind: input, shape index: {}]
  %s1 = inlined_call_operand.vmem [shape: bf16[2744,128], index: 1, kind: input, shape index: {}]
  %s2 = inlined_call_operand.vmem [shape: f32[1,128], index: 2, kind: input, shape index: {}]
  %s3 = inlined_call_operand.vmem [shape: bf16[128,64], index: 3, kind: input, shape index: {}]
  %s4 = inlined_call_operand.vmem [shape: f32[1,64], index: 4, kind: input, shape index: {}]
  %s5 = inlined_call_operand.vmem [shape: bf16[64,1], index: 5, kind: input, shape index: {}]
  %s6 = inlined_call_operand.<no memory space> [shape: f32[1,1], index: 6, kind: input, shape index: {}]
  %s7 = inlined_call_operand.vmem [shape: f32[2,1], index: 7, kind: output, shape index: {}]
  %s8 = sld [smem:[#allocation0]]
  $region38: #{net_forward.3} parent=0
    _
  %s10 = ssub.s32 1, %s8
  %s11 = scalar_select 0, %s10, %s8
  %v12 = vstv %s6
  %13 = vst [vmem:[#allocation2] sm:$0x1] %v12
  // Predicated region
  $region2: #{net_forward.3} parent=0 // pred_check
    _
  $region3: #{net_forward.3} parent=0 // pred_check_branch
    %15 = sbr.rel (0) target = $region5
  $region4: #{net_forward.3} parent=0 // pred_region
    _
  $region5: #{net_forward.3} parent=0 // pred_fallthru
    _
  // Predicated region
  $region6: #{net_forward.3} parent=0 // pred_check
    _
  $region7: #{net_forward.3} parent=0 // pred_check_branch
    %17 = sbr.rel (0) target = $region9
  $region8: #{net_forward.3} parent=0 // pred_region
    _
  $region9: #{net_forward.3} parent=0 // pred_fallthru
    _
  // Predicated region
  $region10: #{net_forward.3} parent=0 // pred_check
    _
  $region11: #{net_forward.3} parent=0 // pred_check_branch
    %19 = sbr.rel (0) target = $region13
  $region12: #{net_forward.3} parent=0 // pred_region
    _
  $region13: #{net_forward.3} parent=0 // pred_fallthru
    _
  // Predicated region
  $region14: #{net_forward.3} parent=0 // pred_check
    _
  $region15: #{net_forward.3} parent=0 // pred_check_branch
    %21 = sbr.rel (0) target = $region17
  $region16: #{net_forward.3} parent=0 // pred_region
    _
  $region17: #{net_forward.3} parent=0 // pred_fallthru
    _
  // Predicated region
  $region18: #{net_forward.3} parent=0 // pred_check
    _
  $region19: #{net_forward.3} parent=0 // pred_check_branch
    %23 = sbr.rel (0) target = $region21
  $region20: #{net_forward.3} parent=0 // pred_region
    _
  $region21: #{net_forward.3} parent=0 // pred_fallthru
    _
  // Predicated region
  $region22: #{net_forward.3} parent=0 // pred_check
    _
  $region23: #{net_forward.3} parent=0 // pred_check_branch
    %25 = sbr.rel (0) target = $region25
  $region24: #{net_forward.3} parent=0 // pred_region
    _
  $region25: #{net_forward.3} parent=0 // pred_fallthru
    _
  // Predicated region
  $region26: #{net_forward.3} parent=0 // pred_check
    _
  $region27: #{net_forward.3} parent=0 // pred_check_branch
    %27 = sbr.rel (0) target = $region29
  $region28: #{net_forward.3} parent=0 // pred_region
    _
  $region29: #{net_forward.3} parent=0 // pred_fallthru
    _
  %v29 = vld [vmem:[%s0] sm:$0xff]
  %v30 = vld [vmem:[%s0 + $0x8] sm:$0xff]
  %v31 = vld [vmem:[%s0 + $0x10] sm:$0x3f]
  %v32 = vld [vmem:[%s1] sm:$0xf]
  %v33 = vld [vmem:[%s1 + $0x4] sm:$0xf]
  %v34 = vld [vmem:[%s1 + $0x8] sm:$0xf]
  %v35 = vld [vmem:[%s1 + $0xc] sm:$0xf]
  %v36 = vld [vmem:[%s1 + $0x10] sm:$0xf]
  %v37 = vld [vmem:[%s1 + $0x14] sm:$0xf]
  %v38 = vld [vmem:[%s1 + $0x18] sm:$0xf]
  %v39 = vld [vmem:[%s1 + $0x1c] sm:$0xf]
  %v40 = vld [vmem:[%s1 + $0x20] sm:$0xf]
  %v41 = vld [vmem:[%s1 + $0x24] sm:$0xf]
  %v42 = vld [vmem:[%s1 + $0x28] sm:$0xf]
  %v43 = vld [vmem:[%s1 + $0x2c] sm:$0xf]
  %v44 = vld [vmem:[%s1 + $0x30] sm:$0xf]
  %v45 = vld [vmem:[%s1 + $0x34] sm:$0xf]
  %v46 = vld [vmem:[%s1 + $0x38] sm:$0xf]
  %v47 = vld [vmem:[%s1 + $0x3c] sm:$0xf]
  %v48 = vld [vmem:[%s1 + $0x40] sm:$0xf]
  %v49 = vld [vmem:[%s1 + $0x44] sm:$0xf]
  %v50 = vld [vmem:[%s1 + $0x48] sm:$0xf]
  %v51 = vld [vmem:[%s1 + $0x4c] sm:$0xf]
  %v52 = vld [vmem:[%s1 + $0x50] sm:$0xf]
  %v53 = vld [vmem:[%s1 + $0x54] sm:$0xf]
  %v54 = vld [vmem:[%s1 + $0x58] sm:$0xf]
  %v55 = vld [vmem:[%s1 + $0x5c] sm:$0xf]
  %v56 = vld [vmem:[%s1 + $0x60] sm:$0xf]
  %v57 = vld [vmem:[%s1 + $0x64] sm:$0xf]
  %v58 = vld [vmem:[%s1 + $0x68] sm:$0xf]
  %v59 = vld [vmem:[%s1 + $0x6c] sm:$0xf]
  %v60 = vld [vmem:[%s1 + $0x70] sm:$0xf]
  %v61 = vld [vmem:[%s1 + $0x74] sm:$0xf]
  %v62 = vld [vmem:[%s1 + $0x78] sm:$0xf]
  %v63 = vld [vmem:[%s1 + $0x7c] sm:$0xf]
  %v64 = vld [vmem:[%s1 + $0x80] sm:$0xf]
  %v65 = vld [vmem:[%s1 + $0x84] sm:$0xf]
  %v66 = vld [vmem:[%s1 + $0x88] sm:$0xf]
  %v67 = vld [vmem:[%s1 + $0x8c] sm:$0xf]
  %v68 = vld [vmem:[%s1 + $0x90] sm:$0xf]
  %v69 = vld [vmem:[%s1 + $0x94] sm:$0xf]
  %v70 = vld [vmem:[%s1 + $0x98] sm:$0xf]
  %v71 = vld [vmem:[%s1 + $0x9c] sm:$0xf]
  %v72 = vld [vmem:[%s1 + $0xa0] sm:$0xf]
  %v73 = vld [vmem:[%s1 + $0xa4] sm:$0xf]
  %v74 = vld [vmem:[%s1 + $0xa8] sm:$0xf]
  %v75 = vld [vmem:[%s1 + $0xac] sm:$0xf]
  %v76 = vld [vmem:[%s1 + $0xb0] sm:$0xf]
  %v77 = vld [vmem:[%s1 + $0xb4] sm:$0xf]
  %v78 = vld [vmem:[%s1 + $0xb8] sm:$0xf]
  %v79 = vld [vmem:[%s1 + $0xbc] sm:$0xf]
  %v80 = vld [vmem:[%s1 + $0xc0] sm:$0xf]
  %v81 = vld [vmem:[%s1 + $0xc4] sm:$0xf]
  %v82 = vld [vmem:[%s1 + $0xc8] sm:$0xf]
  %v83 = vld [vmem:[%s1 + $0xcc] sm:$0xf]
  %v84 = vld [vmem:[%s1 + $0xd0] sm:$0xf]
  %v85 = vld [vmem:[%s1 + $0xd4] sm:$0xf]
  %v86 = vld [vmem:[%s1 + $0xd8] sm:$0xf]
  %v87 = vld [vmem:[%s1 + $0xdc] sm:$0xf]
  %v88 = vld [vmem:[%s1 + $0xe0] sm:$0xf]
  %v89 = vld [vmem:[%s1 + $0xe4] sm:$0xf]
  %v90 = vld [vmem:[%s1 + $0xe8] sm:$0xf]
  %v91 = vld [vmem:[%s1 + $0xec] sm:$0xf]
  %v92 = vld [vmem:[%s1 + $0xf0] sm:$0xf]
  %v93 = vld [vmem:[%s1 + $0xf4] sm:$0xf]
  %v94 = vld [vmem:[%s1 + $0xf8] sm:$0xf]
  %v95 = vld [vmem:[%s1 + $0xfc] sm:$0xf]
  %v96 = vld [vmem:[%s1 + $0x100] sm:$0xf]
  %v97 = vld [vmem:[%s1 + $0x104] sm:$0xf]
  %v98 = vld [vmem:[%s1 + $0x108] sm:$0xf]
  %v99 = vld [vmem:[%s1 + $0x10c] sm:$0xf]
  %v100 = vld [vmem:[%s1 + $0x110] sm:$0xf]
  %v101 = vld [vmem:[%s1 + $0x114] sm:$0xf]
  %v102 = vld [vmem:[%s1 + $0x118] sm:$0xf]
  %v103 = vld [vmem:[%s1 + $0x11c] sm:$0xf]
  %v104 = vld [vmem:[%s1 + $0x120] sm:$0xf]
  %v105 = vld [vmem:[%s1 + $0x124] sm:$0xf]
  %v106 = vld [vmem:[%s1 + $0x128] sm:$0xf]
  %v107 = vld [vmem:[%s1 + $0x12c] sm:$0xf]
  %v108 = vld [vmem:[%s1 + $0x130] sm:$0xf]
  %v109 = vld [vmem:[%s1 + $0x134] sm:$0xf]
  %v110 = vld [vmem:[%s1 + $0x138] sm:$0xf]
  %v111 = vld [vmem:[%s1 + $0x13c] sm:$0xf]
  %v112 = vld [vmem:[%s1 + $0x140] sm:$0xf]
  %v113 = vld [vmem:[%s1 + $0x144] sm:$0xf]
  %v114 = vld [vmem:[%s1 + $0x148] sm:$0xf]
  %v115 = vld [vmem:[%s1 + $0x14c] sm:$0xf]
  %v116 = vld [vmem:[%s1 + $0x150] sm:$0xf]
  %v117 = vld [vmem:[%s1 + $0x154] sm:$0xf]
  %v118 = vld [vmem:[%s1 + $0x158] sm:$0xf]
  %v119 = vld [vmem:[%s1 + $0x15c] sm:$0xf]
  %v120 = vld [vmem:[%s1 + $0x160] sm:$0xf]
  %v121 = vld [vmem:[%s1 + $0x164] sm:$0xf]
  %v122 = vld [vmem:[%s1 + $0x168] sm:$0xf]
  %v123 = vld [vmem:[%s1 + $0x16c] sm:$0xf]
  %v124 = vld [vmem:[%s1 + $0x170] sm:$0xf]
  %v125 = vld [vmem:[%s1 + $0x174] sm:$0xf]
  %v126 = vld [vmem:[%s1 + $0x178] sm:$0xf]
  %v127 = vld [vmem:[%s1 + $0x17c] sm:$0xf]
  %v128 = vld [vmem:[%s1 + $0x180] sm:$0xf]
  %v129 = vld [vmem:[%s1 + $0x184] sm:$0xf]
  %v130 = vld [vmem:[%s1 + $0x188] sm:$0xf]
  %v131 = vld [vmem:[%s1 + $0x18c] sm:$0xf]
  %v132 = vld [vmem:[%s1 + $0x190] sm:$0xf]
  %v133 = vld [vmem:[%s1 + $0x194] sm:$0xf]
  %v134 = vld [vmem:[%s1 + $0x198] sm:$0xf]
  %v135 = vld [vmem:[%s1 + $0x19c] sm:$0xf]
  %v136 = vld [vmem:[%s1 + $0x1a0] sm:$0xf]
  %v137 = vld [vmem:[%s1 + $0x1a4] sm:$0xf]
  %v138 = vld [vmem:[%s1 + $0x1a8] sm:$0xf]
  %v139 = vld [vmem:[%s1 + $0x1ac] sm:$0xf]
  %v140 = vld [vmem:[%s1 + $0x1b0] sm:$0xf]
  %v141 = vld [vmem:[%s1 + $0x1b4] sm:$0xf]
  %v142 = vld [vmem:[%s1 + $0x1b8] sm:$0xf]
  %v143 = vld [vmem:[%s1 + $0x1bc] sm:$0xf]
  %v144 = vld [vmem:[%s1 + $0x1c0] sm:$0xf]
  %v145 = vld [vmem:[%s1 + $0x1c4] sm:$0xf]
  %v146 = vld [vmem:[%s1 + $0x1c8] sm:$0xf]
  %v147 = vld [vmem:[%s1 + $0x1cc] sm:$0xf]
  %v148 = vld [vmem:[%s1 + $0x1d0] sm:$0xf]
  %v149 = vld [vmem:[%s1 + $0x1d4] sm:$0xf]
  %v150 = vld [vmem:[%s1 + $0x1d8] sm:$0xf]
  %v151 = vld [vmem:[%s1 + $0x1dc] sm:$0xf]
  %v152 = vld [vmem:[%s1 + $0x1e0] sm:$0xf]
  %v153 = vld [vmem:[%s1 + $0x1e4] sm:$0xf]
  %v154 = vld [vmem:[%s1 + $0x1e8] sm:$0xf]
  %v155 = vld [vmem:[%s1 + $0x1ec] sm:$0xf]
  %v156 = vld [vmem:[%s1 + $0x1f0] sm:$0xf]
  %v157 = vld [vmem:[%s1 + $0x1f4] sm:$0xf]
  %v158 = vld [vmem:[%s1 + $0x1f8] sm:$0xf]
  %v159 = vld [vmem:[%s1 + $0x1fc] sm:$0xf]
  %v160 = vld [vmem:[%s1 + $0x200] sm:$0xf]
  %v161 = vld [vmem:[%s1 + $0x204] sm:$0xf]
  %v162 = vld [vmem:[%s1 + $0x208] sm:$0xf]
  %v163 = vld [vmem:[%s1 + $0x20c] sm:$0xf]
  %v164 = vld [vmem:[%s1 + $0x210] sm:$0xf]
  %v165 = vld [vmem:[%s1 + $0x214] sm:$0xf]
  %v166 = vld [vmem:[%s1 + $0x218] sm:$0xf]
  %v167 = vld [vmem:[%s1 + $0x21c] sm:$0xf]
  %v168 = vld [vmem:[%s1 + $0x220] sm:$0xf]
  %v169 = vld [vmem:[%s1 + $0x224] sm:$0xf]
  %v170 = vld [vmem:[%s1 + $0x228] sm:$0xf]
  %v171 = vld [vmem:[%s1 + $0x22c] sm:$0xf]
  %v172 = vld [vmem:[%s1 + $0x230] sm:$0xf]
  %v173 = vld [vmem:[%s1 + $0x234] sm:$0xf]
  %v174 = vld [vmem:[%s1 + $0x238] sm:$0xf]
  %v175 = vld [vmem:[%s1 + $0x23c] sm:$0xf]
  %v176 = vld [vmem:[%s1 + $0x240] sm:$0xf]
  %v177 = vld [vmem:[%s1 + $0x244] sm:$0xf]
  %v178 = vld [vmem:[%s1 + $0x248] sm:$0xf]
  %v179 = vld [vmem:[%s1 + $0x24c] sm:$0xf]
  %v180 = vld [vmem:[%s1 + $0x250] sm:$0xf]
  %v181 = vld [vmem:[%s1 + $0x254] sm:$0xf]
  %v182 = vld [vmem:[%s1 + $0x258] sm:$0xf]
  %v183 = vld [vmem:[%s1 + $0x25c] sm:$0xf]
  %v184 = vld [vmem:[%s1 + $0x260] sm:$0xf]
  %v185 = vld [vmem:[%s1 + $0x264] sm:$0xf]
  %v186 = vld [vmem:[%s1 + $0x268] sm:$0xf]
  %v187 = vld [vmem:[%s1 + $0x26c] sm:$0xf]
  %v188 = vld [vmem:[%s1 + $0x270] sm:$0xf]
  %v189 = vld [vmem:[%s1 + $0x274] sm:$0xf]
  %v190 = vld [vmem:[%s1 + $0x278] sm:$0xf]
  %v191 = vld [vmem:[%s1 + $0x27c] sm:$0xf]
  %v192 = vld [vmem:[%s1 + $0x280] sm:$0xf]
  %v193 = vld [vmem:[%s1 + $0x284] sm:$0xf]
  %v194 = vld [vmem:[%s1 + $0x288] sm:$0xf]
  %v195 = vld [vmem:[%s1 + $0x28c] sm:$0xf]
  %v196 = vld [vmem:[%s1 + $0x290] sm:$0xf]
  %v197 = vld [vmem:[%s1 + $0x294] sm:$0xf]
  %v198 = vld [vmem:[%s1 + $0x298] sm:$0xf]
  %v199 = vld [vmem:[%s1 + $0x29c] sm:$0xf]
  %v200 = vld [vmem:[%s1 + $0x2a0] sm:$0xf]
  %v201 = vld [vmem:[%s1 + $0x2a4] sm:$0xf]
  %v202 = vld [vmem:[%s1 + $0x2a8] sm:$0xf]
  %v203 = vld [vmem:[%s1 + $0x2ac] sm:$0xf]
  %v204 = vld [vmem:[%s1 + $0x2b0] sm:$0xf]
  %v205 = vld [vmem:[%s1 + $0x2b4] sm:$0xf]
  %v206 = vld [vmem:[%s1 + $0x2b8] sm:$0xf]
  %v207 = vld [vmem:[%s1 + $0x2bc] sm:$0xf]
  %v208 = vld [vmem:[%s1 + $0x2c0] sm:$0xf]
  %v209 = vld [vmem:[%s1 + $0x2c4] sm:$0xf]
  %v210 = vld [vmem:[%s1 + $0x2c8] sm:$0xf]
  %v211 = vld [vmem:[%s1 + $0x2cc] sm:$0xf]
  %v212 = vld [vmem:[%s1 + $0x2d0] sm:$0xf]
  %v213 = vld [vmem:[%s1 + $0x2d4] sm:$0xf]
  %v214 = vld [vmem:[%s1 + $0x2d8] sm:$0xf]
  %v215 = vld [vmem:[%s1 + $0x2dc] sm:$0xf]
  %v216 = vld [vmem:[%s1 + $0x2e0] sm:$0xf]
  %v217 = vld [vmem:[%s1 + $0x2e4] sm:$0xf]
  %v218 = vld [vmem:[%s1 + $0x2e8] sm:$0xf]
  %v219 = vld [vmem:[%s1 + $0x2ec] sm:$0xf]
  %v220 = vld [vmem:[%s1 + $0x2f0] sm:$0xf]
  %v221 = vld [vmem:[%s1 + $0x2f4] sm:$0xf]
  %v222 = vld [vmem:[%s1 + $0x2f8] sm:$0xf]
  %v223 = vld [vmem:[%s1 + $0x2fc] sm:$0xf]
  %v224 = vld [vmem:[%s1 + $0x300] sm:$0xf]
  %v225 = vld [vmem:[%s1 + $0x304] sm:$0xf]
  %v226 = vld [vmem:[%s1 + $0x308] sm:$0xf]
  %v227 = vld [vmem:[%s1 + $0x30c] sm:$0xf]
  %v228 = vld [vmem:[%s1 + $0x310] sm:$0xf]
  %v229 = vld [vmem:[%s1 + $0x314] sm:$0xf]
  %v230 = vld [vmem:[%s1 + $0x318] sm:$0xf]
  %v231 = vld [vmem:[%s1 + $0x31c] sm:$0xf]
  %v232 = vld [vmem:[%s1 + $0x320] sm:$0xf]
  %v233 = vld [vmem:[%s1 + $0x324] sm:$0xf]
  %v234 = vld [vmem:[%s1 + $0x328] sm:$0xf]
  %v235 = vld [vmem:[%s1 + $0x32c] sm:$0xf]
  %v236 = vld [vmem:[%s1 + $0x330] sm:$0xf]
  %v237 = vld [vmem:[%s1 + $0x334] sm:$0xf]
  %v238 = vld [vmem:[%s1 + $0x338] sm:$0xf]
  %v239 = vld [vmem:[%s1 + $0x33c] sm:$0xf]
  %v240 = vld [vmem:[%s1 + $0x340] sm:$0xf]
  %v241 = vld [vmem:[%s1 + $0x344] sm:$0xf]
  %v242 = vld [vmem:[%s1 + $0x348] sm:$0xf]
  %v243 = vld [vmem:[%s1 + $0x34c] sm:$0xf]
  %v244 = vld [vmem:[%s1 + $0x350] sm:$0xf]
  %v245 = vld [vmem:[%s1 + $0x354] sm:$0xf]
  %v246 = vld [vmem:[%s1 + $0x358] sm:$0xf]
  %v247 = vld [vmem:[%s1 + $0x35c] sm:$0xf]
  %v248 = vld [vmem:[%s1 + $0x360] sm:$0xf]
  %v249 = vld [vmem:[%s1 + $0x364] sm:$0xf]
  %v250 = vld [vmem:[%s1 + $0x368] sm:$0xf]
  %v251 = vld [vmem:[%s1 + $0x36c] sm:$0xf]
  %v252 = vld [vmem:[%s1 + $0x370] sm:$0xf]
  %v253 = vld [vmem:[%s1 + $0x374] sm:$0xf]
  %v254 = vld [vmem:[%s1 + $0x378] sm:$0xf]
  %v255 = vld [vmem:[%s1 + $0x37c] sm:$0xf]
  %v256 = vld [vmem:[%s1 + $0x380] sm:$0xf]
  %v257 = vld [vmem:[%s1 + $0x384] sm:$0xf]
  %v258 = vld [vmem:[%s1 + $0x388] sm:$0xf]
  %v259 = vld [vmem:[%s1 + $0x38c] sm:$0xf]
  %v260 = vld [vmem:[%s1 + $0x390] sm:$0xf]
  %v261 = vld [vmem:[%s1 + $0x394] sm:$0xf]
  %v262 = vld [vmem:[%s1 + $0x398] sm:$0xf]
  %v263 = vld [vmem:[%s1 + $0x39c] sm:$0xf]
  %v264 = vld [vmem:[%s1 + $0x3a0] sm:$0xf]
  %v265 = vld [vmem:[%s1 + $0x3a4] sm:$0xf]
  %v266 = vld [vmem:[%s1 + $0x3a8] sm:$0xf]
  %v267 = vld [vmem:[%s1 + $0x3ac] sm:$0xf]
  %v268 = vld [vmem:[%s1 + $0x3b0] sm:$0xf]
  %v269 = vld [vmem:[%s1 + $0x3b4] sm:$0xf]
  %v270 = vld [vmem:[%s1 + $0x3b8] sm:$0xf]
  %v271 = vld [vmem:[%s1 + $0x3bc] sm:$0xf]
  %v272 = vld [vmem:[%s1 + $0x3c0] sm:$0xf]
  %v273 = vld [vmem:[%s1 + $0x3c4] sm:$0xf]
  %v274 = vld [vmem:[%s1 + $0x3c8] sm:$0xf]
  %v275 = vld [vmem:[%s1 + $0x3cc] sm:$0xf]
  %v276 = vld [vmem:[%s1 + $0x3d0] sm:$0xf]
  %v277 = vld [vmem:[%s1 + $0x3d4] sm:$0xf]
  %v278 = vld [vmem:[%s1 + $0x3d8] sm:$0xf]
  %v279 = vld [vmem:[%s1 + $0x3dc] sm:$0xf]
  %v280 = vld [vmem:[%s1 + $0x3e0] sm:$0xf]
  %v281 = vld [vmem:[%s1 + $0x3e4] sm:$0xf]
  %v282 = vld [vmem:[%s1 + $0x3e8] sm:$0xf]
  %v283 = vld [vmem:[%s1 + $0x3ec] sm:$0xf]
  %v284 = vld [vmem:[%s1 + $0x3f0] sm:$0xf]
  %v285 = vld [vmem:[%s1 + $0x3f4] sm:$0xf]
  %v286 = vld [vmem:[%s1 + $0x3f8] sm:$0xf]
  %v287 = vld [vmem:[%s1 + $0x3fc] sm:$0xf]
  %v288 = vld [vmem:[%s1 + $0x400] sm:$0xf]
  %v289 = vld [vmem:[%s1 + $0x404] sm:$0xf]
  %v290 = vld [vmem:[%s1 + $0x408] sm:$0xf]
  %v291 = vld [vmem:[%s1 + $0x40c] sm:$0xf]
  %v292 = vld [vmem:[%s1 + $0x410] sm:$0xf]
  %v293 = vld [vmem:[%s1 + $0x414] sm:$0xf]
  %v294 = vld [vmem:[%s1 + $0x418] sm:$0xf]
  %v295 = vld [vmem:[%s1 + $0x41c] sm:$0xf]
  %v296 = vld [vmem:[%s1 + $0x420] sm:$0xf]
  %v297 = vld [vmem:[%s1 + $0x424] sm:$0xf]
  %v298 = vld [vmem:[%s1 + $0x428] sm:$0xf]
  %v299 = vld [vmem:[%s1 + $0x42c] sm:$0xf]
  %v300 = vld [vmem:[%s1 + $0x430] sm:$0xf]
  %v301 = vld [vmem:[%s1 + $0x434] sm:$0xf]
  %v302 = vld [vmem:[%s1 + $0x438] sm:$0xf]
  %v303 = vld [vmem:[%s1 + $0x43c] sm:$0xf]
  %v304 = vld [vmem:[%s1 + $0x440] sm:$0xf]
  %v305 = vld [vmem:[%s1 + $0x444] sm:$0xf]
  %v306 = vld [vmem:[%s1 + $0x448] sm:$0xf]
  %v307 = vld [vmem:[%s1 + $0x44c] sm:$0xf]
  %v308 = vld [vmem:[%s1 + $0x450] sm:$0xf]
  %v309 = vld [vmem:[%s1 + $0x454] sm:$0xf]
  %v310 = vld [vmem:[%s1 + $0x458] sm:$0xf]
  %v311 = vld [vmem:[%s1 + $0x45c] sm:$0xf]
  %v312 = vld [vmem:[%s1 + $0x460] sm:$0xf]
  %v313 = vld [vmem:[%s1 + $0x464] sm:$0xf]
  %v314 = vld [vmem:[%s1 + $0x468] sm:$0xf]
  %v315 = vld [vmem:[%s1 + $0x46c] sm:$0xf]
  %v316 = vld [vmem:[%s1 + $0x470] sm:$0xf]
  %v317 = vld [vmem:[%s1 + $0x474] sm:$0xf]
  %v318 = vld [vmem:[%s1 + $0x478] sm:$0xf]
  %v319 = vld [vmem:[%s1 + $0x47c] sm:$0xf]
  %v320 = vld [vmem:[%s1 + $0x480] sm:$0xf]
  %v321 = vld [vmem:[%s1 + $0x484] sm:$0xf]
  %v322 = vld [vmem:[%s1 + $0x488] sm:$0xf]
  %v323 = vld [vmem:[%s1 + $0x48c] sm:$0xf]
  %v324 = vld [vmem:[%s1 + $0x490] sm:$0xf]
  %v325 = vld [vmem:[%s1 + $0x494] sm:$0xf]
  %v326 = vld [vmem:[%s1 + $0x498] sm:$0xf]
  %v327 = vld [vmem:[%s1 + $0x49c] sm:$0xf]
  %v328 = vld [vmem:[%s1 + $0x4a0] sm:$0xf]
  %v329 = vld [vmem:[%s1 + $0x4a4] sm:$0xf]
  %v330 = vld [vmem:[%s1 + $0x4a8] sm:$0xf]
  %v331 = vld [vmem:[%s1 + $0x4ac] sm:$0xf]
  %v332 = vld [vmem:[%s1 + $0x4b0] sm:$0xf]
  %v333 = vld [vmem:[%s1 + $0x4b4] sm:$0xf]
  %v334 = vld [vmem:[%s1 + $0x4b8] sm:$0xf]
  %v335 = vld [vmem:[%s1 + $0x4bc] sm:$0xf]
  %v336 = vld [vmem:[%s1 + $0x4c0] sm:$0xf]
  %v337 = vld [vmem:[%s1 + $0x4c4] sm:$0xf]
  %v338 = vld [vmem:[%s1 + $0x4c8] sm:$0xf]
  %v339 = vld [vmem:[%s1 + $0x4cc] sm:$0xf]
  %v340 = vld [vmem:[%s1 + $0x4d0] sm:$0xf]
  %v341 = vld [vmem:[%s1 + $0x4d4] sm:$0xf]
  %v342 = vld [vmem:[%s1 + $0x4d8] sm:$0xf]
  %v343 = vld [vmem:[%s1 + $0x4dc] sm:$0xf]
  %v344 = vld [vmem:[%s1 + $0x4e0] sm:$0xf]
  %v345 = vld [vmem:[%s1 + $0x4e4] sm:$0xf]
  %v346 = vld [vmem:[%s1 + $0x4e8] sm:$0xf]
  %v347 = vld [vmem:[%s1 + $0x4ec] sm:$0xf]
  %v348 = vld [vmem:[%s1 + $0x4f0] sm:$0xf]
  %v349 = vld [vmem:[%s1 + $0x4f4] sm:$0xf]
  %v350 = vld [vmem:[%s1 + $0x4f8] sm:$0xf]
  %v351 = vld [vmem:[%s1 + $0x4fc] sm:$0xf]
  %v352 = vld [vmem:[%s1 + $0x500] sm:$0xf]
  %v353 = vld [vmem:[%s1 + $0x504] sm:$0xf]
  %v354 = vld [vmem:[%s1 + $0x508] sm:$0xf]
  %v355 = vld [vmem:[%s1 + $0x50c] sm:$0xf]
  %v356 = vld [vmem:[%s1 + $0x510] sm:$0xf]
  %v357 = vld [vmem:[%s1 + $0x514] sm:$0xf]
  %v358 = vld [vmem:[%s1 + $0x518] sm:$0xf]
  %v359 = vld [vmem:[%s1 + $0x51c] sm:$0xf]
  %v360 = vld [vmem:[%s1 + $0x520] sm:$0xf]
  %v361 = vld [vmem:[%s1 + $0x524] sm:$0xf]
  %v362 = vld [vmem:[%s1 + $0x528] sm:$0xf]
  %v363 = vld [vmem:[%s1 + $0x52c] sm:$0xf]
  %v364 = vld [vmem:[%s1 + $0x530] sm:$0xf]
  %v365 = vld [vmem:[%s1 + $0x534] sm:$0xf]
  %v366 = vld [vmem:[%s1 + $0x538] sm:$0xf]
  %v367 = vld [vmem:[%s1 + $0x53c] sm:$0xf]
  %v368 = vld [vmem:[%s1 + $0x540] sm:$0xf]
  %v369 = vld [vmem:[%s1 + $0x544] sm:$0xf]
  %v370 = vld [vmem:[%s1 + $0x548] sm:$0xf]
  %v371 = vld [vmem:[%s1 + $0x54c] sm:$0xf]
  %v372 = vld [vmem:[%s1 + $0x550] sm:$0xf]
  %v373 = vld [vmem:[%s1 + $0x554] sm:$0xf]
  %v374 = vld [vmem:[%s1 + $0x558] sm:$0xf]
  %v375 = vld [vmem:[%s2] sm:$0x1]
  %v377 = vlaneseq
  %v378 = vshrl.u32 %v377, 7
  %v379 = vsub.s32 0, %v378
  %v380 = vrot.slane %v375, %v379
  %v385 = vcombine.high %v29, %v29
  %v387 = vunpack.c.l.s4 1966171168
  %v388 = vunpack.c.0.s8 %v387
  %v389 = vlaneseq
  %v390 = vshrl.u32 %v389, 7
  %v391 = vsub.s32 %v388, %v390
  %v392 = vrot.slane %v29, %v391
  %v394 = vunpack.c.l.s4 1966171168
  %v395 = vunpack.c.0.s8 %v394
  %v396 = vlaneseq
  %v397 = vshrl.u32 %v396, 7
  %v398 = vsub.s32 %v395, %v397
  %v399 = vrot.slane %v385, %v398
  %v400 = vcombine.high %v392, %v392
  %v401 = vcombine.high %v399, %v399
  %v403 = vunpack.c.l.s4 1966171168
  %v404 = vunpack.c.0.s8 %v403
  %v405 = vlaneseq
  %v406 = vshrl.u32 %v405, 7
  %v407 = vsub.s32 %v404, %v406
  %v408 = vrot.slane %v392, %v407
  %v410 = vunpack.c.l.s4 1966171168
  %v411 = vunpack.c.0.s8 %v410
  %v412 = vlaneseq
  %v413 = vshrl.u32 %v412, 7
  %v414 = vsub.s32 %v411, %v413
  %v415 = vrot.slane %v399, %v414
  %v417 = vunpack.c.l.s4 1966171168
  %v418 = vunpack.c.0.s8 %v417
  %v419 = vlaneseq
  %v420 = vshrl.u32 %v419, 7
  %v421 = vsub.s32 %v418, %v420
  %v422 = vrot.slane %v400, %v421
  %v424 = vunpack.c.l.s4 1966171168
  %v425 = vunpack.c.0.s8 %v424
  %v426 = vlaneseq
  %v427 = vshrl.u32 %v426, 7
  %v428 = vsub.s32 %v425, %v427
  %v429 = vrot.slane %v401, %v428
  %v430 = vcombine.high %v408, %v408
  %v431 = vcombine.high %v415, %v415
  %v432 = vcombine.high %v422, %v422
  %v433 = vcombine.high %v429, %v429
  %v434 = vcombine.high %v30, %v30
  %v436 = vunpack.c.l.s4 1966171168
  %v437 = vunpack.c.0.s8 %v436
  %v438 = vlaneseq
  %v439 = vshrl.u32 %v438, 7
  %v440 = vsub.s32 %v437, %v439
  %v441 = vrot.slane %v30, %v440
  %v443 = vunpack.c.l.s4 1966171168
  %v444 = vunpack.c.0.s8 %v443
  %v445 = vlaneseq
  %v446 = vshrl.u32 %v445, 7
  %v447 = vsub.s32 %v444, %v446
  %v448 = vrot.slane %v434, %v447
  %v449 = vcombine.high %v441, %v441
  %v450 = vcombine.high %v448, %v448
  %v452 = vunpack.c.l.s4 1966171168
  %v453 = vunpack.c.0.s8 %v452
  %v454 = vlaneseq
  %v455 = vshrl.u32 %v454, 7
  %v456 = vsub.s32 %v453, %v455
  %v457 = vrot.slane %v441, %v456
  %v459 = vunpack.c.l.s4 1966171168
  %v460 = vunpack.c.0.s8 %v459
  %v461 = vlaneseq
  %v462 = vshrl.u32 %v461, 7
  %v463 = vsub.s32 %v460, %v462
  %v464 = vrot.slane %v448, %v463
  %v466 = vunpack.c.l.s4 1966171168
  %v467 = vunpack.c.0.s8 %v466
  %v468 = vlaneseq
  %v469 = vshrl.u32 %v468, 7
  %v470 = vsub.s32 %v467, %v469
  %v471 = vrot.slane %v449, %v470
  %v473 = vunpack.c.l.s4 1966171168
  %v474 = vunpack.c.0.s8 %v473
  %v475 = vlaneseq
  %v476 = vshrl.u32 %v475, 7
  %v477 = vsub.s32 %v474, %v476
  %v478 = vrot.slane %v450, %v477
  %v479 = vcombine.high %v457, %v457
  %v480 = vcombine.high %v464, %v464
  %v481 = vcombine.high %v471, %v471
  %v482 = vcombine.high %v478, %v478
  %v483 = vcombine.high %v31, %v31
  %v485 = vunpack.c.l.s4 1966171168
  %v486 = vunpack.c.0.s8 %v485
  %v487 = vlaneseq
  %v488 = vshrl.u32 %v487, 7
  %v489 = vsub.s32 %v486, %v488
  %v490 = vrot.slane %v31, %v489
  %v492 = vunpack.c.l.s4 1966171168
  %v493 = vunpack.c.0.s8 %v492
  %v494 = vlaneseq
  %v495 = vshrl.u32 %v494, 7
  %v496 = vsub.s32 %v493, %v495
  %v497 = vrot.slane %v483, %v496
  %v498 = vcombine.high %v490, %v490
  %v499 = vcombine.high %v497, %v497
  %v501 = vunpack.c.l.s4 1966171168
  %v502 = vunpack.c.0.s8 %v501
  %v503 = vlaneseq
  %v504 = vshrl.u32 %v503, 7
  %v505 = vsub.s32 %v502, %v504
  %v506 = vrot.slane %v490, %v505
  %v508 = vunpack.c.l.s4 1966171168
  %v509 = vunpack.c.0.s8 %v508
  %v510 = vlaneseq
  %v511 = vshrl.u32 %v510, 7
  %v512 = vsub.s32 %v509, %v511
  %v513 = vrot.slane %v497, %v512
  %v515 = vunpack.c.l.s4 1966171168
  %v516 = vunpack.c.0.s8 %v515
  %v517 = vlaneseq
  %v518 = vshrl.u32 %v517, 7
  %v519 = vsub.s32 %v516, %v518
  %v520 = vrot.slane %v498, %v519
  %v522 = vunpack.c.l.s4 1966171168
  %v523 = vunpack.c.0.s8 %v522
  %v524 = vlaneseq
  %v525 = vshrl.u32 %v524, 7
  %v526 = vsub.s32 %v523, %v525
  %v527 = vrot.slane %v499, %v526
  %v528 = vcombine.high %v506, %v506
  %v529 = vcombine.high %v520, %v520
  %v894 = vunpack.c.l.b16 %v32
  %v895 = vunpack.c.l.b16 %v33
  %v896 = vunpack.c.l.b16 %v34
  %v897 = vunpack.c.l.b16 %v35
  %v898 = vunpack.c.l.b16 %v36
  %v899 = vunpack.c.l.b16 %v37
  %v900 = vunpack.c.l.b16 %v38
  %v901 = vunpack.c.l.b16 %v39
  %v902 = vunpack.c.l.b16 %v40
  %v903 = vunpack.c.l.b16 %v41
  %v904 = vunpack.c.l.b16 %v42
  %v905 = vunpack.c.l.b16 %v43
  %v906 = vunpack.c.l.b16 %v44
  %v907 = vunpack.c.l.b16 %v45
  %v908 = vunpack.c.l.b16 %v46
  %v909 = vunpack.c.l.b16 %v47
  %v910 = vunpack.c.l.b16 %v48
  %v911 = vunpack.c.l.b16 %v49
  %v912 = vunpack.c.l.b16 %v50
  %v913 = vunpack.c.l.b16 %v51
  %v914 = vunpack.c.l.b16 %v52
  %v915 = vunpack.c.l.b16 %v53
  %v916 = vunpack.c.l.b16 %v54
  %v917 = vunpack.c.l.b16 %v55
  %v918 = vunpack.c.l.b16 %v56
  %v919 = vunpack.c.l.b16 %v57
  %v920 = vunpack.c.l.b16 %v58
  %v921 = vunpack.c.l.b16 %v59
  %v922 = vunpack.c.l.b16 %v60
  %v923 = vunpack.c.l.b16 %v61
  %v924 = vunpack.c.l.b16 %v62
  %v925 = vunpack.c.l.b16 %v63
  %v926 = vunpack.c.l.b16 %v64
  %v927 = vunpack.c.l.b16 %v65
  %v928 = vunpack.c.l.b16 %v66
  %v929 = vunpack.c.l.b16 %v67
  %v930 = vunpack.c.l.b16 %v68
  %v931 = vunpack.c.l.b16 %v69
  %v932 = vunpack.c.l.b16 %v70
  %v933 = vunpack.c.l.b16 %v71
  %v934 = vunpack.c.l.b16 %v72
  %v935 = vunpack.c.l.b16 %v73
  %v936 = vunpack.c.l.b16 %v74
  %v937 = vunpack.c.l.b16 %v75
  %v938 = vunpack.c.l.b16 %v76
  %v939 = vunpack.c.l.b16 %v77
  %v940 = vunpack.c.l.b16 %v78
  %v941 = vunpack.c.l.b16 %v79
  %v942 = vunpack.c.l.b16 %v80
  %v943 = vunpack.c.l.b16 %v81
  %v944 = vunpack.c.l.b16 %v82
  %v945 = vunpack.c.l.b16 %v83
  %v946 = vunpack.c.l.b16 %v84
  %v947 = vunpack.c.l.b16 %v85
  %v948 = vunpack.c.l.b16 %v86
  %v949 = vunpack.c.l.b16 %v87
  %v950 = vunpack.c.l.b16 %v88
  %v951 = vunpack.c.l.b16 %v89
  %v952 = vunpack.c.l.b16 %v90
  %v953 = vunpack.c.l.b16 %v91
  %v954 = vunpack.c.l.b16 %v92
  %v955 = vunpack.c.l.b16 %v93
  %v956 = vunpack.c.l.b16 %v94
  %v957 = vunpack.c.l.b16 %v95
  %v958 = vunpack.c.l.b16 %v96
  %v959 = vunpack.c.l.b16 %v97
  %v960 = vunpack.c.l.b16 %v98
  %v961 = vunpack.c.l.b16 %v99
  %v962 = vunpack.c.l.b16 %v100
  %v963 = vunpack.c.l.b16 %v101
  %v964 = vunpack.c.l.b16 %v102
  %v965 = vunpack.c.l.b16 %v103
  %v966 = vunpack.c.l.b16 %v104
  %v967 = vunpack.c.l.b16 %v105
  %v968 = vunpack.c.l.b16 %v106
  %v969 = vunpack.c.l.b16 %v107
  %v970 = vunpack.c.l.b16 %v108
  %v971 = vunpack.c.l.b16 %v109
  %v972 = vunpack.c.l.b16 %v110
  %v973 = vunpack.c.l.b16 %v111
  %v974 = vunpack.c.l.b16 %v112
  %v975 = vunpack.c.l.b16 %v113
  %v976 = vunpack.c.l.b16 %v114
  %v977 = vunpack.c.l.b16 %v115
  %v978 = vunpack.c.l.b16 %v116
  %v979 = vunpack.c.l.b16 %v117
  %v980 = vunpack.c.l.b16 %v118
  %v981 = vunpack.c.l.b16 %v119
  %v982 = vunpack.c.l.b16 %v120
  %v983 = vunpack.c.l.b16 %v121
  %v984 = vunpack.c.l.b16 %v122
  %v985 = vunpack.c.l.b16 %v123
  %v986 = vunpack.c.l.b16 %v124
  %v987 = vunpack.c.l.b16 %v125
  %v988 = vunpack.c.l.b16 %v126
  %v989 = vunpack.c.l.b16 %v127
  %v990 = vunpack.c.l.b16 %v128
  %v991 = vunpack.c.l.b16 %v129
  %v992 = vunpack.c.l.b16 %v130
  %v993 = vunpack.c.l.b16 %v131
  %v994 = vunpack.c.l.b16 %v132
  %v995 = vunpack.c.l.b16 %v133
  %v996 = vunpack.c.l.b16 %v134
  %v997 = vunpack.c.l.b16 %v135
  %v998 = vunpack.c.l.b16 %v136
  %v999 = vunpack.c.l.b16 %v137
  %v1000 = vunpack.c.l.b16 %v138
  %v1001 = vunpack.c.l.b16 %v139
  %v1002 = vunpack.c.l.b16 %v140
  %v1003 = vunpack.c.l.b16 %v141
  %v1004 = vunpack.c.l.b16 %v142
  %v1005 = vunpack.c.l.b16 %v143
  %v1006 = vunpack.c.l.b16 %v144
  %v1007 = vunpack.c.l.b16 %v145
  %v1008 = vunpack.c.l.b16 %v146
  %v1009 = vunpack.c.l.b16 %v147
  %v1010 = vunpack.c.l.b16 %v148
  %v1011 = vunpack.c.l.b16 %v149
  %v1012 = vunpack.c.l.b16 %v150
  %v1013 = vunpack.c.l.b16 %v151
  %v1014 = vunpack.c.l.b16 %v152
  %v1015 = vunpack.c.l.b16 %v153
  %v1016 = vunpack.c.l.b16 %v154
  %v1017 = vunpack.c.l.b16 %v155
  %v1018 = vunpack.c.l.b16 %v156
  %v1019 = vunpack.c.l.b16 %v157
  %v1020 = vunpack.c.l.b16 %v158
  %v1021 = vunpack.c.l.b16 %v159
  %v1022 = vunpack.c.l.b16 %v160
  %v1023 = vunpack.c.l.b16 %v161
  %v1024 = vunpack.c.l.b16 %v162
  %v1025 = vunpack.c.l.b16 %v163
  %v1026 = vunpack.c.l.b16 %v164
  %v1027 = vunpack.c.l.b16 %v165
  %v1028 = vunpack.c.l.b16 %v166
  %v1029 = vunpack.c.l.b16 %v167
  %v1030 = vunpack.c.l.b16 %v168
  %v1031 = vunpack.c.l.b16 %v169
  %v1032 = vunpack.c.l.b16 %v170
  %v1033 = vunpack.c.l.b16 %v171
  %v1034 = vunpack.c.l.b16 %v172
  %v1035 = vunpack.c.l.b16 %v173
  %v1036 = vunpack.c.l.b16 %v174
  %v1037 = vunpack.c.l.b16 %v175
  %v1038 = vunpack.c.l.b16 %v176
  %v1039 = vunpack.c.l.b16 %v177
  %v1040 = vunpack.c.l.b16 %v178
  %v1041 = vunpack.c.l.b16 %v179
  %v1042 = vunpack.c.l.b16 %v180
  %v1043 = vunpack.c.l.b16 %v181
  %v1044 = vunpack.c.l.b16 %v182
  %v1045 = vunpack.c.l.b16 %v183
  %v1046 = vunpack.c.l.b16 %v184
  %v1047 = vunpack.c.l.b16 %v185
  %v1048 = vunpack.c.l.b16 %v186
  %v1049 = vunpack.c.l.b16 %v187
  %v1050 = vunpack.c.l.b16 %v188
  %v1051 = vunpack.c.l.b16 %v189
  %v1052 = vunpack.c.l.b16 %v190
  %v1053 = vunpack.c.l.b16 %v191
  %v1054 = vunpack.c.l.b16 %v192
  %v1055 = vunpack.c.l.b16 %v193
  %v1056 = vunpack.c.l.b16 %v194
  %v1057 = vunpack.c.l.b16 %v195
  %v1058 = vunpack.c.l.b16 %v196
  %v1059 = vunpack.c.l.b16 %v197
  %v1060 = vunpack.c.l.b16 %v198
  %v1061 = vunpack.c.l.b16 %v199
  %v1062 = vunpack.c.l.b16 %v200
  %v1063 = vunpack.c.l.b16 %v201
  %v1064 = vunpack.c.l.b16 %v202
  %v1065 = vunpack.c.l.b16 %v203
  %v1066 = vunpack.c.l.b16 %v204
  %v1067 = vunpack.c.l.b16 %v205
  %v1068 = vunpack.c.l.b16 %v206
  %v1069 = vunpack.c.l.b16 %v207
  %v1070 = vunpack.c.l.b16 %v208
  %v1071 = vunpack.c.l.b16 %v209
  %v1072 = vunpack.c.l.b16 %v210
  %v1073 = vunpack.c.l.b16 %v211
  %v1074 = vunpack.c.l.b16 %v212
  %v1075 = vunpack.c.l.b16 %v213
  %v1076 = vunpack.c.l.b16 %v214
  %v1077 = vunpack.c.l.b16 %v215
  %v1078 = vunpack.c.l.b16 %v216
  %v1079 = vunpack.c.l.b16 %v217
  %v1080 = vunpack.c.l.b16 %v218
  %v1081 = vunpack.c.l.b16 %v219
  %v1082 = vunpack.c.l.b16 %v220
  %v1083 = vunpack.c.l.b16 %v221
  %v1084 = vunpack.c.l.b16 %v222
  %v1085 = vunpack.c.l.b16 %v223
  %v1086 = vunpack.c.l.b16 %v224
  %v1087 = vunpack.c.l.b16 %v225
  %v1088 = vunpack.c.l.b16 %v226
  %v1089 = vunpack.c.l.b16 %v227
  %v1090 = vunpack.c.l.b16 %v228
  %v1091 = vunpack.c.l.b16 %v229
  %v1092 = vunpack.c.l.b16 %v230
  %v1093 = vunpack.c.l.b16 %v231
  %v1094 = vunpack.c.l.b16 %v232
  %v1095 = vunpack.c.l.b16 %v233
  %v1096 = vunpack.c.l.b16 %v234
  %v1097 = vunpack.c.l.b16 %v235
  %v1098 = vunpack.c.l.b16 %v236
  %v1099 = vunpack.c.l.b16 %v237
  %v1100 = vunpack.c.l.b16 %v238
  %v1101 = vunpack.c.l.b16 %v239
  %v1102 = vunpack.c.l.b16 %v240
  %v1103 = vunpack.c.l.b16 %v241
  %v1104 = vunpack.c.l.b16 %v242
  %v1105 = vunpack.c.l.b16 %v243
  %v1106 = vunpack.c.l.b16 %v244
  %v1107 = vunpack.c.l.b16 %v245
  %v1108 = vunpack.c.l.b16 %v246
  %v1109 = vunpack.c.l.b16 %v247
  %v1110 = vunpack.c.l.b16 %v248
  %v1111 = vunpack.c.l.b16 %v249
  %v1112 = vunpack.c.l.b16 %v250
  %v1113 = vunpack.c.l.b16 %v251
  %v1114 = vunpack.c.l.b16 %v252
  %v1115 = vunpack.c.l.b16 %v253
  %v1116 = vunpack.c.l.b16 %v254
  %v1117 = vunpack.c.l.b16 %v255
  %v1118 = vunpack.c.l.b16 %v256
  %v1119 = vunpack.c.l.b16 %v257
  %v1120 = vunpack.c.l.b16 %v258
  %v1121 = vunpack.c.l.b16 %v259
  %v1122 = vunpack.c.l.b16 %v260
  %v1123 = vunpack.c.l.b16 %v261
  %v1124 = vunpack.c.l.b16 %v262
  %v1125 = vunpack.c.l.b16 %v263
  %v1126 = vunpack.c.l.b16 %v264
  %v1127 = vunpack.c.l.b16 %v265
  %v1128 = vunpack.c.l.b16 %v266
  %v1129 = vunpack.c.l.b16 %v267
  %v1130 = vunpack.c.l.b16 %v268
  %v1131 = vunpack.c.l.b16 %v269
  %v1132 = vunpack.c.l.b16 %v270
  %v1133 = vunpack.c.l.b16 %v271
  %v1134 = vunpack.c.l.b16 %v272
  %v1135 = vunpack.c.l.b16 %v273
  %v1136 = vunpack.c.l.b16 %v274
  %v1137 = vunpack.c.l.b16 %v275
  %v1138 = vunpack.c.l.b16 %v276
  %v1139 = vunpack.c.l.b16 %v277
  %v1140 = vunpack.c.l.b16 %v278
  %v1141 = vunpack.c.l.b16 %v279
  %v1142 = vunpack.c.l.b16 %v280
  %v1143 = vunpack.c.l.b16 %v281
  %v1144 = vunpack.c.l.b16 %v282
  %v1145 = vunpack.c.l.b16 %v283
  %v1146 = vunpack.c.l.b16 %v284
  %v1147 = vunpack.c.l.b16 %v285
  %v1148 = vunpack.c.l.b16 %v286
  %v1149 = vunpack.c.l.b16 %v287
  %v1150 = vunpack.c.l.b16 %v288
  %v1151 = vunpack.c.l.b16 %v289
  %v1152 = vunpack.c.l.b16 %v290
  %v1153 = vunpack.c.l.b16 %v291
  %v1154 = vunpack.c.l.b16 %v292
  %v1155 = vunpack.c.l.b16 %v293
  %v1156 = vunpack.c.l.b16 %v294
  %v1157 = vunpack.c.l.b16 %v295
  %v1158 = vunpack.c.l.b16 %v296
  %v1159 = vunpack.c.l.b16 %v297
  %v1160 = vunpack.c.l.b16 %v298
  %v1161 = vunpack.c.l.b16 %v299
  %v1162 = vunpack.c.l.b16 %v300
  %v1163 = vunpack.c.l.b16 %v301
  %v1164 = vunpack.c.l.b16 %v302
  %v1165 = vunpack.c.l.b16 %v303
  %v1166 = vunpack.c.l.b16 %v304
  %v1167 = vunpack.c.l.b16 %v305
  %v1168 = vunpack.c.l.b16 %v306
  %v1169 = vunpack.c.l.b16 %v307
  %v1170 = vunpack.c.l.b16 %v308
  %v1171 = vunpack.c.l.b16 %v309
  %v1172 = vunpack.c.l.b16 %v310
  %v1173 = vunpack.c.l.b16 %v311
  %v1174 = vunpack.c.l.b16 %v312
  %v1175 = vunpack.c.l.b16 %v313
  %v1176 = vunpack.c.l.b16 %v314
  %v1177 = vunpack.c.l.b16 %v315
  %v1178 = vunpack.c.l.b16 %v316
  %v1179 = vunpack.c.l.b16 %v317
  %v1180 = vunpack.c.l.b16 %v318
  %v1181 = vunpack.c.l.b16 %v319
  %v1182 = vunpack.c.l.b16 %v320
  %v1183 = vunpack.c.l.b16 %v321
  %v1184 = vunpack.c.l.b16 %v322
  %v1185 = vunpack.c.l.b16 %v323
  %v1186 = vunpack.c.l.b16 %v324
  %v1187 = vunpack.c.l.b16 %v325
  %v1188 = vunpack.c.l.b16 %v326
  %v1189 = vunpack.c.l.b16 %v327
  %v1190 = vunpack.c.l.b16 %v328
  %v1191 = vunpack.c.l.b16 %v329
  %v1192 = vunpack.c.l.b16 %v330
  %v1193 = vunpack.c.l.b16 %v331
  %v1194 = vunpack.c.l.b16 %v332
  %v1195 = vunpack.c.l.b16 %v333
  %v1196 = vunpack.c.l.b16 %v334
  %v1197 = vunpack.c.l.b16 %v335
  %v1198 = vunpack.c.l.b16 %v336
  %v1199 = vunpack.c.l.b16 %v337
  %v1200 = vunpack.c.l.b16 %v338
  %v1201 = vunpack.c.l.b16 %v339
  %v1202 = vunpack.c.l.b16 %v340
  %v1203 = vunpack.c.l.b16 %v341
  %v1204 = vunpack.c.l.b16 %v342
  %v1205 = vunpack.c.l.b16 %v343
  %v1206 = vunpack.c.l.b16 %v344
  %v1207 = vunpack.c.l.b16 %v345
  %v1208 = vunpack.c.l.b16 %v346
  %v1209 = vunpack.c.l.b16 %v347
  %v1210 = vunpack.c.l.b16 %v348
  %v1211 = vunpack.c.l.b16 %v349
  %v1212 = vunpack.c.l.b16 %v350
  %v1213 = vunpack.c.l.b16 %v351
  %v1214 = vunpack.c.l.b16 %v352
  %v1215 = vunpack.c.l.b16 %v353
  %v1216 = vunpack.c.l.b16 %v354
  %v1217 = vunpack.c.l.b16 %v355
  %v1218 = vunpack.c.l.b16 %v356
  %v1219 = vunpack.c.l.b16 %v357
  %v1220 = vunpack.c.l.b16 %v358
  %v1221 = vunpack.c.l.b16 %v359
  %v1222 = vunpack.c.l.b16 %v360
  %v1223 = vunpack.c.l.b16 %v361
  %v1224 = vunpack.c.l.b16 %v362
  %v1225 = vunpack.c.l.b16 %v363
  %v1226 = vunpack.c.l.b16 %v364
  %v1227 = vunpack.c.l.b16 %v365
  %v1228 = vunpack.c.l.b16 %v366
  %v1229 = vunpack.c.l.b16 %v367
  %v1230 = vunpack.c.l.b16 %v368
  %v1231 = vunpack.c.l.b16 %v369
  %v1232 = vunpack.c.l.b16 %v370
  %v1233 = vunpack.c.l.b16 %v371
  %v1234 = vunpack.c.l.b16 %v372
  %v1235 = vunpack.c.l.b16 %v373
  %v1236 = vunpack.c.l.b16 %v374
  %v1237 = vpack.c.b16 %v895, %v894
  %v1238 = vpack.c.b16 %v897, %v896
  %v1239 = vpack.c.b16 %v899, %v898
  %v1240 = vpack.c.b16 %v901, %v900
  %v1241 = vpack.c.b16 %v903, %v902
  %v1242 = vpack.c.b16 %v905, %v904
  %v1243 = vpack.c.b16 %v907, %v906
  %v1244 = vpack.c.b16 %v909, %v908
  %v1245 = vpack.c.b16 %v911, %v910
  %v1246 = vpack.c.b16 %v913, %v912
  %v1247 = vpack.c.b16 %v915, %v914
  %v1248 = vpack.c.b16 %v917, %v916
  %v1249 = vpack.c.b16 %v919, %v918
  %v1250 = vpack.c.b16 %v921, %v920
  %v1251 = vpack.c.b16 %v923, %v922
  %v1252 = vpack.c.b16 %v925, %v924
  %v1253 = vpack.c.b16 %v927, %v926
  %v1254 = vpack.c.b16 %v929, %v928
  %v1255 = vpack.c.b16 %v931, %v930
  %v1256 = vpack.c.b16 %v933, %v932
  %v1257 = vpack.c.b16 %v935, %v934
  %v1258 = vpack.c.b16 %v937, %v936
  %v1259 = vpack.c.b16 %v939, %v938
  %v1260 = vpack.c.b16 %v941, %v940
  %v1261 = vpack.c.b16 %v943, %v942
  %v1262 = vpack.c.b16 %v945, %v944
  %v1263 = vpack.c.b16 %v947, %v946
  %v1264 = vpack.c.b16 %v949, %v948
  %v1265 = vpack.c.b16 %v951, %v950
  %v1266 = vpack.c.b16 %v953, %v952
  %v1267 = vpack.c.b16 %v955, %v954
  %v1268 = vpack.c.b16 %v957, %v956
  %v1269 = vpack.c.b16 %v959, %v958
  %v1270 = vpack.c.b16 %v961, %v960
  %v1271 = vpack.c.b16 %v963, %v962
  %v1272 = vpack.c.b16 %v965, %v964
  %v1273 = vpack.c.b16 %v967, %v966
  %v1274 = vpack.c.b16 %v969, %v968
  %v1275 = vpack.c.b16 %v971, %v970
  %v1276 = vpack.c.b16 %v973, %v972
  %v1277 = vpack.c.b16 %v975, %v974
  %v1278 = vpack.c.b16 %v977, %v976
  %v1279 = vpack.c.b16 %v979, %v978
  %v1280 = vpack.c.b16 %v981, %v980
  %v1281 = vpack.c.b16 %v983, %v982
  %v1282 = vpack.c.b16 %v985, %v984
  %v1283 = vpack.c.b16 %v987, %v986
  %v1284 = vpack.c.b16 %v989, %v988
  %v1285 = vpack.c.b16 %v991, %v990
  %v1286 = vpack.c.b16 %v993, %v992
  %v1287 = vpack.c.b16 %v995, %v994
  %v1288 = vpack.c.b16 %v997, %v996
  %v1289 = vpack.c.b16 %v999, %v998
  %v1290 = vpack.c.b16 %v1001, %v1000
  %v1291 = vpack.c.b16 %v1003, %v1002
  %v1292 = vpack.c.b16 %v1005, %v1004
  %v1293 = vpack.c.b16 %v1007, %v1006
  %v1294 = vpack.c.b16 %v1009, %v1008
  %v1295 = vpack.c.b16 %v1011, %v1010
  %v1296 = vpack.c.b16 %v1013, %v1012
  %v1297 = vpack.c.b16 %v1015, %v1014
  %v1298 = vpack.c.b16 %v1017, %v1016
  %v1299 = vpack.c.b16 %v1019, %v1018
  %v1300 = vpack.c.b16 %v1021, %v1020
  %v1301 = vpack.c.b16 %v1023, %v1022
  %v1302 = vpack.c.b16 %v1025, %v1024
  %v1303 = vpack.c.b16 %v1027, %v1026
  %v1304 = vpack.c.b16 %v1029, %v1028
  %v1305 = vpack.c.b16 %v1031, %v1030
  %v1306 = vpack.c.b16 %v1033, %v1032
  %v1307 = vpack.c.b16 %v1035, %v1034
  %v1308 = vpack.c.b16 %v1037, %v1036
  %v1309 = vpack.c.b16 %v1039, %v1038
  %v1310 = vpack.c.b16 %v1041, %v1040
  %v1311 = vpack.c.b16 %v1043, %v1042
  %v1312 = vpack.c.b16 %v1045, %v1044
  %v1313 = vpack.c.b16 %v1047, %v1046
  %v1314 = vpack.c.b16 %v1049, %v1048
  %v1315 = vpack.c.b16 %v1051, %v1050
  %v1316 = vpack.c.b16 %v1053, %v1052
  %v1317 = vpack.c.b16 %v1055, %v1054
  %v1318 = vpack.c.b16 %v1057, %v1056
  %v1319 = vpack.c.b16 %v1059, %v1058
  %v1320 = vpack.c.b16 %v1061, %v1060
  %v1321 = vpack.c.b16 %v1063, %v1062
  %v1322 = vpack.c.b16 %v1065, %v1064
  %v1323 = vpack.c.b16 %v1067, %v1066
  %v1324 = vpack.c.b16 %v1069, %v1068
  %v1325 = vpack.c.b16 %v1071, %v1070
  %v1326 = vpack.c.b16 %v1073, %v1072
  %v1327 = vpack.c.b16 %v1075, %v1074
  %v1328 = vpack.c.b16 %v1077, %v1076
  %v1329 = vpack.c.b16 %v1079, %v1078
  %v1330 = vpack.c.b16 %v1081, %v1080
  %v1331 = vpack.c.b16 %v1083, %v1082
  %v1332 = vpack.c.b16 %v1085, %v1084
  %v1333 = vpack.c.b16 %v1087, %v1086
  %v1334 = vpack.c.b16 %v1089, %v1088
  %v1335 = vpack.c.b16 %v1091, %v1090
  %v1336 = vpack.c.b16 %v1093, %v1092
  %v1337 = vpack.c.b16 %v1095, %v1094
  %v1338 = vpack.c.b16 %v1097, %v1096
  %v1339 = vpack.c.b16 %v1099, %v1098
  %v1340 = vpack.c.b16 %v1101, %v1100
  %v1341 = vpack.c.b16 %v1103, %v1102
  %v1342 = vpack.c.b16 %v1105, %v1104
  %v1343 = vpack.c.b16 %v1107, %v1106
  %v1344 = vpack.c.b16 %v1109, %v1108
  %v1345 = vpack.c.b16 %v1111, %v1110
  %v1346 = vpack.c.b16 %v1113, %v1112
  %v1347 = vpack.c.b16 %v1115, %v1114
  %v1348 = vpack.c.b16 %v1117, %v1116
  %v1349 = vpack.c.b16 %v1119, %v1118
  %v1350 = vpack.c.b16 %v1121, %v1120
  %v1351 = vpack.c.b16 %v1123, %v1122
  %v1352 = vpack.c.b16 %v1125, %v1124
  %v1353 = vpack.c.b16 %v1127, %v1126
  %v1354 = vpack.c.b16 %v1129, %v1128
  %v1355 = vpack.c.b16 %v1131, %v1130
  %v1356 = vpack.c.b16 %v1133, %v1132
  %v1357 = vpack.c.b16 %v1135, %v1134
  %v1358 = vpack.c.b16 %v1137, %v1136
  %v1359 = vpack.c.b16 %v1139, %v1138
  %v1360 = vpack.c.b16 %v1141, %v1140
  %v1361 = vpack.c.b16 %v1143, %v1142
  %v1362 = vpack.c.b16 %v1145, %v1144
  %v1363 = vpack.c.b16 %v1147, %v1146
  %v1364 = vpack.c.b16 %v1149, %v1148
  %v1365 = vpack.c.b16 %v1151, %v1150
  %v1366 = vpack.c.b16 %v1153, %v1152
  %v1367 = vpack.c.b16 %v1155, %v1154
  %v1368 = vpack.c.b16 %v1157, %v1156
  %v1369 = vpack.c.b16 %v1159, %v1158
  %v1370 = vpack.c.b16 %v1161, %v1160
  %v1371 = vpack.c.b16 %v1163, %v1162
  %v1372 = vpack.c.b16 %v1165, %v1164
  %v1373 = vpack.c.b16 %v1167, %v1166
  %v1374 = vpack.c.b16 %v1169, %v1168
  %v1375 = vpack.c.b16 %v1171, %v1170
  %v1376 = vpack.c.b16 %v1173, %v1172
  %v1377 = vpack.c.b16 %v1175, %v1174
  %v1378 = vpack.c.b16 %v1177, %v1176
  %v1379 = vpack.c.b16 %v1179, %v1178
  %v1380 = vpack.c.b16 %v1181, %v1180
  %v1381 = vpack.c.b16 %v1183, %v1182
  %v1382 = vpack.c.b16 %v1185, %v1184
  %v1383 = vpack.c.b16 %v1187, %v1186
  %v1384 = vpack.c.b16 %v1189, %v1188
  %v1385 = vpack.c.b16 %v1191, %v1190
  %v1386 = vpack.c.b16 %v1193, %v1192
  %v1387 = vpack.c.b16 %v1195, %v1194
  %v1388 = vpack.c.b16 %v1197, %v1196
  %v1389 = vpack.c.b16 %v1199, %v1198
  %v1390 = vpack.c.b16 %v1201, %v1200
  %v1391 = vpack.c.b16 %v1203, %v1202
  %v1392 = vpack.c.b16 %v1205, %v1204
  %v1393 = vpack.c.b16 %v1207, %v1206
  %v1394 = vpack.c.b16 %v1209, %v1208
  %v1395 = vpack.c.b16 %v1211, %v1210
  %v1396 = vpack.c.b16 %v1213, %v1212
  %v1397 = vpack.c.b16 %v1215, %v1214
  %v1398 = vpack.c.b16 %v1217, %v1216
  %v1399 = vpack.c.b16 %v1219, %v1218
  %v1400 = vpack.c.b16 %v1221, %v1220
  %v1401 = vpack.c.b16 %v1223, %v1222
  %v1402 = vpack.c.b16 %v1225, %v1224
  %v1403 = vpack.c.b16 %v1227, %v1226
  %v1404 = vpack.c.b16 %v1229, %v1228
  %v1405 = vpack.c.b16 %v1231, %v1230
  %v1406 = vpack.c.b16 %v1233, %v1232
  %v1407 = vpack.c.b16 %v1235, %v1234
  %v1408 = vpack.c.b16 %v1236, %v1236
  %vm1580 = vcmask 457728
  %v1582 = vsel %vm1580, %v527, 0
  %vm1584 = vcmask 1043456
  %v1586 = vsel %vm1584, %v1408, 0
  %1588 = vmatprep.subr.bf16.mxu0 0
  %1589 = vmatpush1.bf16.msra.mxu0 %v1237
  %1590 = vmatprep.subr.bf16.mxu0 0
  %1591 = vmatpush1.bf16.msra.mxu0 %v1238
  %1592 = vmatprep.subr.bf16.mxu0 0
  %1593 = vmatpush1.bf16.msra.mxu0 %v1239
  %1594 = vmatprep.subr.bf16.mxu0 0
  %1595 = vmatpush1.bf16.msra.mxu0 %v1240
  %1596 = vmatprep.subr.bf16.mxu0 0
  %1597 = vmatpush1.bf16.msra.mxu0 %v1241
  %1598 = vmatprep.subr.bf16.mxu0 0
  %1599 = vmatpush1.bf16.msra.mxu0 %v1242
  %1600 = vmatprep.subr.bf16.mxu0 0
  %1601 = vmatpush1.bf16.msra.mxu0 %v1243
  %1602 = vmatprep.subr.bf16.mxu0 0
  %1603 = vmatpush1.bf16.msra.mxu0 %v1244
  %1604 = vmatprep.subr.bf16.mxu0 0
  %1605 = vmatpush1.bf16.msra.mxu0 %v1245
  %1606 = vmatprep.subr.bf16.mxu0 0
  %1607 = vmatpush1.bf16.msra.mxu0 %v1246
  %1608 = vmatprep.subr.bf16.mxu0 0
  %1609 = vmatpush1.bf16.msra.mxu0 %v1247
  %1610 = vmatprep.subr.bf16.mxu0 0
  %1611 = vmatpush1.bf16.msra.mxu0 %v1248
  %1612 = vmatprep.subr.bf16.mxu0 0
  %1613 = vmatpush1.bf16.msra.mxu0 %v1249
  %1614 = vmatprep.subr.bf16.mxu0 0
  %1615 = vmatpush1.bf16.msra.mxu0 %v1250
  %1616 = vmatprep.subr.bf16.mxu0 0
  %1617 = vmatpush1.bf16.msra.mxu0 %v1251
  %1618 = vmatprep.subr.bf16.mxu0 0
  %1619 = vmatpush1.bf16.msra.mxu0 %v1252
  %1620 = vmatprep.mubr.bf16.mxu0 %v422
  %1621 = vmatmul.mubr.bf16.gmra.mrb[0].mxu0 %v408
  %v1622 = vpop.f32.mrb[0].mxu0
  %v1623 = vadd.f32 %v380, %v1622
  %v1624 = vpop.f32.mrb[0].mxu0
  %v1625 = vpop.f32.mrb[0].mxu0
  %v1626 = vpop.f32.mrb[0].mxu0
  %1627 = vdwg.mxu0
  %1628 = vmatprep.subr.bf16.mxu0 0
  %1629 = vmatpush1.bf16.msra.mxu0 %v1253
  %1630 = vmatprep.subr.bf16.mxu0 0
  %1631 = vmatpush1.bf16.msra.mxu0 %v1254
  %1632 = vmatprep.subr.bf16.mxu0 0
  %1633 = vmatpush1.bf16.msra.mxu0 %v1255
  %1634 = vmatprep.subr.bf16.mxu0 0
  %1635 = vmatpush1.bf16.msra.mxu0 %v1256
  %1636 = vmatprep.subr.bf16.mxu0 0
  %1637 = vmatpush1.bf16.msra.mxu0 %v1257
  %1638 = vmatprep.subr.bf16.mxu0 0
  %1639 = vmatpush1.bf16.msra.mxu0 %v1258
  %1640 = vmatprep.subr.bf16.mxu0 0
  %1641 = vmatpush1.bf16.msra.mxu0 %v1259
  %1642 = vmatprep.subr.bf16.mxu0 0
  %1643 = vmatpush1.bf16.msra.mxu0 %v1260
  %1644 = vmatprep.subr.bf16.mxu0 0
  %1645 = vmatpush1.bf16.msra.mxu0 %v1261
  %1646 = vmatprep.subr.bf16.mxu0 0
  %1647 = vmatpush1.bf16.msra.mxu0 %v1262
  %1648 = vmatprep.subr.bf16.mxu0 0
  %1649 = vmatpush1.bf16.msra.mxu0 %v1263
  %1650 = vmatprep.subr.bf16.mxu0 0
  %1651 = vmatpush1.bf16.msra.mxu0 %v1264
  %1652 = vmatprep.subr.bf16.mxu0 0
  %1653 = vmatpush1.bf16.msra.mxu0 %v1265
  %1654 = vmatprep.subr.bf16.mxu0 0
  %1655 = vmatpush1.bf16.msra.mxu0 %v1266
  %1656 = vmatprep.subr.bf16.mxu0 0
  %1657 = vmatpush1.bf16.msra.mxu0 %v1267
  %1658 = vmatprep.subr.bf16.mxu0 0
  %1659 = vmatpush1.bf16.msra.mxu0 %v1268
  %1660 = vmatprep.mubr.bf16.mxu0 %v432
  %1661 = vmatmul.mubr.bf16.gmra.mrb[0].mxu0 %v430
  %v1662 = vpop.f32.mrb[0].mxu0
  %v1663 = vadd.f32 %v1623, %v1662
  %v1664 = vpop.f32.mrb[0].mxu0
  %v1665 = vpop.f32.mrb[0].mxu0
  %v1666 = vpop.f32.mrb[0].mxu0
  %1667 = vdwg.mxu0
  %1668 = vmatprep.subr.bf16.mxu0 0
  %1669 = vmatpush1.bf16.msra.mxu0 %v1269
  %1670 = vmatprep.subr.bf16.mxu0 0
  %1671 = vmatpush1.bf16.msra.mxu0 %v1270
  %1672 = vmatprep.subr.bf16.mxu0 0
  %1673 = vmatpush1.bf16.msra.mxu0 %v1271
  %1674 = vmatprep.subr.bf16.mxu0 0
  %1675 = vmatpush1.bf16.msra.mxu0 %v1272
  %1676 = vmatprep.subr.bf16.mxu0 0
  %1677 = vmatpush1.bf16.msra.mxu0 %v1273
  %1678 = vmatprep.subr.bf16.mxu0 0
  %1679 = vmatpush1.bf16.msra.mxu0 %v1274
  %1680 = vmatprep.subr.bf16.mxu0 0
  %1681 = vmatpush1.bf16.msra.mxu0 %v1275
  %1682 = vmatprep.subr.bf16.mxu0 0
  %1683 = vmatpush1.bf16.msra.mxu0 %v1276
  %1684 = vmatprep.subr.bf16.mxu0 0
  %1685 = vmatpush1.bf16.msra.mxu0 %v1277
  %1686 = vmatprep.subr.bf16.mxu0 0
  %1687 = vmatpush1.bf16.msra.mxu0 %v1278
  %1688 = vmatprep.subr.bf16.mxu0 0
  %1689 = vmatpush1.bf16.msra.mxu0 %v1279
  %1690 = vmatprep.subr.bf16.mxu0 0
  %1691 = vmatpush1.bf16.msra.mxu0 %v1280
  %1692 = vmatprep.subr.bf16.mxu0 0
  %1693 = vmatpush1.bf16.msra.mxu0 %v1281
  %1694 = vmatprep.subr.bf16.mxu0 0
  %1695 = vmatpush1.bf16.msra.mxu0 %v1282
  %1696 = vmatprep.subr.bf16.mxu0 0
  %1697 = vmatpush1.bf16.msra.mxu0 %v1283
  %1698 = vmatprep.subr.bf16.mxu0 0
  %1699 = vmatpush1.bf16.msra.mxu0 %v1284
  %1700 = vmatprep.mubr.bf16.mxu0 %v429
  %1701 = vmatmul.mubr.bf16.gmra.mrb[0].mxu0 %v415
  %v1702 = vpop.f32.mrb[0].mxu0
  %v1703 = vadd.f32 %v1663, %v1702
  %v1704 = vpop.f32.mrb[0].mxu0
  %v1705 = vpop.f32.mrb[0].mxu0
  %v1706 = vpop.f32.mrb[0].mxu0
  %1707 = vdwg.mxu0
  %1708 = vmatprep.subr.bf16.mxu0 0
  %1709 = vmatpush1.bf16.msra.mxu0 %v1285
  %1710 = vmatprep.subr.bf16.mxu0 0
  %1711 = vmatpush1.bf16.msra.mxu0 %v1286
  %1712 = vmatprep.subr.bf16.mxu0 0
  %1713 = vmatpush1.bf16.msra.mxu0 %v1287
  %1714 = vmatprep.subr.bf16.mxu0 0
  %1715 = vmatpush1.bf16.msra.mxu0 %v1288
  %1716 = vmatprep.subr.bf16.mxu0 0
  %1717 = vmatpush1.bf16.msra.mxu0 %v1289
  %1718 = vmatprep.subr.bf16.mxu0 0
  %1719 = vmatpush1.bf16.msra.mxu0 %v1290
  %1720 = vmatprep.subr.bf16.mxu0 0
  %1721 = vmatpush1.bf16.msra.mxu0 %v1291
  %1722 = vmatprep.subr.bf16.mxu0 0
  %1723 = vmatpush1.bf16.msra.mxu0 %v1292
  %1724 = vmatprep.subr.bf16.mxu0 0
  %1725 = vmatpush1.bf16.msra.mxu0 %v1293
  %1726 = vmatprep.subr.bf16.mxu0 0
  %1727 = vmatpush1.bf16.msra.mxu0 %v1294
  %1728 = vmatprep.subr.bf16.mxu0 0
  %1729 = vmatpush1.bf16.msra.mxu0 %v1295
  %1730 = vmatprep.subr.bf16.mxu0 0
  %1731 = vmatpush1.bf16.msra.mxu0 %v1296
  %1732 = vmatprep.subr.bf16.mxu0 0
  %1733 = vmatpush1.bf16.msra.mxu0 %v1297
  %1734 = vmatprep.subr.bf16.mxu0 0
  %1735 = vmatpush1.bf16.msra.mxu0 %v1298
  %1736 = vmatprep.subr.bf16.mxu0 0
  %1737 = vmatpush1.bf16.msra.mxu0 %v1299
  %1738 = vmatprep.subr.bf16.mxu0 0
  %1739 = vmatpush1.bf16.msra.mxu0 %v1300
  %1740 = vmatprep.mubr.bf16.mxu0 %v433
  %1741 = vmatmul.mubr.bf16.gmra.mrb[0].mxu0 %v431
  %v1742 = vpop.f32.mrb[0].mxu0
  %v1743 = vadd.f32 %v1703, %v1742
  %v1744 = vpop.f32.mrb[0].mxu0
  %v1745 = vpop.f32.mrb[0].mxu0
  %v1746 = vpop.f32.mrb[0].mxu0
  %1747 = vdwg.mxu0
  %1748 = vmatprep.subr.bf16.mxu0 0
  %1749 = vmatpush1.bf16.msra.mxu0 %v1301
  %1750 = vmatprep.subr.bf16.mxu0 0
  %1751 = vmatpush1.bf16.msra.mxu0 %v1302
  %1752 = vmatprep.subr.bf16.mxu0 0
  %1753 = vmatpush1.bf16.msra.mxu0 %v1303
  %1754 = vmatprep.subr.bf16.mxu0 0
  %1755 = vmatpush1.bf16.msra.mxu0 %v1304
  %1756 = vmatprep.subr.bf16.mxu0 0
  %1757 = vmatpush1.bf16.msra.mxu0 %v1305
  %1758 = vmatprep.subr.bf16.mxu0 0
  %1759 = vmatpush1.bf16.msra.mxu0 %v1306
  %1760 = vmatprep.subr.bf16.mxu0 0
  %1761 = vmatpush1.bf16.msra.mxu0 %v1307
  %1762 = vmatprep.subr.bf16.mxu0 0
  %1763 = vmatpush1.bf16.msra.mxu0 %v1308
  %1764 = vmatprep.subr.bf16.mxu0 0
  %1765 = vmatpush1.bf16.msra.mxu0 %v1309
  %1766 = vmatprep.subr.bf16.mxu0 0
  %1767 = vmatpush1.bf16.msra.mxu0 %v1310
  %1768 = vmatprep.subr.bf16.mxu0 0
  %1769 = vmatpush1.bf16.msra.mxu0 %v1311
  %1770 = vmatprep.subr.bf16.mxu0 0
  %1771 = vmatpush1.bf16.msra.mxu0 %v1312
  %1772 = vmatprep.subr.bf16.mxu0 0
  %1773 = vmatpush1.bf16.msra.mxu0 %v1313
  %1774 = vmatprep.subr.bf16.mxu0 0
  %1775 = vmatpush1.bf16.msra.mxu0 %v1314
  %1776 = vmatprep.subr.bf16.mxu0 0
  %1777 = vmatpush1.bf16.msra.mxu0 %v1315
  %1778 = vmatprep.subr.bf16.mxu0 0
  %1779 = vmatpush1.bf16.msra.mxu0 %v1316
  %1780 = vmatprep.mubr.bf16.mxu0 %v471
  %1781 = vmatmul.mubr.bf16.gmra.mrb[0].mxu0 %v457
  %v1782 = vpop.f32.mrb[0].mxu0
  %v1783 = vadd.f32 %v1743, %v1782
  %v1784 = vpop.f32.mrb[0].mxu0
  %v1785 = vpop.f32.mrb[0].mxu0
  %v1786 = vpop.f32.mrb[0].mxu0
  %1787 = vdwg.mxu0
  %1788 = vmatprep.subr.bf16.mxu0 0
  %1789 = vmatpush1.bf16.msra.mxu0 %v1317
  %1790 = vmatprep.subr.bf16.mxu0 0
  %1791 = vmatpush1.bf16.msra.mxu0 %v1318
  %1792 = vmatprep.subr.bf16.mxu0 0
  %1793 = vmatpush1.bf16.msra.mxu0 %v1319
  %1794 = vmatprep.subr.bf16.mxu0 0
  %1795 = vmatpush1.bf16.msra.mxu0 %v1320
  %1796 = vmatprep.subr.bf16.mxu0 0
  %1797 = vmatpush1.bf16.msra.mxu0 %v1321
  %1798 = vmatprep.subr.bf16.mxu0 0
  %1799 = vmatpush1.bf16.msra.mxu0 %v1322
  %1800 = vmatprep.subr.bf16.mxu0 0
  %1801 = vmatpush1.bf16.msra.mxu0 %v1323
  %1802 = vmatprep.subr.bf16.mxu0 0
  %1803 = vmatpush1.bf16.msra.mxu0 %v1324
  %1804 = vmatprep.subr.bf16.mxu0 0
  %1805 = vmatpush1.bf16.msra.mxu0 %v1325
  %1806 = vmatprep.subr.bf16.mxu0 0
  %1807 = vmatpush1.bf16.msra.mxu0 %v1326
  %1808 = vmatprep.subr.bf16.mxu0 0
  %1809 = vmatpush1.bf16.msra.mxu0 %v1327
  %1810 = vmatprep.subr.bf16.mxu0 0
  %1811 = vmatpush1.bf16.msra.mxu0 %v1328
  %1812 = vmatprep.subr.bf16.mxu0 0
  %1813 = vmatpush1.bf16.msra.mxu0 %v1329
  %1814 = vmatprep.subr.bf16.mxu0 0
  %1815 = vmatpush1.bf16.msra.mxu0 %v1330
  %1816 = vmatprep.subr.bf16.mxu0 0
  %1817 = vmatpush1.bf16.msra.mxu0 %v1331
  %1818 = vmatprep.subr.bf16.mxu0 0
  %1819 = vmatpush1.bf16.msra.mxu0 %v1332
  %1820 = vmatprep.mubr.bf16.mxu0 %v481
  %1821 = vmatmul.mubr.bf16.gmra.mrb[0].mxu0 %v479
  %v1822 = vpop.f32.mrb[0].mxu0
  %v1823 = vadd.f32 %v1783, %v1822
  %v1824 = vpop.f32.mrb[0].mxu0
  %v1825 = vpop.f32.mrb[0].mxu0
  %v1826 = vpop.f32.mrb[0].mxu0
  %1827 = vdwg.mxu0
  %1828 = vmatprep.subr.bf16.mxu0 0
  %1829 = vmatpush1.bf16.msra.mxu0 %v1333
  %1830 = vmatprep.subr.bf16.mxu0 0
  %1831 = vmatpush1.bf16.msra.mxu0 %v1334
  %1832 = vmatprep.subr.bf16.mxu0 0
  %1833 = vmatpush1.bf16.msra.mxu0 %v1335
  %1834 = vmatprep.subr.bf16.mxu0 0
  %1835 = vmatpush1.bf16.msra.mxu0 %v1336
  %1836 = vmatprep.subr.bf16.mxu0 0
  %1837 = vmatpush1.bf16.msra.mxu0 %v1337
  %1838 = vmatprep.subr.bf16.mxu0 0
  %1839 = vmatpush1.bf16.msra.mxu0 %v1338
  %1840 = vmatprep.subr.bf16.mxu0 0
  %1841 = vmatpush1.bf16.msra.mxu0 %v1339
  %1842 = vmatprep.subr.bf16.mxu0 0
  %1843 = vmatpush1.bf16.msra.mxu0 %v1340
  %1844 = vmatprep.subr.bf16.mxu0 0
  %1845 = vmatpush1.bf16.msra.mxu0 %v1341
  %1846 = vmatprep.subr.bf16.mxu0 0
  %1847 = vmatpush1.bf16.msra.mxu0 %v1342
  %1848 = vmatprep.subr.bf16.mxu0 0
  %1849 = vmatpush1.bf16.msra.mxu0 %v1343
  %1850 = vmatprep.subr.bf16.mxu0 0
  %1851 = vmatpush1.bf16.msra.mxu0 %v1344
  %1852 = vmatprep.subr.bf16.mxu0 0
  %1853 = vmatpush1.bf16.msra.mxu0 %v1345
  %1854 = vmatprep.subr.bf16.mxu0 0
  %1855 = vmatpush1.bf16.msra.mxu0 %v1346
  %1856 = vmatprep.subr.bf16.mxu0 0
  %1857 = vmatpush1.bf16.msra.mxu0 %v1347
  %1858 = vmatprep.subr.bf16.mxu0 0
  %1859 = vmatpush1.bf16.msra.mxu0 %v1348
  %1860 = vmatprep.mubr.bf16.mxu0 %v478
  %1861 = vmatmul.mubr.bf16.gmra.mrb[0].mxu0 %v464
  %v1862 = vpop.f32.mrb[0].mxu0
  %v1863 = vadd.f32 %v1823, %v1862
  %v1864 = vpop.f32.mrb[0].mxu0
  %v1865 = vpop.f32.mrb[0].mxu0
  %v1866 = vpop.f32.mrb[0].mxu0
  %1867 = vdwg.mxu0
  %1868 = vmatprep.subr.bf16.mxu0 0
  %1869 = vmatpush1.bf16.msra.mxu0 %v1349
  %1870 = vmatprep.subr.bf16.mxu0 0
  %1871 = vmatpush1.bf16.msra.mxu0 %v1350
  %1872 = vmatprep.subr.bf16.mxu0 0
  %1873 = vmatpush1.bf16.msra.mxu0 %v1351
  %1874 = vmatprep.subr.bf16.mxu0 0
  %1875 = vmatpush1.bf16.msra.mxu0 %v1352
  %1876 = vmatprep.subr.bf16.mxu0 0
  %1877 = vmatpush1.bf16.msra.mxu0 %v1353
  %1878 = vmatprep.subr.bf16.mxu0 0
  %1879 = vmatpush1.bf16.msra.mxu0 %v1354
  %1880 = vmatprep.subr.bf16.mxu0 0
  %1881 = vmatpush1.bf16.msra.mxu0 %v1355
  %1882 = vmatprep.subr.bf16.mxu0 0
  %1883 = vmatpush1.bf16.msra.mxu0 %v1356
  %1884 = vmatprep.subr.bf16.mxu0 0
  %1885 = vmatpush1.bf16.msra.mxu0 %v1357
  %1886 = vmatprep.subr.bf16.mxu0 0
  %1887 = vmatpush1.bf16.msra.mxu0 %v1358
  %1888 = vmatprep.subr.bf16.mxu0 0
  %1889 = vmatpush1.bf16.msra.mxu0 %v1359
  %1890 = vmatprep.subr.bf16.mxu0 0
  %1891 = vmatpush1.bf16.msra.mxu0 %v1360
  %1892 = vmatprep.subr.bf16.mxu0 0
  %1893 = vmatpush1.bf16.msra.mxu0 %v1361
  %1894 = vmatprep.subr.bf16.mxu0 0
  %1895 = vmatpush1.bf16.msra.mxu0 %v1362
  %1896 = vmatprep.subr.bf16.mxu0 0
  %1897 = vmatpush1.bf16.msra.mxu0 %v1363
  %1898 = vmatprep.subr.bf16.mxu0 0
  %1899 = vmatpush1.bf16.msra.mxu0 %v1364
  %1900 = vmatprep.mubr.bf16.mxu0 %v482
  %1901 = vmatmul.mubr.bf16.gmra.mrb[0].mxu0 %v480
  %v1902 = vpop.f32.mrb[0].mxu0
  %v1903 = vadd.f32 %v1863, %v1902
  %v1904 = vpop.f32.mrb[0].mxu0
  %v1905 = vpop.f32.mrb[0].mxu0
  %v1906 = vpop.f32.mrb[0].mxu0
  %1907 = vdwg.mxu0
  %1908 = vmatprep.subr.bf16.mxu0 0
  %1909 = vmatpush1.bf16.msra.mxu0 %v1365
  %1910 = vmatprep.subr.bf16.mxu0 0
  %1911 = vmatpush1.bf16.msra.mxu0 %v1366
  %1912 = vmatprep.subr.bf16.mxu0 0
  %1913 = vmatpush1.bf16.msra.mxu0 %v1367
  %1914 = vmatprep.subr.bf16.mxu0 0
  %1915 = vmatpush1.bf16.msra.mxu0 %v1368
  %1916 = vmatprep.subr.bf16.mxu0 0
  %1917 = vmatpush1.bf16.msra.mxu0 %v1369
  %1918 = vmatprep.subr.bf16.mxu0 0
  %1919 = vmatpush1.bf16.msra.mxu0 %v1370
  %1920 = vmatprep.subr.bf16.mxu0 0
  %1921 = vmatpush1.bf16.msra.mxu0 %v1371
  %1922 = vmatprep.subr.bf16.mxu0 0
  %1923 = vmatpush1.bf16.msra.mxu0 %v1372
  %1924 = vmatprep.subr.bf16.mxu0 0
  %1925 = vmatpush1.bf16.msra.mxu0 %v1373
  %1926 = vmatprep.subr.bf16.mxu0 0
  %1927 = vmatpush1.bf16.msra.mxu0 %v1374
  %1928 = vmatprep.subr.bf16.mxu0 0
  %1929 = vmatpush1.bf16.msra.mxu0 %v1375
  %1930 = vmatprep.subr.bf16.mxu0 0
  %1931 = vmatpush1.bf16.msra.mxu0 %v1376
  %1932 = vmatprep.subr.bf16.mxu0 0
  %1933 = vmatpush1.bf16.msra.mxu0 %v1377
  %1934 = vmatprep.subr.bf16.mxu0 0
  %1935 = vmatpush1.bf16.msra.mxu0 %v1378
  %1936 = vmatprep.subr.bf16.mxu0 0
  %1937 = vmatpush1.bf16.msra.mxu0 %v1379
  %1938 = vmatprep.subr.bf16.mxu0 0
  %1939 = vmatpush1.bf16.msra.mxu0 %v1380
  %1940 = vmatprep.mubr.bf16.mxu0 %v520
  %1941 = vmatmul.mubr.bf16.gmra.mrb[0].mxu0 %v506
  %v1942 = vpop.f32.mrb[0].mxu0
  %v1943 = vadd.f32 %v1903, %v1942
  %v1944 = vpop.f32.mrb[0].mxu0
  %v1945 = vpop.f32.mrb[0].mxu0
  %v1946 = vpop.f32.mrb[0].mxu0
  %1947 = vdwg.mxu0
  %1948 = vmatprep.subr.bf16.mxu0 0
  %1949 = vmatpush1.bf16.msra.mxu0 %v1381
  %1950 = vmatprep.subr.bf16.mxu0 0
  %1951 = vmatpush1.bf16.msra.mxu0 %v1382
  %1952 = vmatprep.subr.bf16.mxu0 0
  %1953 = vmatpush1.bf16.msra.mxu0 %v1383
  %1954 = vmatprep.subr.bf16.mxu0 0
  %1955 = vmatpush1.bf16.msra.mxu0 %v1384
  %1956 = vmatprep.subr.bf16.mxu0 0
  %1957 = vmatpush1.bf16.msra.mxu0 %v1385
  %1958 = vmatprep.subr.bf16.mxu0 0
  %1959 = vmatpush1.bf16.msra.mxu0 %v1386
  %1960 = vmatprep.subr.bf16.mxu0 0
  %1961 = vmatpush1.bf16.msra.mxu0 %v1387
  %1962 = vmatprep.subr.bf16.mxu0 0
  %1963 = vmatpush1.bf16.msra.mxu0 %v1388
  %1964 = vmatprep.subr.bf16.mxu0 0
  %1965 = vmatpush1.bf16.msra.mxu0 %v1389
  %1966 = vmatprep.subr.bf16.mxu0 0
  %1967 = vmatpush1.bf16.msra.mxu0 %v1390
  %1968 = vmatprep.subr.bf16.mxu0 0
  %1969 = vmatpush1.bf16.msra.mxu0 %v1391
  %1970 = vmatprep.subr.bf16.mxu0 0
  %1971 = vmatpush1.bf16.msra.mxu0 %v1392
  %1972 = vmatprep.subr.bf16.mxu0 0
  %1973 = vmatpush1.bf16.msra.mxu0 %v1393
  %1974 = vmatprep.subr.bf16.mxu0 0
  %1975 = vmatpush1.bf16.msra.mxu0 %v1394
  %1976 = vmatprep.subr.bf16.mxu0 0
  %1977 = vmatpush1.bf16.msra.mxu0 %v1395
  %1978 = vmatprep.subr.bf16.mxu0 0
  %1979 = vmatpush1.bf16.msra.mxu0 %v1396
  %1980 = vmatprep.mubr.bf16.mxu0 %v529
  %1981 = vmatmul.mubr.bf16.gmra.mrb[0].mxu0 %v528
  %v1982 = vpop.f32.mrb[0].mxu0
  %v1983 = vadd.f32 %v1943, %v1982
  %v1984 = vpop.f32.mrb[0].mxu0
  %v1985 = vpop.f32.mrb[0].mxu0
  %v1986 = vpop.f32.mrb[0].mxu0
  %1987 = vdwg.mxu0
  %1988 = vmatprep.subr.bf16.mxu0 0
  %1989 = vmatpush1.bf16.msra.mxu0 %v1397
  %1990 = vmatprep.subr.bf16.mxu0 0
  %1991 = vmatpush1.bf16.msra.mxu0 %v1398
  %1992 = vmatprep.subr.bf16.mxu0 0
  %1993 = vmatpush1.bf16.msra.mxu0 %v1399
  %1994 = vmatprep.subr.bf16.mxu0 0
  %1995 = vmatpush1.bf16.msra.mxu0 %v1400
  %1996 = vmatprep.subr.bf16.mxu0 0
  %1997 = vmatpush1.bf16.msra.mxu0 %v1401
  %1998 = vmatprep.subr.bf16.mxu0 0
  %1999 = vmatpush1.bf16.msra.mxu0 %v1402
  %2000 = vmatprep.subr.bf16.mxu0 0
  %2001 = vmatpush1.bf16.msra.mxu0 %v1403
  %2002 = vmatprep.subr.bf16.mxu0 0
  %2003 = vmatpush1.bf16.msra.mxu0 %v1404
  %2004 = vmatprep.subr.bf16.mxu0 0
  %2005 = vmatpush1.bf16.msra.mxu0 %v1405
  %2006 = vmatprep.subr.bf16.mxu0 0
  %2007 = vmatpush1.bf16.msra.mxu0 %v1406
  %2008 = vmatprep.subr.bf16.mxu0 0
  %2009 = vmatpush1.bf16.msra.mxu0 %v1407
  %2010 = vmatprep.subr.bf16.mxu0 0
  %2011 = vmatpush1.bf16.msra.mxu0 %v1586
  %2012 = vmatprep.subr.bf16.mxu0 0
  %2013 = vmatpush1.bf16.msra.mxu0 0
  %2014 = vmatprep.subr.bf16.mxu0 0
  %2015 = vmatpush1.bf16.msra.mxu0 0
  %2016 = vmatprep.subr.bf16.mxu0 0
  %2017 = vmatpush1.bf16.msra.mxu0 0
  %2018 = vmatprep.subr.bf16.mxu0 0
  %2019 = vmatpush1.bf16.msra.mxu0 0
  %2020 = vmatprep.mubr.bf16.mxu0 %v1582
  %2021 = vmatmul.mubr.bf16.gmra.mrb[0].mxu0 %v513
  %v2022 = vpop.f32.mrb[0].mxu0
  %v2023 = vadd.f32 %v1983, %v2022
  %v2024 = vpop.f32.mrb[0].mxu0
  %v2025 = vpop.f32.mrb[0].mxu0
  %v2026 = vpop.f32.mrb[0].mxu0
  %2027 = vdwg.mxu0
  %v2028 = vmax.f32 %v2023, 0.0
  %v2029 = vpack.c.bf16 %v2028, %v2028
  %v2030 = vld [vmem:[%s3] sm:$0xf]
  %v2031 = vld [vmem:[%s3 + $0x4] sm:$0xf]
  %v2032 = vld [vmem:[%s3 + $0x8] sm:$0xf]
  %v2033 = vld [vmem:[%s3 + $0xc] sm:$0xf]
  %v2034 = vld [vmem:[%s3 + $0x10] sm:$0xf]
  %v2035 = vld [vmem:[%s3 + $0x14] sm:$0xf]
  %v2036 = vld [vmem:[%s3 + $0x18] sm:$0xf]
  %v2037 = vld [vmem:[%s3 + $0x1c] sm:$0xf]
  %v2038 = vld [vmem:[%s3 + $0x20] sm:$0xf]
  %v2039 = vld [vmem:[%s3 + $0x24] sm:$0xf]
  %v2040 = vld [vmem:[%s3 + $0x28] sm:$0xf]
  %v2041 = vld [vmem:[%s3 + $0x2c] sm:$0xf]
  %v2042 = vld [vmem:[%s3 + $0x30] sm:$0xf]
  %v2043 = vld [vmem:[%s3 + $0x34] sm:$0xf]
  %v2044 = vld [vmem:[%s3 + $0x38] sm:$0xf]
  %v2045 = vld [vmem:[%s3 + $0x3c] sm:$0xf]
  %v2046 = vld [vmem:[%s4] sm:$0x1]
  %v2048 = vlaneseq
  %v2049 = vshrl.u32 %v2048, 7
  %v2050 = vsub.s32 0, %v2049
  %v2051 = vrot.slane %v2046, %v2050
  %v2069 = vunpack.c.l.b16 %v2030
  %v2070 = vunpack.c.l.b16 %v2031
  %v2071 = vunpack.c.l.b16 %v2032
  %v2072 = vunpack.c.l.b16 %v2033
  %v2073 = vunpack.c.l.b16 %v2034
  %v2074 = vunpack.c.l.b16 %v2035
  %v2075 = vunpack.c.l.b16 %v2036
  %v2076 = vunpack.c.l.b16 %v2037
  %v2077 = vunpack.c.l.b16 %v2038
  %v2078 = vunpack.c.l.b16 %v2039
  %v2079 = vunpack.c.l.b16 %v2040
  %v2080 = vunpack.c.l.b16 %v2041
  %v2081 = vunpack.c.l.b16 %v2042
  %v2082 = vunpack.c.l.b16 %v2043
  %v2083 = vunpack.c.l.b16 %v2044
  %v2084 = vunpack.c.l.b16 %v2045
  %v2085 = vpack.c.b16 %v2070, %v2069
  %v2086 = vpack.c.b16 %v2072, %v2071
  %v2087 = vpack.c.b16 %v2074, %v2073
  %v2088 = vpack.c.b16 %v2076, %v2075
  %v2089 = vpack.c.b16 %v2078, %v2077
  %v2090 = vpack.c.b16 %v2080, %v2079
  %v2091 = vpack.c.b16 %v2082, %v2081
  %v2092 = vpack.c.b16 %v2084, %v2083
  %2101 = vmatprep.subr.bf16.mxu0 0
  %2102 = vmatpush1.bf16.msra.mxu0 %v2085
  %2103 = vmatprep.subr.bf16.mxu0 0
  %2104 = vmatpush1.bf16.msra.mxu0 %v2086
  %2105 = vmatprep.subr.bf16.mxu0 0
  %2106 = vmatpush1.bf16.msra.mxu0 %v2087
  %2107 = vmatprep.subr.bf16.mxu0 0
  %2108 = vmatpush1.bf16.msra.mxu0 %v2088
  %2109 = vmatprep.subr.bf16.mxu0 0
  %2110 = vmatpush1.bf16.msra.mxu0 %v2089
  %2111 = vmatprep.subr.bf16.mxu0 0
  %2112 = vmatpush1.bf16.msra.mxu0 %v2090
  %2113 = vmatprep.subr.bf16.mxu0 0
  %2114 = vmatpush1.bf16.msra.mxu0 %v2091
  %2115 = vmatprep.subr.bf16.mxu0 0
  %2116 = vmatpush1.bf16.msra.mxu0 %v2092
  %2117 = vmatprep.subr.bf16.mxu0 0
  %2118 = vmatpush1.bf16.msra.mxu0 0
  %2119 = vmatprep.subr.bf16.mxu0 0
  %2120 = vmatpush1.bf16.msra.mxu0 0
  %2121 = vmatprep.subr.bf16.mxu0 0
  %2122 = vmatpush1.bf16.msra.mxu0 0
  %2123 = vmatprep.subr.bf16.mxu0 0
  %2124 = vmatpush1.bf16.msra.mxu0 0
  %2125 = vmatprep.subr.bf16.mxu0 0
  %2126 = vmatpush1.bf16.msra.mxu0 0
  %2127 = vmatprep.subr.bf16.mxu0 0
  %2128 = vmatpush1.bf16.msra.mxu0 0
  %2129 = vmatprep.subr.bf16.mxu0 0
  %2130 = vmatpush1.bf16.msra.mxu0 0
  %2131 = vmatprep.subr.bf16.mxu0 0
  %2132 = vmatpush1.bf16.msra.mxu0 0
  %2133 = vmatprep.mubr.bf16.mxu0 0
  %2134 = vmatmul.mubr.bf16.gmra.mrb[0].mxu0 %v2029
  %v2135 = vpop.f32.mrb[0].mxu0
  %v2136 = vadd.f32 %v2051, %v2135
  %v2137 = vpop.f32.mrb[0].mxu0
  %v2138 = vpop.f32.mrb[0].mxu0
  %v2139 = vpop.f32.mrb[0].mxu0
  %2140 = vdwg.mxu0
  %v2141 = vmax.f32 %v2136, 0.0
  %v2142 = vpack.c.bf16 %v2141, %v2141
  %v2143 = vld [vmem:[%s5] sm:$0xf]
  %v2144 = vld [vmem:[%s5 + $0x4] sm:$0xf]
  %v2145 = vld [vmem:[%s5 + $0x8] sm:$0xf]
  %v2146 = vld [vmem:[%s5 + $0xc] sm:$0xf]
  %v2147 = vld [vmem:[%s5 + $0x10] sm:$0xf]
  %v2148 = vld [vmem:[%s5 + $0x14] sm:$0xf]
  %v2149 = vld [vmem:[%s5 + $0x18] sm:$0xf]
  %v2150 = vld [vmem:[%s5 + $0x1c] sm:$0xf]
  %v2151 = vld [vmem:[#allocation2] sm:$0x1]
  %v2153 = vlaneseq
  %v2154 = vshrl.u32 %v2153, 7
  %v2155 = vsub.s32 0, %v2154
  %v2156 = vrot.slane %v2151, %v2155
  %v2166 = vunpack.c.l.b16 %v2143
  %v2167 = vunpack.c.l.b16 %v2144
  %v2168 = vunpack.c.l.b16 %v2145
  %v2169 = vunpack.c.l.b16 %v2146
  %v2170 = vunpack.c.l.b16 %v2147
  %v2171 = vunpack.c.l.b16 %v2148
  %v2172 = vunpack.c.l.b16 %v2149
  %v2173 = vunpack.c.l.b16 %v2150
  %v2174 = vpack.c.b16 %v2167, %v2166
  %v2175 = vpack.c.b16 %v2169, %v2168
  %v2176 = vpack.c.b16 %v2171, %v2170
  %v2177 = vpack.c.b16 %v2173, %v2172
  %vm2182 = vcmask 523264
  %v2184 = vsel %vm2182, %v2142, 0
  %2186 = vmatprep.subr.bf16.mxu0 0
  %2187 = vmatpush1.bf16.msra.mxu0 %v2174
  %2188 = vmatprep.subr.bf16.mxu0 0
  %2189 = vmatpush1.bf16.msra.mxu0 %v2175
  %2190 = vmatprep.subr.bf16.mxu0 0
  %2191 = vmatpush1.bf16.msra.mxu0 %v2176
  %2192 = vmatprep.subr.bf16.mxu0 0
  %2193 = vmatpush1.bf16.msra.mxu0 %v2177
  %2194 = vmatprep.subr.bf16.mxu0 0
  %2195 = vmatpush1.bf16.msra.mxu0 0
  %2196 = vmatprep.subr.bf16.mxu0 0
  %2197 = vmatpush1.bf16.msra.mxu0 0
  %2198 = vmatprep.subr.bf16.mxu0 0
  %2199 = vmatpush1.bf16.msra.mxu0 0
  %2200 = vmatprep.subr.bf16.mxu0 0
  %2201 = vmatpush1.bf16.msra.mxu0 0
  %2202 = vmatprep.subr.bf16.mxu0 0
  %2203 = vmatpush1.bf16.msra.mxu0 0
  %2204 = vmatprep.subr.bf16.mxu0 0
  %2205 = vmatpush1.bf16.msra.mxu0 0
  %2206 = vmatprep.subr.bf16.mxu0 0
  %2207 = vmatpush1.bf16.msra.mxu0 0
  %2208 = vmatprep.subr.bf16.mxu0 0
  %2209 = vmatpush1.bf16.msra.mxu0 0
  %2210 = vmatprep.subr.bf16.mxu0 0
  %2211 = vmatpush1.bf16.msra.mxu0 0
  %2212 = vmatprep.subr.bf16.mxu0 0
  %2213 = vmatpush1.bf16.msra.mxu0 0
  %2214 = vmatprep.subr.bf16.mxu0 0
  %2215 = vmatpush1.bf16.msra.mxu0 0
  %2216 = vmatprep.subr.bf16.mxu0 0
  %2217 = vmatpush1.bf16.msra.mxu0 0
  %2218 = vmatprep.mubr.bf16.mxu0 0
  %2219 = vmatmul.mubr.bf16.gmra.mrb[0].mxu0 %v2184
  %v2220 = vpop.f32.mrb[0].mxu0
  %v2221 = vadd.f32 %v2156, %v2220
  %v2222 = vpop.f32.mrb[0].mxu0
  %v2223 = vpop.f32.mrb[0].mxu0
  %v2224 = vpop.f32.mrb[0].mxu0
  %2225 = vdwg.mxu0
  %vm2226 = vcmask 1024
  %2227 = vst.msk [vmem:[%s7] sm:$0x3] %vm2226, %v2221
  // Predicated region
  $region30: #{net_forward.3} parent=0 // pred_check
    _
  $region31: #{net_forward.3} parent=0 // pred_check_branch
    %2229 = sbr.rel (0) target = $region33
  $region32: #{net_forward.3} parent=0 // pred_region
    _
  $region33: #{net_forward.3} parent=0 // pred_fallthru
    _
  // Predicated region
  $region34: #{net_forward.3} parent=0 // pred_check
    _
  $region35: #{net_forward.3} parent=0 // pred_check_branch
    %2231 = sbr.rel (0) target = $region37
  $region36: #{net_forward.3} parent=0 // pred_region
    _
  $region37: #{net_forward.3} parent=0 // pred_fallthru
    _

</llo_original>
